<compile_context>
chip_gen: v5e
topology: v5e:2x2
jax: 0.10.0
libtpu: 0.0.40
codegen_flags: <defaults>
</compile_context>

<pallas_src>
import functools

import numpy as np
import jax
import jax.numpy as jnp
from jax.experimental import pallas as pl
from jax.experimental.pallas import tpu as pltpu


def _distill_kernel(src_idx_ref, tgt_idx_ref, feat_src_ref, feat_tgt_ref, w_ref,
                    out_ref, xpad_ref, acc_ref, *, H, W, C, K, cdtype):
    """One grid step: SABlock_{t, a_k}(features_{a_k}) accumulated onto features_t.

    feat_src_ref: (1, 1, H, W, C)   source-task features (picked via src_idx table)
    feat_tgt_ref: (1, 1, H, W, C)   target-task features (residual), constant in k
    w_ref:        (1, K*9, C, 2C)   fused conv weights; row-block (k*9 + dy*3 + dx)
                                    holds [wa | wc] of tap (dy, dx)
    out_ref:      (1, 1, H, W, C)   resident across the k (reduction) axis
    xpad_ref:     (H+2, W+2, C)     VMEM scratch: zero-padded source tile
    acc_ref:      (H*W, C) f32      VMEM scratch: residual + sum of adapters
    """
    k = pl.program_id(2)

    # k == 0: seed the accumulator with the target-task features (residual).
    @pl.when(k == 0)
    def _():
        acc_ref[...] = feat_tgt_ref[0, 0].reshape(H * W, C).astype(jnp.float32)

    # Build the SAME-padded source tile in VMEM (halo done in-kernel, so the
    # wrapper never materializes a padded HBM copy of the activations).
    fdt = xpad_ref.dtype
    xpad_ref[0:1, :, :] = jnp.zeros((1, W + 2, C), fdt)
    xpad_ref[H + 1:H + 2, :, :] = jnp.zeros((1, W + 2, C), fdt)
    xpad_ref[:, 0:1, :] = jnp.zeros((H + 2, 1, C), fdt)
    xpad_ref[:, W + 1:W + 2, :] = jnp.zeros((H + 2, 1, C), fdt)
    xpad_ref[1:H + 1, 1:W + 1, :] = feat_src_ref[0, 0]

    # Both 3x3 convs fused: 9 shifted (H*W, C) @ (C, 2C) MXU matmuls, f32 acc.
    # Columns [:C] = attention logits, [C:] = content features.
    att_ftr = None
    for dy in range(3):
        for dx in range(3):
            patch = xpad_ref[dy:dy + H, dx:dx + W, :].reshape(H * W, C)
            w_tap = w_ref[0, k * 9 + dy * 3 + dx]            # (C, 2C), dynamic k
            part = jnp.dot(patch.astype(cdtype), w_tap,
                           preferred_element_type=jnp.float32)
            att_ftr = part if att_ftr is None else att_ftr + part

    att = att_ftr[:, :C]
    ftr = att_ftr[:, C:]
    acc_ref[...] += ftr * jax.nn.sigmoid(att)                # SABlock + cross-task sum

    # Last k: single store of the finished block.
    @pl.when(k == K - 1)
    def _():
        out_ref[0, 0] = acc_ref[...].reshape(H, W, C).astype(out_ref.dtype)


def _distill_fused(feats_all, w_flat, src_idx, tgt_idx, *, compute_dtype):
    """feats_all: (A, N, H, W, C); w_flat: (T, K*9, C, 2C);
    src_idx: (T*K,) int32 slab index of the source task of grid step (t, k);
    tgt_idx: (T,)   int32 slab index of the target (residual) task."""
    A, N, H, W, C = feats_all.shape
    T = w_flat.shape[0]
    K = w_flat.shape[1] // 9

    kernel = functools.partial(_distill_kernel, H=H, W=W, C=C, K=K,
                               cdtype=compute_dtype)
    isz = feats_all.dtype.itemsize
    wsz = np.dtype(compute_dtype).itemsize
    cost = pl.CostEstimate(
        flops=int(2 * T * N * K * 9 * H * W * C * (2 * C)),
        transcendentals=int(T * N * K * H * W * C),
        bytes_accessed=int(T * N * (K + 2) * H * W * C * isz
                           + T * K * 9 * C * 2 * C * wsz),
    )

    return pl.pallas_call(
        kernel,
        out_shape=jax.ShapeDtypeStruct((T, N, H, W, C), feats_all.dtype),
        grid_spec=pltpu.PrefetchScalarGridSpec(
            num_scalar_prefetch=2,
            grid=(T, N, K),          # K (other-task) reduction axis innermost
            in_specs=[
                # source-task features, selected via the scalar-prefetch table
                pl.BlockSpec((1, 1, H, W, C),
                             lambda t, n, k, src, tgt: (src[t * K + k], n, 0, 0, 0)),
                # target-task features (residual); block constant across k
                pl.BlockSpec((1, 1, H, W, C),
                             lambda t, n, k, src, tgt: (tgt[t], n, 0, 0, 0)),
                # fused conv weights for all K source tasks: grid-resident
                # (block index changes only with t -> fetched T times per call)
                pl.BlockSpec((1, K * 9, C, 2 * C),
                             lambda t, n, k, src, tgt: (t, 0, 0, 0)),
            ],
            out_specs=pl.BlockSpec((1, 1, H, W, C),
                                   lambda t, n, k, src, tgt: (t, n, 0, 0, 0)),
            scratch_shapes=[
                pltpu.VMEM((H + 2, W + 2, C), feats_all.dtype),  # padded tile
                pltpu.VMEM((H * W, C), jnp.float32),             # f32 accumulator
            ],
        ),
        compiler_params=pltpu.CompilerParams(
            dimension_semantics=("parallel", "parallel", "arbitrary")),
        cost_estimate=cost,
    )(src_idx, tgt_idx, feats_all, feats_all, w_flat)


class MultiTaskDistillationModule:
    """Pallas/JAX port of the PyTorch MultiTaskDistillationModule.

    Uses the PAD-Net SABlock: two bias-free 3x3 SAME convs, one gating the other
    through a sigmoid. Weights use Conv2d's default uniform(+-1/sqrt(fan_in))
    init. `compute_dtype` (e.g. jnp.bfloat16) selects the MXU operand dtype;
    accumulation is always f32.
    """

    def __init__(self, tasks, auxilary_tasks, channels, key, compute_dtype=None):
        self.tasks = list(tasks)
        self.auxilary_tasks = list(auxilary_tasks)
        self.channels = channels
        self.compute_dtype = compute_dtype
        self.other = {}
        self.w_cat = {}   # per task: (K_t, 3, 3, C, 2C) f32, [..., :C]=wa, [..., C:]=wc
        bound = 1.0 / float((channels * 9) ** 0.5)
        for t in self.tasks:
            other = [a for a in self.auxilary_tasks if a != t]
            ws = []
            for _ in other:
                key, ka, kc = jax.random.split(key, 3)
                wa = jax.random.uniform(ka, (3, 3, channels, channels),
                                        jnp.float32, -bound, bound)
                wc = jax.random.uniform(kc, (3, 3, channels, channels),
                                        jnp.float32, -bound, bound)
                ws.append(jnp.concatenate([wa, wc], axis=-1))
            self.other[t] = other
            self.w_cat[t] = (jnp.stack(ws) if ws else
                             jnp.zeros((0, 3, 3, channels, 2 * channels), jnp.float32))

    def __call__(self, x):
        C = self.channels
        # One stacked activation tensor shared by every target task (one extra
        # HBM pass total, instead of a stack + a pad per task as before).
        names = list(dict.fromkeys(self.auxilary_tasks + self.tasks))
        slot = {nm: i for i, nm in enumerate(names)}
        feats_all = jnp.stack([x["features_%s" % nm] for nm in names])
        cdtype = (self.compute_dtype if self.compute_dtype is not None
                  else feats_all.dtype)

        # Group target tasks by their number of source tasks so each group is a
        # single fused pallas_call over grid (T, N, K).
        groups = {}
        for t in self.tasks:
            groups.setdefault(len(self.other[t]), []).append(t)

        out = {}
        for K, ts in groups.items():
            if K == 0:                       # no other tasks -> identity
                for t in ts:
                    out[t] = x["features_%s" % t]
                continue
            T = len(ts)
            w_flat = (jnp.stack([self.w_cat[t] for t in ts])
                      .reshape(T, K * 9, C, 2 * C).astype(cdtype))
            src_idx = jnp.asarray([slot[a] for t in ts for a in self.other[t]],
                                  dtype=jnp.int32)
            tgt_idx = jnp.asarray([slot[t] for t in ts], dtype=jnp.int32)
            res = _distill_fused(feats_all, w_flat, src_idx, tgt_idx,
                                 compute_dtype=cdtype)
            for i, t in enumerate(ts):
                out[t] = res[i]
        return out


# ---------------------------------------------------------------------------
# Pure-JAX reference (correctness verification only).
# ---------------------------------------------------------------------------
def _ref_conv3x3(x, w):
    return jax.lax.conv_general_dilated(
        x, w, window_strides=(1, 1), padding="SAME",
        dimension_numbers=("NHWC", "HWIO", "NHWC"))


def _ref_forward(module, x):
    C = module.channels
    out = {}
    for t in module.tasks:
        acc = x["features_%s" % t]
        for i, a in enumerate(module.other[t]):
            w = module.w_cat[t][i]
            xa = x["features_%s" % a]
            att = jax.nn.sigmoid(_ref_conv3x3(xa, w[..., :C]))
            ftr = _ref_conv3x3(xa, w[..., C:])
            acc = acc + ftr * att
        out[t] = acc
    return out


if __name__ == "__main__":
    tasks = ["semseg", "depth", "normals"]
    auxilary_tasks = ["semseg", "depth", "normals"]
    N, C, H, W = 2, 8, 16, 16   # small shapes; NHWC layout

    key = jax.random.PRNGKey(0)
    key, mkey = jax.random.split(key)
    module = MultiTaskDistillationModule(tasks, auxilary_tasks, C, mkey)

    x = {}
    for a in auxilary_tasks:
        key, sub = jax.random.split(key)
        x["features_%s" % a] = jax.random.normal(sub, (N, H, W, C), jnp.float32)

    # f32 compute path: exact check against the f32 reference.
    out = module(x)
    out = {t: jax.block_until_ready(v) for t, v in out.items()}
    ref = _ref_forward(module, x)
    for t in tasks:
        assert out[t].shape == (N, H, W, C)
        assert jnp.allclose(out[t], ref[t], atol=1e-4, rtol=1e-4), (
            f"mismatch for task {t}")

    # bf16 MXU-operand path (f32 accumulation): loose check against f32 ref.
    module_bf16 = MultiTaskDistillationModule(tasks, auxilary_tasks, C, mkey,
                                              compute_dtype=jnp.bfloat16)
    out_bf = module_bf16(x)
    out_bf = {t: jax.block_until_ready(v) for t, v in out_bf.items()}
    ref_bf = _ref_forward(module_bf16, x)
    for t in tasks:
        assert jnp.allclose(out_bf[t], ref_bf[t], atol=7e-2, rtol=7e-2), (
            f"bf16 mismatch for task {t}")

    print("KERNEL_OK")
</pallas_src>

<mosaic_0001>
module attributes {stable_mosaic.version = 11 : i64} {
  func.func @_distill_kernel(%arg0: i32, %arg1: i32, %arg2: i32, %arg3: memref<6xi32, #tpu.memory_space<smem>>, %arg4: memref<3xi32, #tpu.memory_space<smem>>, %arg5: memref<1x1x16x16x8xf32, #tpu.memory_space<vmem>>, %arg6: memref<1x1x16x16x8xf32, #tpu.memory_space<vmem>>, %arg7: memref<1x18x8x16xf32, #tpu.memory_space<vmem>>, %arg8: memref<1x1x16x16x8xf32, #tpu.memory_space<vmem>>, %arg9: memref<18x18x8xf32, #tpu.memory_space<vmem>>, %arg10: memref<256x8xf32, #tpu.memory_space<vmem>>) attributes {dimension_semantics = [#tpu.dimension_semantics<parallel>, #tpu.dimension_semantics<parallel>, #tpu.dimension_semantics<arbitrary>], iteration_bounds = array<i64: 3, 2, 2>, scalar_prefetch = 2 : i64, scratch_operands = 2 : i64, tpu.core_type = #tpu.core_type<tc>, window_params = [{transform_indices = @transform_0, window_bounds = array<i64: 1, 1, 16, 16, 8>}, {transform_indices = @transform_1, window_bounds = array<i64: 1, 1, 16, 16, 8>}, {transform_indices = @transform_2, window_bounds = array<i64: 1, 18, 8, 16>}, {transform_indices = @transform_3, window_bounds = array<i64: 1, 1, 16, 16, 8>}]} {
    %c0_i32 = arith.constant 0 : i32
    %0 = arith.cmpi eq, %arg2, %c0_i32 : i32
    %1 = arith.extui %0 : i1 to i32
    %c0_i32_0 = arith.constant 0 : i32
    %2 = arith.cmpi ne, %1, %c0_i32_0 : i32
    scf.if %2 {
      %c0_112 = arith.constant 0 : index
      %c0_113 = arith.constant 0 : index
      %c0_114 = arith.constant 0 : index
      %c0_115 = arith.constant 0 : index
      %c0_116 = arith.constant 0 : index
      %117 = vector.load %arg6[%c0_112, %c0_113, %c0_114, %c0_115, %c0_116] : memref<1x1x16x16x8xf32, #tpu.memory_space<vmem>>, vector<1x1x16x16x8xf32>
      %118 = vector.shape_cast %117 : vector<1x1x16x16x8xf32> to vector<16x16x8xf32>
      %119 = vector.shape_cast %118 : vector<16x16x8xf32> to vector<256x8xf32>
      %c0_117 = arith.constant 0 : index
      %c0_118 = arith.constant 0 : index
      %120 = vector.load %arg10[%c0_117, %c0_118] : memref<256x8xf32, #tpu.memory_space<vmem>>, vector<256x8xf32>
      tpu.vector_store %arg10[%c0_117, %c0_118], %119 {strides = array<i32>} : memref<256x8xf32, #tpu.memory_space<vmem>>, vector<256x8xf32>,
    } else {
    }
    %cst = arith.constant 0.000000e+00 : f32
    %3 = vector.broadcast %cst : f32 to vector<1x18x8xf32>
    %c0 = arith.constant 0 : index
    %c0_1 = arith.constant 0 : index
    %c0_2 = arith.constant 0 : index
    %4 = vector.load %arg9[%c0, %c0_1, %c0_2] : memref<18x18x8xf32, #tpu.memory_space<vmem>>, vector<1x18x8xf32>
    tpu.vector_store %arg9[%c0, %c0_1, %c0_2], %3 {strides = array<i32>} : memref<18x18x8xf32, #tpu.memory_space<vmem>>, vector<1x18x8xf32>,
    %cst_3 = arith.constant 0.000000e+00 : f32
    %5 = vector.broadcast %cst_3 : f32 to vector<1x18x8xf32>
    %c17 = arith.constant 17 : index
    %c0_4 = arith.constant 0 : index
    %c0_5 = arith.constant 0 : index
    %6 = vector.load %arg9[%c17, %c0_4, %c0_5] : memref<18x18x8xf32, #tpu.memory_space<vmem>>, vector<1x18x8xf32>
    tpu.vector_store %arg9[%c17, %c0_4, %c0_5], %5 {strides = array<i32>} : memref<18x18x8xf32, #tpu.memory_space<vmem>>, vector<1x18x8xf32>,
    %cst_6 = arith.constant 0.000000e+00 : f32
    %7 = vector.broadcast %cst_6 : f32 to vector<18x1x8xf32>
    %c0_7 = arith.constant 0 : index
    %c0_8 = arith.constant 0 : index
    %c0_9 = arith.constant 0 : index
    %8 = vector.load %arg9[%c0_7, %c0_8, %c0_9] : memref<18x18x8xf32, #tpu.memory_space<vmem>>, vector<18x1x8xf32>
    tpu.vector_store %arg9[%c0_7, %c0_8, %c0_9], %7 {strides = array<i32>} : memref<18x18x8xf32, #tpu.memory_space<vmem>>, vector<18x1x8xf32>,
    %cst_10 = arith.constant 0.000000e+00 : f32
    %9 = vector.broadcast %cst_10 : f32 to vector<18x1x8xf32>
    %c0_11 = arith.constant 0 : index
    %c17_12 = arith.constant 17 : index
    %c0_13 = arith.constant 0 : index
    %10 = vector.load %arg9[%c0_11, %c17_12, %c0_13] : memref<18x18x8xf32, #tpu.memory_space<vmem>>, vector<18x1x8xf32>
    tpu.vector_store %arg9[%c0_11, %c17_12, %c0_13], %9 {strides = array<i32>} : memref<18x18x8xf32, #tpu.memory_space<vmem>>, vector<18x1x8xf32>,
    %c0_14 = arith.constant 0 : index
    %c0_15 = arith.constant 0 : index
    %c0_16 = arith.constant 0 : index
    %c0_17 = arith.constant 0 : index
    %c0_18 = arith.constant 0 : index
    %11 = vector.load %arg5[%c0_14, %c0_15, %c0_16, %c0_17, %c0_18] : memref<1x1x16x16x8xf32, #tpu.memory_space<vmem>>, vector<1x1x16x16x8xf32>
    %12 = vector.shape_cast %11 : vector<1x1x16x16x8xf32> to vector<16x16x8xf32>
    %c1 = arith.constant 1 : index
    %c1_19 = arith.constant 1 : index
    %c0_20 = arith.constant 0 : index
    %13 = vector.load %arg9[%c1, %c1_19, %c0_20] : memref<18x18x8xf32, #tpu.memory_space<vmem>>, vector<16x16x8xf32>
    tpu.vector_store %arg9[%c1, %c1_19, %c0_20], %12 {strides = array<i32>} : memref<18x18x8xf32, #tpu.memory_space<vmem>>, vector<16x16x8xf32>,
    %c0_21 = arith.constant 0 : index
    %c0_22 = arith.constant 0 : index
    %c0_23 = arith.constant 0 : index
    %14 = vector.load %arg9[%c0_21, %c0_22, %c0_23] : memref<18x18x8xf32, #tpu.memory_space<vmem>>, vector<16x16x8xf32>
    %15 = vector.shape_cast %14 : vector<16x16x8xf32> to vector<256x8xf32>
    %c9_i32 = arith.constant 9 : i32
    %16 = arith.muli %arg2, %c9_i32 : i32
    %c0_i32_24 = arith.constant 0 : i32
    %17 = arith.addi %16, %c0_i32_24 : i32
    %c0_i32_25 = arith.constant 0 : i32
    %18 = arith.addi %17, %c0_i32_25 : i32
    %c0_26 = arith.constant 0 : index
    %19 = arith.index_cast %18 : i32 to index
    %c0_27 = arith.constant 0 : index
    %c0_28 = arith.constant 0 : index
    %20 = vector.load %arg7[%c0_26, %19, %c0_27, %c0_28] : memref<1x18x8x16xf32, #tpu.memory_space<vmem>>, vector<1x1x8x16xf32>
    %21 = vector.shape_cast %20 : vector<1x1x8x16xf32> to vector<8x16xf32>
    %cst_29 = arith.constant dense<0.000000e+00> : vector<256x16xf32>
    %22 = tpu.matmul %15, %21, %cst_29 {dimension_numbers = #tpu.dot_dimension_numbers<[1], [0], [0], [1], [0, 0, 1, 1], [], []>} : vector<256x8xf32>, vector<8x16xf32>, vector<256x16xf32> -> vector<256x16xf32>
    %c0_30 = arith.constant 0 : index
    %c1_31 = arith.constant 1 : index
    %c0_32 = arith.constant 0 : index
    %23 = vector.load %arg9[%c0_30, %c1_31, %c0_32] : memref<18x18x8xf32, #tpu.memory_space<vmem>>, vector<16x16x8xf32>
    %24 = vector.shape_cast %23 : vector<16x16x8xf32> to vector<256x8xf32>
    %c9_i32_33 = arith.constant 9 : i32
    %25 = arith.muli %arg2, %c9_i32_33 : i32
    %c0_i32_34 = arith.constant 0 : i32
    %26 = arith.addi %25, %c0_i32_34 : i32
    %c1_i32 = arith.constant 1 : i32
    %27 = arith.addi %26, %c1_i32 : i32
    %c0_35 = arith.constant 0 : index
    %28 = arith.index_cast %27 : i32 to index
    %c0_36 = arith.constant 0 : index
    %c0_37 = arith.constant 0 : index
    %29 = vector.load %arg7[%c0_35, %28, %c0_36, %c0_37] : memref<1x18x8x16xf32, #tpu.memory_space<vmem>>, vector<1x1x8x16xf32>
    %30 = vector.shape_cast %29 : vector<1x1x8x16xf32> to vector<8x16xf32>
    %cst_38 = arith.constant dense<0.000000e+00> : vector<256x16xf32>
    %31 = tpu.matmul %24, %30, %cst_38 {dimension_numbers = #tpu.dot_dimension_numbers<[1], [0], [0], [1], [0, 0, 1, 1], [], []>} : vector<256x8xf32>, vector<8x16xf32>, vector<256x16xf32> -> vector<256x16xf32>
    %32 = arith.addf %22, %31 : vector<256x16xf32>
    %c0_39 = arith.constant 0 : index
    %c2 = arith.constant 2 : index
    %c0_40 = arith.constant 0 : index
    %33 = vector.load %arg9[%c0_39, %c2, %c0_40] : memref<18x18x8xf32, #tpu.memory_space<vmem>>, vector<16x16x8xf32>
    %34 = vector.shape_cast %33 : vector<16x16x8xf32> to vector<256x8xf32>
    %c9_i32_41 = arith.constant 9 : i32
    %35 = arith.muli %arg2, %c9_i32_41 : i32
    %c0_i32_42 = arith.constant 0 : i32
    %36 = arith.addi %35, %c0_i32_42 : i32
    %c2_i32 = arith.constant 2 : i32
    %37 = arith.addi %36, %c2_i32 : i32
    %c0_43 = arith.constant 0 : index
    %38 = arith.index_cast %37 : i32 to index
    %c0_44 = arith.constant 0 : index
    %c0_45 = arith.constant 0 : index
    %39 = vector.load %arg7[%c0_43, %38, %c0_44, %c0_45] : memref<1x18x8x16xf32, #tpu.memory_space<vmem>>, vector<1x1x8x16xf32>
    %40 = vector.shape_cast %39 : vector<1x1x8x16xf32> to vector<8x16xf32>
    %cst_46 = arith.constant dense<0.000000e+00> : vector<256x16xf32>
    %41 = tpu.matmul %34, %40, %cst_46 {dimension_numbers = #tpu.dot_dimension_numbers<[1], [0], [0], [1], [0, 0, 1, 1], [], []>} : vector<256x8xf32>, vector<8x16xf32>, vector<256x16xf32> -> vector<256x16xf32>
    %42 = arith.addf %32, %41 : vector<256x16xf32>
    %c1_47 = arith.constant 1 : index
    %c0_48 = arith.constant 0 : index
    %c0_49 = arith.constant 0 : index
    %43 = vector.load %arg9[%c1_47, %c0_48, %c0_49] : memref<18x18x8xf32, #tpu.memory_space<vmem>>, vector<16x16x8xf32>
    %44 = vector.shape_cast %43 : vector<16x16x8xf32> to vector<256x8xf32>
    %c9_i32_50 = arith.constant 9 : i32
    %45 = arith.muli %arg2, %c9_i32_50 : i32
    %c3_i32 = arith.constant 3 : i32
    %46 = arith.addi %45, %c3_i32 : i32
    %c0_i32_51 = arith.constant 0 : i32
    %47 = arith.addi %46, %c0_i32_51 : i32
    %c0_52 = arith.constant 0 : index
    %48 = arith.index_cast %47 : i32 to index
    %c0_53 = arith.constant 0 : index
    %c0_54 = arith.constant 0 : index
    %49 = vector.load %arg7[%c0_52, %48, %c0_53, %c0_54] : memref<1x18x8x16xf32, #tpu.memory_space<vmem>>, vector<1x1x8x16xf32>
    %50 = vector.shape_cast %49 : vector<1x1x8x16xf32> to vector<8x16xf32>
    %cst_55 = arith.constant dense<0.000000e+00> : vector<256x16xf32>
    %51 = tpu.matmul %44, %50, %cst_55 {dimension_numbers = #tpu.dot_dimension_numbers<[1], [0], [0], [1], [0, 0, 1, 1], [], []>} : vector<256x8xf32>, vector<8x16xf32>, vector<256x16xf32> -> vector<256x16xf32>
    %52 = arith.addf %42, %51 : vector<256x16xf32>
    %c1_56 = arith.constant 1 : index
    %c1_57 = arith.constant 1 : index
    %c0_58 = arith.constant 0 : index
    %53 = vector.load %arg9[%c1_56, %c1_57, %c0_58] : memref<18x18x8xf32, #tpu.memory_space<vmem>>, vector<16x16x8xf32>
    %54 = vector.shape_cast %53 : vector<16x16x8xf32> to vector<256x8xf32>
    %c9_i32_59 = arith.constant 9 : i32
    %55 = arith.muli %arg2, %c9_i32_59 : i32
    %c3_i32_60 = arith.constant 3 : i32
    %56 = arith.addi %55, %c3_i32_60 : i32
    %c1_i32_61 = arith.constant 1 : i32
    %57 = arith.addi %56, %c1_i32_61 : i32
    %c0_62 = arith.constant 0 : index
    %58 = arith.index_cast %57 : i32 to index
    %c0_63 = arith.constant 0 : index
    %c0_64 = arith.constant 0 : index
    %59 = vector.load %arg7[%c0_62, %58, %c0_63, %c0_64] : memref<1x18x8x16xf32, #tpu.memory_space<vmem>>, vector<1x1x8x16xf32>
    %60 = vector.shape_cast %59 : vector<1x1x8x16xf32> to vector<8x16xf32>
    %cst_65 = arith.constant dense<0.000000e+00> : vector<256x16xf32>
    %61 = tpu.matmul %54, %60, %cst_65 {dimension_numbers = #tpu.dot_dimension_numbers<[1], [0], [0], [1], [0, 0, 1, 1], [], []>} : vector<256x8xf32>, vector<8x16xf32>, vector<256x16xf32> -> vector<256x16xf32>
    %62 = arith.addf %52, %61 : vector<256x16xf32>
    %c1_66 = arith.constant 1 : index
    %c2_67 = arith.constant 2 : index
    %c0_68 = arith.constant 0 : index
    %63 = vector.load %arg9[%c1_66, %c2_67, %c0_68] : memref<18x18x8xf32, #tpu.memory_space<vmem>>, vector<16x16x8xf32>
    %64 = vector.shape_cast %63 : vector<16x16x8xf32> to vector<256x8xf32>
    %c9_i32_69 = arith.constant 9 : i32
    %65 = arith.muli %arg2, %c9_i32_69 : i32
    %c3_i32_70 = arith.constant 3 : i32
    %66 = arith.addi %65, %c3_i32_70 : i32
    %c2_i32_71 = arith.constant 2 : i32
    %67 = arith.addi %66, %c2_i32_71 : i32
    %c0_72 = arith.constant 0 : index
    %68 = arith.index_cast %67 : i32 to index
    %c0_73 = arith.constant 0 : index
    %c0_74 = arith.constant 0 : index
    %69 = vector.load %arg7[%c0_72, %68, %c0_73, %c0_74] : memref<1x18x8x16xf32, #tpu.memory_space<vmem>>, vector<1x1x8x16xf32>
    %70 = vector.shape_cast %69 : vector<1x1x8x16xf32> to vector<8x16xf32>
    %cst_75 = arith.constant dense<0.000000e+00> : vector<256x16xf32>
    %71 = tpu.matmul %64, %70, %cst_75 {dimension_numbers = #tpu.dot_dimension_numbers<[1], [0], [0], [1], [0, 0, 1, 1], [], []>} : vector<256x8xf32>, vector<8x16xf32>, vector<256x16xf32> -> vector<256x16xf32>
    %72 = arith.addf %62, %71 : vector<256x16xf32>
    %c2_76 = arith.constant 2 : index
    %c0_77 = arith.constant 0 : index
    %c0_78 = arith.constant 0 : index
    %73 = vector.load %arg9[%c2_76, %c0_77, %c0_78] : memref<18x18x8xf32, #tpu.memory_space<vmem>>, vector<16x16x8xf32>
    %74 = vector.shape_cast %73 : vector<16x16x8xf32> to vector<256x8xf32>
    %c9_i32_79 = arith.constant 9 : i32
    %75 = arith.muli %arg2, %c9_i32_79 : i32
    %c6_i32 = arith.constant 6 : i32
    %76 = arith.addi %75, %c6_i32 : i32
    %c0_i32_80 = arith.constant 0 : i32
    %77 = arith.addi %76, %c0_i32_80 : i32
    %c0_81 = arith.constant 0 : index
    %78 = arith.index_cast %77 : i32 to index
    %c0_82 = arith.constant 0 : index
    %c0_83 = arith.constant 0 : index
    %79 = vector.load %arg7[%c0_81, %78, %c0_82, %c0_83] : memref<1x18x8x16xf32, #tpu.memory_space<vmem>>, vector<1x1x8x16xf32>
    %80 = vector.shape_cast %79 : vector<1x1x8x16xf32> to vector<8x16xf32>
    %cst_84 = arith.constant dense<0.000000e+00> : vector<256x16xf32>
    %81 = tpu.matmul %74, %80, %cst_84 {dimension_numbers = #tpu.dot_dimension_numbers<[1], [0], [0], [1], [0, 0, 1, 1], [], []>} : vector<256x8xf32>, vector<8x16xf32>, vector<256x16xf32> -> vector<256x16xf32>
    %82 = arith.addf %72, %81 : vector<256x16xf32>
    %c2_85 = arith.constant 2 : index
    %c1_86 = arith.constant 1 : index
    %c0_87 = arith.constant 0 : index
    %83 = vector.load %arg9[%c2_85, %c1_86, %c0_87] : memref<18x18x8xf32, #tpu.memory_space<vmem>>, vector<16x16x8xf32>
    %84 = vector.shape_cast %83 : vector<16x16x8xf32> to vector<256x8xf32>
    %c9_i32_88 = arith.constant 9 : i32
    %85 = arith.muli %arg2, %c9_i32_88 : i32
    %c6_i32_89 = arith.constant 6 : i32
    %86 = arith.addi %85, %c6_i32_89 : i32
    %c1_i32_90 = arith.constant 1 : i32
    %87 = arith.addi %86, %c1_i32_90 : i32
    %c0_91 = arith.constant 0 : index
    %88 = arith.index_cast %87 : i32 to index
    %c0_92 = arith.constant 0 : index
    %c0_93 = arith.constant 0 : index
    %89 = vector.load %arg7[%c0_91, %88, %c0_92, %c0_93] : memref<1x18x8x16xf32, #tpu.memory_space<vmem>>, vector<1x1x8x16xf32>
    %90 = vector.shape_cast %89 : vector<1x1x8x16xf32> to vector<8x16xf32>
    %cst_94 = arith.constant dense<0.000000e+00> : vector<256x16xf32>
    %91 = tpu.matmul %84, %90, %cst_94 {dimension_numbers = #tpu.dot_dimension_numbers<[1], [0], [0], [1], [0, 0, 1, 1], [], []>} : vector<256x8xf32>, vector<8x16xf32>, vector<256x16xf32> -> vector<256x16xf32>
    %92 = arith.addf %82, %91 : vector<256x16xf32>
    %c2_95 = arith.constant 2 : index
    %c2_96 = arith.constant 2 : index
    %c0_97 = arith.constant 0 : index
    %93 = vector.load %arg9[%c2_95, %c2_96, %c0_97] : memref<18x18x8xf32, #tpu.memory_space<vmem>>, vector<16x16x8xf32>
    %94 = vector.shape_cast %93 : vector<16x16x8xf32> to vector<256x8xf32>
    %c9_i32_98 = arith.constant 9 : i32
    %95 = arith.muli %arg2, %c9_i32_98 : i32
    %c6_i32_99 = arith.constant 6 : i32
    %96 = arith.addi %95, %c6_i32_99 : i32
    %c2_i32_100 = arith.constant 2 : i32
    %97 = arith.addi %96, %c2_i32_100 : i32
    %c0_101 = arith.constant 0 : index
    %98 = arith.index_cast %97 : i32 to index
    %c0_102 = arith.constant 0 : index
    %c0_103 = arith.constant 0 : index
    %99 = vector.load %arg7[%c0_101, %98, %c0_102, %c0_103] : memref<1x18x8x16xf32, #tpu.memory_space<vmem>>, vector<1x1x8x16xf32>
    %100 = vector.shape_cast %99 : vector<1x1x8x16xf32> to vector<8x16xf32>
    %cst_104 = arith.constant dense<0.000000e+00> : vector<256x16xf32>
    %101 = tpu.matmul %94, %100, %cst_104 {dimension_numbers = #tpu.dot_dimension_numbers<[1], [0], [0], [1], [0, 0, 1, 1], [], []>} : vector<256x8xf32>, vector<8x16xf32>, vector<256x16xf32> -> vector<256x16xf32>
    %102 = arith.addf %92, %101 : vector<256x16xf32>
    %103 = vector.extract_strided_slice %102 {offsets = [0, 0], sizes = [256, 8], strides = [1, 1]} : vector<256x16xf32> to vector<256x8xf32>
    %104 = vector.extract_strided_slice %102 {offsets = [0, 8], sizes = [256, 8], strides = [1, 1]} : vector<256x16xf32> to vector<256x8xf32>
    %c0_105 = arith.constant 0 : index
    %c0_106 = arith.constant 0 : index
    %105 = vector.load %arg10[%c0_105, %c0_106] : memref<256x8xf32, #tpu.memory_space<vmem>>, vector<256x8xf32>
    %106 = arith.negf %103 : vector<256x8xf32>
    %107 = math.exp %106 : vector<256x8xf32>
    %cst_107 = arith.constant 1.000000e+00 : f32
    %108 = vector.broadcast %cst_107 : f32 to vector<256x8xf32>
    %109 = arith.addf %108, %107 : vector<256x8xf32>
    %110 = arith.divf %108, %109 : vector<256x8xf32>
    %111 = arith.mulf %104, %110 : vector<256x8xf32>
    %112 = arith.addf %105, %111 : vector<256x8xf32>
    %c0_108 = arith.constant 0 : index
    %c0_109 = arith.constant 0 : index
    %113 = vector.load %arg10[%c0_108, %c0_109] : memref<256x8xf32, #tpu.memory_space<vmem>>, vector<256x8xf32>
    tpu.vector_store %arg10[%c0_108, %c0_109], %112 {strides = array<i32>} : memref<256x8xf32, #tpu.memory_space<vmem>>, vector<256x8xf32>,
    %c1_i32_110 = arith.constant 1 : i32
    %114 = arith.cmpi eq, %arg2, %c1_i32_110 : i32
    %115 = arith.extui %114 : i1 to i32
    %c0_i32_111 = arith.constant 0 : i32
    %116 = arith.cmpi ne, %115, %c0_i32_111 : i32
    scf.if %116 {
      %c0_112 = arith.constant 0 : index
      %c0_113 = arith.constant 0 : index
      %117 = vector.load %arg10[%c0_112, %c0_113] : memref<256x8xf32, #tpu.memory_space<vmem>>, vector<256x8xf32>
      %118 = vector.shape_cast %117 : vector<256x8xf32> to vector<16x16x8xf32>
      %c0_114 = arith.constant 0 : index
      %c0_115 = arith.constant 0 : index
      %c0_116 = arith.constant 0 : index
      %c0_117 = arith.constant 0 : index
      %c0_118 = arith.constant 0 : index
      %119 = vector.load %arg8[%c0_114, %c0_115, %c0_116, %c0_117, %c0_118] : memref<1x1x16x16x8xf32, #tpu.memory_space<vmem>>, vector<1x1x16x16x8xf32>
      %120 = vector.shape_cast %119 : vector<1x1x16x16x8xf32> to vector<16x16x8xf32>
      %121 = vector.shape_cast %118 : vector<16x16x8xf32> to vector<1x1x16x16x8xf32>
      tpu.vector_store %arg8[%c0_114, %c0_115, %c0_116, %c0_117, %c0_118], %121 {strides = array<i32>} : memref<1x1x16x16x8xf32, #tpu.memory_space<vmem>>, vector<1x1x16x16x8xf32>,
    } else {
    }
    return
  }
  func.func @transform_0(%arg0: i32, %arg1: i32, %arg2: i32, %arg3: memref<6xi32, #tpu.memory_space<smem>>, %arg4: memref<3xi32, #tpu.memory_space<smem>>) -> (i32, i32, i32, i32, i32) {
    %c2_i32 = arith.constant 2 : i32
    %0 = arith.muli %arg0, %c2_i32 : i32
    %1 = arith.addi %0, %arg2 : i32
    %2 = arith.index_cast %1 : i32 to index
    %3 = memref.load %arg3[%2] : memref<6xi32, #tpu.memory_space<smem>>
    %c0_i32 = arith.constant 0 : i32
    %c0_i32_0 = arith.constant 0 : i32
    %c0_i32_1 = arith.constant 0 : i32
    %c0_i32_2 = arith.constant 0 : i32
    return %3, %arg1, %c0_i32, %c0_i32_0, %c0_i32_1 : i32, i32, i32, i32, i32
  }
  func.func @transform_1(%arg0: i32, %arg1: i32, %arg2: i32, %arg3: memref<6xi32, #tpu.memory_space<smem>>, %arg4: memref<3xi32, #tpu.memory_space<smem>>) -> (i32, i32, i32, i32, i32) {
    %0 = arith.index_cast %arg0 : i32 to index
    %1 = memref.load %arg4[%0] : memref<3xi32, #tpu.memory_space<smem>>
    %c0_i32 = arith.constant 0 : i32
    %c0_i32_0 = arith.constant 0 : i32
    %c0_i32_1 = arith.constant 0 : i32
    %c0_i32_2 = arith.constant 0 : i32
    return %1, %arg1, %c0_i32, %c0_i32_0, %c0_i32_1 : i32, i32, i32, i32, i32
  }
  func.func @transform_2(%arg0: i32, %arg1: i32, %arg2: i32, %arg3: memref<6xi32, #tpu.memory_space<smem>>, %arg4: memref<3xi32, #tpu.memory_space<smem>>) -> (i32, i32, i32, i32) {
    %c0_i32 = arith.constant 0 : i32
    %c0_i32_0 = arith.constant 0 : i32
    %c0_i32_1 = arith.constant 0 : i32
    %c0_i32_2 = arith.constant 0 : i32
    return %arg0, %c0_i32, %c0_i32_0, %c0_i32_1 : i32, i32, i32, i32
  }
  func.func @transform_3(%arg0: i32, %arg1: i32, %arg2: i32, %arg3: memref<6xi32, #tpu.memory_space<smem>>, %arg4: memref<3xi32, #tpu.memory_space<smem>>) -> (i32, i32, i32, i32, i32) {
    %c0_i32 = arith.constant 0 : i32
    %c0_i32_0 = arith.constant 0 : i32
    %c0_i32_1 = arith.constant 0 : i32
    %c0_i32_2 = arith.constant 0 : i32
    return %arg0, %arg1, %c0_i32, %c0_i32_0, %c0_i32_1 : i32, i32, i32, i32, i32
  }
}

</mosaic_0001>

<llo_original>
// kernel: tpu_custom_call.1
$region0: #{tpu_custom_call.1}
  #allocation0 [shape = 'u32[]', space=smem, size = 0x4, offset = 0x4, fixed_abs, tag = 'smem constant byte address 0x4 - core index']
  #allocation1 [shape = 'u32[72,128]{1,0:T(1,128)}', space=vmem, size = 0x9000, scoped, tag = 'internal scratch']
  #allocation2 [shape = 'f32[18,18,8]{2,1,0:T(8,128)}', space=vmem, size = 0x36000, scoped, tag = 'scratch operand']
  #allocation3 [shape = 'f32[256,8]{1,0:T(8,128)}', space=vmem, size = 0x20000, scoped, tag = 'scratch operand']
  #allocation4 [shape = 's32[1]{0}', space=sflag, size = 0x4, scoped, tag = 'scoped memory for tpu_custom_call.1']
  #allocation5 [shape = 'u8[512]{0}', space=smem, size = 0x200, scoped, tag = 'prefetched SMEM operand 0']
  #allocation6 [shape = 'u8[512]{0}', space=smem, size = 0x200, scoped, tag = 'prefetched SMEM operand 1']
  %s0 = inlined_call_operand.vmem [shape: s32[6], index: 0, kind: input, shape index: {}]
  %s1 = inlined_call_operand.vmem [shape: s32[3], index: 1, kind: input, shape index: {}]
  %s2 = inlined_call_operand.vmem [shape: f32[3,2,16,16,8], index: 2, kind: input, shape index: {}]
  %s3 = inlined_call_operand.vmem [shape: f32[3,2,16,16,8], index: 3, kind: input, shape index: {}]
  %s4 = inlined_call_operand.vmem [shape: f32[3,18,8,16], index: 4, kind: input, shape index: {}]
  %s5 = inlined_call_operand.vmem [shape: f32[3,2,16,16,8], index: 5, kind: output, shape index: {}]
  %s6 = sld [smem:[#allocation0]]
  $region53: #{tpu_custom_call.1} parent=0
    _
  %s8 = ssub.s32 1, %s6
  %s9 = scalar_select 0, %s8, %s6
  %s11 = sshll.u32 %s0, 4
  %s12 = int_to_ptr.vmem [resolvable:$true] %s11
  %14 = dma.vmem_to_smem %s12, 16, [#allocation5], [#allocation4]
  %s16 = sshll.u32 %s1, 4
  %s17 = int_to_ptr.vmem [resolvable:$true] %s16
  %19 = dma.vmem_to_smem %s17, 16, [#allocation6], [#allocation4]
  %21 = dma.done [#allocation4], 32
  %22 = sfence
  loop: start=0, step=1, limit=14
  $region2: #{tpu_custom_call.1} parent=0 // loop_pre_header
    _
  $region3: #{tpu_custom_call.1} parent=0 // loop_header
    %s24 = sphi 0, %s28
    %p25 = scmp.ge.s32.totalorder %s24, 14
    %s31 = sphi 0, %s50
    %s32 = sphi 0, %s46
    %s33 = sphi 0, %s42
    %s34 = sphi 0, %s31
    %s35 = sphi 0, %s32
    %s36 = sphi 0, %s33
    %s37 = sphi 0, %s34
    %s38 = sphi 0, %s35
    %s39 = sphi 0, %s36
    %s61 = sphi 0, %s63
    %s64 = sphi 0, %s61
    %s65 = sphi 0, %s64
    %s81 = sphi 0, %s65
    %s91 = sphi 0, %s93
    %s94 = sphi 0, %s91
    %s95 = sphi 0, %s94
    %s111 = sphi 0, %s95
    %s117 = sphi 0, %s119
    %s120 = sphi 0, %s117
    %s121 = sphi 0, %s120
    %s137 = sphi 0, %s121
    %s145 = sphi 0, %s147
    %s148 = sphi 0, %s145
    %s149 = sphi 0, %s148
    %s165 = sphi 0, %s149
  $region4: #{tpu_custom_call.1} parent=0 // loop_header_branch
    %27 = sbr.rel (%p25) target = $region8
  $region5: #{tpu_custom_call.1} parent=0 // loop_body
    %s29 = ssub.s32 %s24, 1
    %s30 = ssub.s32 %s24, 2
    %s40 = sadd.s32 1, %s33
    %p41 = scmp.ge.s32.totalorder %s40, 2
    %s42 = scalar_select %p41, 0, %s40
    %s43 = sadd.s32 1, %s32
    %s44 = scalar_select %p41, %s43, %s32
    %p45 = scmp.ge.s32.totalorder %s44, 2
    %s46 = scalar_select %p45, 0, %s44
    %s47 = sadd.s32 1, %s31
    %s48 = scalar_select %p45, %s47, %s31
    %p49 = scmp.ge.s32.totalorder %s48, 3
    %s50 = scalar_select %p49, 0, %s48
    %s51 = smul.u32 %s31, 2
    %s52 = sadd.s32 %s51, %s33
    %s53 = sld [smem:[#allocation5 + %s52]]
    %s54 = smul.u32 %s50, 2
    %s55 = sadd.s32 %s54, %s42
    %s56 = sld [smem:[#allocation5 + %s55]]
    %s57 = ssub.s32 %s53, %s56
    %s58 = ssub.s32 %s32, %s46
    %s59 = sor.u32 %s57, %s58
    %p60 = scmp.eq.s32.totalorder %s59, 0
    %s62 = sadd.s32 %s61, 1
    %s63 = scalar_select %p60, %s61, %s62
    %p66 = pneg %p60
    %p67 = scmp.eq.s32.totalorder %s24, 11
    %p68 = por %p66, %p67
    %p69 = scmp.ne.s32.totalorder %s61, %s64
    %p70 = scmp.eq.s32.totalorder %s24, 0
    %p71 = por %p69, %p70
    %p72 = scmp.ne.s32.totalorder %s61, %s64
    %p73 = scmp.eq.s32.totalorder %s29, 11
    %p74 = por %p72, %p73
    %p75 = scmp.ne.s32.totalorder %s64, %s65
    %p76 = scmp.eq.s32.totalorder %s29, 0
    %p77 = por %p75, %p76
    %p78 = scmp.ne.s32.totalorder %s64, %s65
    %p79 = scmp.eq.s32.totalorder %s30, 11
    %p80 = por %p78, %p79
    %p82 = scmp.ne.s32.totalorder %s65, %s81
    %p83 = scmp.eq.s32.totalorder %s30, 0
    %p84 = por %p82, %p83
    %s85 = sld [smem:[#allocation6 + %s31]]
    %s86 = sld [smem:[#allocation6 + %s50]]
    %s87 = ssub.s32 %s85, %s86
    %s88 = ssub.s32 %s32, %s46
    %s89 = sor.u32 %s87, %s88
    %p90 = scmp.eq.s32.totalorder %s89, 0
    %s92 = sadd.s32 %s91, 1
    %s93 = scalar_select %p90, %s91, %s92
    %p96 = pneg %p90
    %p97 = scmp.eq.s32.totalorder %s24, 11
    %p98 = por %p96, %p97
    %p99 = scmp.ne.s32.totalorder %s91, %s94
    %p100 = scmp.eq.s32.totalorder %s24, 0
    %p101 = por %p99, %p100
    %p102 = scmp.ne.s32.totalorder %s91, %s94
    %p103 = scmp.eq.s32.totalorder %s29, 11
    %p104 = por %p102, %p103
    %p105 = scmp.ne.s32.totalorder %s94, %s95
    %p106 = scmp.eq.s32.totalorder %s29, 0
    %p107 = por %p105, %p106
    %p108 = scmp.ne.s32.totalorder %s94, %s95
    %p109 = scmp.eq.s32.totalorder %s30, 11
    %p110 = por %p108, %p109
    %p112 = scmp.ne.s32.totalorder %s95, %s111
    %p113 = scmp.eq.s32.totalorder %s30, 0
    %p114 = por %p112, %p113
    %s115 = ssub.s32 %s31, %s50
    %p116 = scmp.eq.s32.totalorder %s115, 0
    %s118 = sadd.s32 %s117, 1
    %s119 = scalar_select %p116, %s117, %s118
    %p122 = pneg %p116
    %p123 = scmp.eq.s32.totalorder %s24, 11
    %p124 = por %p122, %p123
    %p125 = scmp.ne.s32.totalorder %s117, %s120
    %p126 = scmp.eq.s32.totalorder %s24, 0
    %p127 = por %p125, %p126
    %p128 = scmp.ne.s32.totalorder %s117, %s120
    %p129 = scmp.eq.s32.totalorder %s29, 11
    %p130 = por %p128, %p129
    %p131 = scmp.ne.s32.totalorder %s120, %s121
    %p132 = scmp.eq.s32.totalorder %s29, 0
    %p133 = por %p131, %p132
    %p134 = scmp.ne.s32.totalorder %s120, %s121
    %p135 = scmp.eq.s32.totalorder %s30, 11
    %p136 = por %p134, %p135
    %p138 = scmp.ne.s32.totalorder %s121, %s137
    %p139 = scmp.eq.s32.totalorder %s30, 0
    %p140 = por %p138, %p139
    %s141 = ssub.s32 %s31, %s50
    %s142 = ssub.s32 %s32, %s46
    %s143 = sor.u32 %s141, %s142
    %p144 = scmp.eq.s32.totalorder %s143, 0
    %s146 = sadd.s32 %s145, 1
    %s147 = scalar_select %p144, %s145, %s146
    %p150 = pneg %p144
    %p151 = scmp.eq.s32.totalorder %s24, 11
    %p152 = por %p150, %p151
    %p153 = scmp.ne.s32.totalorder %s145, %s148
    %p154 = scmp.eq.s32.totalorder %s24, 0
    %p155 = por %p153, %p154
    %p156 = scmp.ne.s32.totalorder %s145, %s148
    %p157 = scmp.eq.s32.totalorder %s29, 11
    %p158 = por %p156, %p157
    %p159 = scmp.ne.s32.totalorder %s148, %s149
    %p160 = scmp.eq.s32.totalorder %s29, 0
    %p161 = por %p159, %p160
    %p162 = scmp.ne.s32.totalorder %s148, %s149
    %p163 = scmp.eq.s32.totalorder %s30, 11
    %p164 = por %p162, %p163
    %p166 = scmp.ne.s32.totalorder %s149, %s165
    %p167 = scmp.eq.s32.totalorder %s30, 0
    %p168 = por %p166, %p167
    %p169 = scmp.le.s32.totalorder 1, %s24
    %p170 = scmp.lt.s32.totalorder %s24, 13
    %p171 = pnand %p169, %p170
    %p172 = pneg %p171
    // Predicated region
    $region9: #{tpu_custom_call.1} parent=5 // pred_check
      _
    $region10: #{tpu_custom_call.1} parent=5 // pred_check_branch
      %174 = sbr.rel (%p171) target = $region12
    $region11: #{tpu_custom_call.1} parent=5 // pred_region
      %s175 = ssub.s32 %s24, 1
    $region12: #{tpu_custom_call.1} parent=5 // pred_fallthru
      _
    %p176 = scmp.lt.s32.totalorder %s24, 12
    // Predicated region
    $region13: #{tpu_custom_call.1} parent=5 // pred_check
      %p177 = pneg %p176
    $region14: #{tpu_custom_call.1} parent=5 // pred_check_branch
      %179 = sbr.rel (%p177) target = $region16
    $region15: #{tpu_custom_call.1} parent=5 // pred_region
      // Predicated region
      $region17: #{tpu_custom_call.1} parent=15 // pred_check
        %p180 = pneg %p71
      $region18: #{tpu_custom_call.1} parent=15 // pred_check_branch
        %182 = sbr.rel (%p180) target = $region20
      $region19: #{tpu_custom_call.1} parent=15 // pred_region
        %s183 = smul.u32 %s31, 2
        %s184 = sadd.s32 %s183, %s33
        %s185 = sld [smem:[#allocation5 + %s184]]
        %p186 = scmp.lt.s32.totalorder %s185, 2
        %s187 = scalar_select %p186, %s185, 2
        %p188 = scmp.lt.s32.totalorder %s32, 1
        %s189 = scalar_select %p188, %s32, 1
        %s190 = smul.addr %s189, 32
        %s191 = smul.addr %s187, 64
        %s192 = sadd.s32 %s190, %s191
        %s193 = smul.addr %s192, 8
        %s194 = scalar_lea.vmem %s2, %s193
        %s195 = smul.u32 %s31, 2
        %s196 = sadd.s32 %s195, %s33
        %s197 = sld [smem:[#allocation5 + %s196]]
      $region20: #{tpu_custom_call.1} parent=15 // pred_fallthru
        _
      // Predicated region
      $region21: #{tpu_custom_call.1} parent=15 // pred_check
        %p198 = pneg %p101
      $region22: #{tpu_custom_call.1} parent=15 // pred_check_branch
        %200 = sbr.rel (%p198) target = $region24
      $region23: #{tpu_custom_call.1} parent=15 // pred_region
        %s201 = sld [smem:[#allocation6 + %s31]]
        %p202 = scmp.lt.s32.totalorder %s201, 2
        %s203 = scalar_select %p202, %s201, 2
        %p204 = scmp.lt.s32.totalorder %s32, 1
        %s205 = scalar_select %p204, %s32, 1
        %s206 = smul.addr %s205, 32
        %s207 = smul.addr %s203, 64
        %s208 = sadd.s32 %s206, %s207
        %s209 = smul.addr %s208, 8
        %s210 = scalar_lea.vmem %s3, %s209
        %s211 = sld [smem:[#allocation6 + %s31]]
      $region24: #{tpu_custom_call.1} parent=15 // pred_fallthru
        _
      // Predicated region
      $region25: #{tpu_custom_call.1} parent=15 // pred_check
        %p212 = pneg %p127
      $region26: #{tpu_custom_call.1} parent=15 // pred_check_branch
        %214 = sbr.rel (%p212) target = $region28
      $region27: #{tpu_custom_call.1} parent=15 // pred_region
        %p215 = scmp.lt.s32.totalorder %s31, 2
        %s216 = scalar_select %p215, %s31, 2
        %s217 = smul.addr %s216, 18
        %s218 = smul.addr %s217, 8
        %s219 = scalar_lea.vmem %s4, %s218
      $region28: #{tpu_custom_call.1} parent=15 // pred_fallthru
        _
    $region16: #{tpu_custom_call.1} parent=5 // pred_fallthru
      _
    %p220 = scmp.le.s32.totalorder 1, %s24
    %p221 = scmp.lt.s32.totalorder %s24, 13
    %p222 = pnand %p220, %p221
    %p223 = pneg %p222
    // Predicated region
    $region29: #{tpu_custom_call.1} parent=5 // pred_check
      _
    $region30: #{tpu_custom_call.1} parent=5 // pred_check_branch
      %225 = sbr.rel (%p222) target = $region32
    $region31: #{tpu_custom_call.1} parent=5 // pred_region
      %s226 = ssub.s32 %s24, 1
      %s227 = smul.u32 %s34, 2
      %s228 = sadd.s32 %s227, %s36
      %s229 = sld [smem:[#allocation5 + %s228]]
      %p230 = scmp.lt.s32.totalorder %s229, 2
      %s231 = scalar_select %p230, %s229, 2
      %p232 = scmp.lt.s32.totalorder %s35, 1
      %s233 = scalar_select %p232, %s35, 1
      %s234 = smul.addr %s233, 32
      %s235 = smul.addr %s231, 64
      %s236 = sadd.s32 %s234, %s235
      %s237 = smul.addr %s236, 8
      %s238 = scalar_lea.vmem %s2, %s237
      %p239 = pneg %p77
      %p240 = pneg %p74
      %s241 = sld [smem:[#allocation6 + %s34]]
      %p242 = scmp.lt.s32.totalorder %s241, 2
      %s243 = scalar_select %p242, %s241, 2
      %p244 = scmp.lt.s32.totalorder %s35, 1
      %s245 = scalar_select %p244, %s35, 1
      %s246 = smul.addr %s245, 32
      %s247 = smul.addr %s243, 64
      %s248 = sadd.s32 %s246, %s247
      %s249 = smul.addr %s248, 8
      %s250 = scalar_lea.vmem %s3, %s249
      %p251 = pneg %p107
      %p252 = pneg %p104
      %p253 = scmp.lt.s32.totalorder %s34, 2
      %s254 = scalar_select %p253, %s34, 2
      %s255 = smul.addr %s254, 18
      %s256 = smul.addr %s255, 8
      %s257 = scalar_lea.vmem %s4, %s256
      %p258 = pneg %p133
      %p259 = pneg %p130
      %p260 = pneg %p161
      %p261 = pneg %p158
      %p262 = scmp.lt.s32.totalorder %s34, 2
      %s263 = scalar_select %p262, %s34, 2
      %p264 = scmp.lt.s32.totalorder %s35, 1
      %s265 = scalar_select %p264, %s35, 1
      %s266 = smul.addr %s265, 32
      %s267 = smul.addr %s263, 64
      %s268 = sadd.s32 %s266, %s267
      %s269 = smul.addr %s268, 8
      %s270 = scalar_lea.vmem %s5, %s269
      %s271 = smul.u32 %s34, 2
      %s272 = sadd.s32 %s271, %s36
      %s273 = sld [smem:[#allocation5 + %s272]]
      %p274 = scmp.lt.s32.totalorder %s273, 2
      %s275 = scalar_select %p274, %s273, 2
      %p276 = scmp.lt.s32.totalorder %s35, 1
      %s277 = scalar_select %p276, %s35, 1
      %s278 = smul.addr %s277, 32
      %s279 = smul.addr %s275, 64
      %s280 = sadd.s32 %s278, %s279
      %s281 = smul.addr %s280, 8
      %s282 = scalar_lea.vmem %s2, %s281
      %s283 = smul.u32 %s34, 2
      %s284 = sadd.s32 %s283, %s36
      %s285 = sld [smem:[#allocation5 + %s284]]
      %s286 = sld [smem:[#allocation6 + %s34]]
      %p287 = scmp.lt.s32.totalorder %s286, 2
      %s288 = scalar_select %p287, %s286, 2
      %p289 = scmp.lt.s32.totalorder %s35, 1
      %s290 = scalar_select %p289, %s35, 1
      %s291 = smul.addr %s290, 32
      %s292 = smul.addr %s288, 64
      %s293 = sadd.s32 %s291, %s292
      %s294 = smul.addr %s293, 8
      %s295 = scalar_lea.vmem %s3, %s294
      %s296 = sld [smem:[#allocation6 + %s34]]
      %p297 = scmp.lt.s32.totalorder %s34, 2
      %s298 = scalar_select %p297, %s34, 2
      %s299 = smul.addr %s298, 18
      %s300 = smul.addr %s299, 8
      %s301 = scalar_lea.vmem %s4, %s300
      %p302 = scmp.lt.s32.totalorder %s34, 2
      %s303 = scalar_select %p302, %s34, 2
      %p304 = scmp.lt.s32.totalorder %s35, 1
      %s305 = scalar_select %p304, %s35, 1
      %s306 = smul.addr %s305, 32
      %s307 = smul.addr %s303, 64
      %s308 = sadd.s32 %s306, %s307
      %s309 = smul.addr %s308, 8
      %s310 = scalar_lea.vmem %s5, %s309
      %p311 = scmp.eq.s32.totalorder %s36, 0
      // Predicated region
      $region33: #{tpu_custom_call.1} parent=31 // pred_check
        %p312 = pneg %p311
      $region34: #{tpu_custom_call.1} parent=31 // pred_check_branch
        %314 = sbr.rel (%p312) target = $region36
      $region35: #{tpu_custom_call.1} parent=31 // pred_region
        %v315 = vld [vmem:[%s295] sm:$0xff]
        %v316 = vld [vmem:[%s295 + $0x8] sm:$0xff]
        %v317 = vld [vmem:[%s295 + $0x10] sm:$0xff]
        %v318 = vld [vmem:[%s295 + $0x18] sm:$0xff]
        %v319 = vld [vmem:[%s295 + $0x20] sm:$0xff]
        %v320 = vld [vmem:[%s295 + $0x28] sm:$0xff]
        %v321 = vld [vmem:[%s295 + $0x30] sm:$0xff]
        %v322 = vld [vmem:[%s295 + $0x38] sm:$0xff]
        %v323 = vld [vmem:[%s295 + $0x40] sm:$0xff]
        %v324 = vld [vmem:[%s295 + $0x48] sm:$0xff]
        %v325 = vld [vmem:[%s295 + $0x50] sm:$0xff]
        %v326 = vld [vmem:[%s295 + $0x58] sm:$0xff]
        %v327 = vld [vmem:[%s295 + $0x60] sm:$0xff]
        %v328 = vld [vmem:[%s295 + $0x68] sm:$0xff]
        %v329 = vld [vmem:[%s295 + $0x70] sm:$0xff]
        %v330 = vld [vmem:[%s295 + $0x78] sm:$0xff]
        %v331 = vld [vmem:[%s295 + $0x80] sm:$0xff]
        %v332 = vld [vmem:[%s295 + $0x88] sm:$0xff]
        %v333 = vld [vmem:[%s295 + $0x90] sm:$0xff]
        %v334 = vld [vmem:[%s295 + $0x98] sm:$0xff]
        %v335 = vld [vmem:[%s295 + $0xa0] sm:$0xff]
        %v336 = vld [vmem:[%s295 + $0xa8] sm:$0xff]
        %v337 = vld [vmem:[%s295 + $0xb0] sm:$0xff]
        %v338 = vld [vmem:[%s295 + $0xb8] sm:$0xff]
        %v339 = vld [vmem:[%s295 + $0xc0] sm:$0xff]
        %v340 = vld [vmem:[%s295 + $0xc8] sm:$0xff]
        %v341 = vld [vmem:[%s295 + $0xd0] sm:$0xff]
        %v342 = vld [vmem:[%s295 + $0xd8] sm:$0xff]
        %v343 = vld [vmem:[%s295 + $0xe0] sm:$0xff]
        %v344 = vld [vmem:[%s295 + $0xe8] sm:$0xff]
        %v345 = vld [vmem:[%s295 + $0xf0] sm:$0xff]
        %v346 = vld [vmem:[%s295 + $0xf8] sm:$0xff]
        %vm347 = vcmask 64512
        %348 = vst.msk [vmem:[#allocation3] sm:$0xff] %vm347, %v315
        %349 = vst.msk [vmem:[#allocation3 + $0x8] sm:$0xff] %vm347, %v316
        %350 = vst.msk [vmem:[#allocation3 + $0x10] sm:$0xff] %vm347, %v317
        %351 = vst.msk [vmem:[#allocation3 + $0x18] sm:$0xff] %vm347, %v318
        %352 = vst.msk [vmem:[#allocation3 + $0x20] sm:$0xff] %vm347, %v319
        %353 = vst.msk [vmem:[#allocation3 + $0x28] sm:$0xff] %vm347, %v320
        %354 = vst.msk [vmem:[#allocation3 + $0x30] sm:$0xff] %vm347, %v321
        %355 = vst.msk [vmem:[#allocation3 + $0x38] sm:$0xff] %vm347, %v322
        %356 = vst.msk [vmem:[#allocation3 + $0x40] sm:$0xff] %vm347, %v323
        %357 = vst.msk [vmem:[#allocation3 + $0x48] sm:$0xff] %vm347, %v324
        %358 = vst.msk [vmem:[#allocation3 + $0x50] sm:$0xff] %vm347, %v325
        %359 = vst.msk [vmem:[#allocation3 + $0x58] sm:$0xff] %vm347, %v326
        %360 = vst.msk [vmem:[#allocation3 + $0x60] sm:$0xff] %vm347, %v327
        %361 = vst.msk [vmem:[#allocation3 + $0x68] sm:$0xff] %vm347, %v328
        %362 = vst.msk [vmem:[#allocation3 + $0x70] sm:$0xff] %vm347, %v329
        %363 = vst.msk [vmem:[#allocation3 + $0x78] sm:$0xff] %vm347, %v330
        %364 = vst.msk [vmem:[#allocation3 + $0x80] sm:$0xff] %vm347, %v331
        %365 = vst.msk [vmem:[#allocation3 + $0x88] sm:$0xff] %vm347, %v332
        %366 = vst.msk [vmem:[#allocation3 + $0x90] sm:$0xff] %vm347, %v333
        %367 = vst.msk [vmem:[#allocation3 + $0x98] sm:$0xff] %vm347, %v334
        %368 = vst.msk [vmem:[#allocation3 + $0xa0] sm:$0xff] %vm347, %v335
        %369 = vst.msk [vmem:[#allocation3 + $0xa8] sm:$0xff] %vm347, %v336
        %370 = vst.msk [vmem:[#allocation3 + $0xb0] sm:$0xff] %vm347, %v337
        %371 = vst.msk [vmem:[#allocation3 + $0xb8] sm:$0xff] %vm347, %v338
        %372 = vst.msk [vmem:[#allocation3 + $0xc0] sm:$0xff] %vm347, %v339
        %373 = vst.msk [vmem:[#allocation3 + $0xc8] sm:$0xff] %vm347, %v340
        %374 = vst.msk [vmem:[#allocation3 + $0xd0] sm:$0xff] %vm347, %v341
        %375 = vst.msk [vmem:[#allocation3 + $0xd8] sm:$0xff] %vm347, %v342
        %376 = vst.msk [vmem:[#allocation3 + $0xe0] sm:$0xff] %vm347, %v343
        %377 = vst.msk [vmem:[#allocation3 + $0xe8] sm:$0xff] %vm347, %v344
        %378 = vst.msk [vmem:[#allocation3 + $0xf0] sm:$0xff] %vm347, %v345
        %379 = vst.msk [vmem:[#allocation3 + $0xf8] sm:$0xff] %vm347, %v346
      $region36: #{tpu_custom_call.1} parent=31 // pred_fallthru
        _
      %vm380 = vcmask 64512
      %381 = vst.msk [vmem:[#allocation2] sm:$0xff] %vm380, 0.0
      %382 = vst.msk [vmem:[#allocation2 + $0x8] sm:$0xff] %vm380, 0.0
      %vm383 = vcmask 58368
      %384 = vst.msk [vmem:[#allocation2 + $0x10] sm:$0x3] %vm383, 0.0
      %s385 = scalar_lea.vmem [#allocation2], 408
      %386 = vst.msk [vmem:[%s385] sm:$0xff] %vm380, 0.0
      %387 = vst.msk [vmem:[%s385 + $0x8] sm:$0xff] %vm380, 0.0
      %388 = vst.msk [vmem:[%s385 + $0x10] sm:$0x3] %vm383, 0.0
      %vm389 = vcmask 57344
      %390 = vst.msk [vmem:[#allocation2] sm:$0x1] %vm389, 0.0
      %391 = vst.msk [vmem:[#allocation2 + $0x18] sm:$0x1] %vm389, 0.0
      %392 = vst.msk [vmem:[#allocation2 + $0x30] sm:$0x1] %vm389, 0.0
      %393 = vst.msk [vmem:[#allocation2 + $0x48] sm:$0x1] %vm389, 0.0
      %394 = vst.msk [vmem:[#allocation2 + $0x60] sm:$0x1] %vm389, 0.0
      %395 = vst.msk [vmem:[#allocation2 + $0x78] sm:$0x1] %vm389, 0.0
      %396 = vst.msk [vmem:[#allocation2 + $0x90] sm:$0x1] %vm389, 0.0
      %397 = vst.msk [vmem:[#allocation2 + $0xa8] sm:$0x1] %vm389, 0.0
      %398 = vst.msk [vmem:[#allocation2 + $0xc0] sm:$0x1] %vm389, 0.0
      %399 = vst.msk [vmem:[#allocation2 + $0xd8] sm:$0x1] %vm389, 0.0
      %400 = vst.msk [vmem:[#allocation2 + $0xf0] sm:$0x1] %vm389, 0.0
      %401 = vst.msk [vmem:[#allocation2 + $0x108] sm:$0x1] %vm389, 0.0
      %402 = vst.msk [vmem:[#allocation2 + $0x120] sm:$0x1] %vm389, 0.0
      %403 = vst.msk [vmem:[#allocation2 + $0x138] sm:$0x1] %vm389, 0.0
      %404 = vst.msk [vmem:[#allocation2 + $0x150] sm:$0x1] %vm389, 0.0
      %405 = vst.msk [vmem:[#allocation2 + $0x168] sm:$0x1] %vm389, 0.0
      %406 = vst.msk [vmem:[#allocation2 + $0x180] sm:$0x1] %vm389, 0.0
      %407 = vst.msk [vmem:[#allocation2 + $0x198] sm:$0x1] %vm389, 0.0
      %408 = vst.msk [vmem:[#allocation2 + $0x11] sm:$0x1] %vm389, 0.0
      %409 = vst.msk [vmem:[#allocation2 + $0x29] sm:$0x1] %vm389, 0.0
      %410 = vst.msk [vmem:[#allocation2 + $0x41] sm:$0x1] %vm389, 0.0
      %411 = vst.msk [vmem:[#allocation2 + $0x59] sm:$0x1] %vm389, 0.0
      %412 = vst.msk [vmem:[#allocation2 + $0x71] sm:$0x1] %vm389, 0.0
      %413 = vst.msk [vmem:[#allocation2 + $0x89] sm:$0x1] %vm389, 0.0
      %414 = vst.msk [vmem:[#allocation2 + $0xa1] sm:$0x1] %vm389, 0.0
      %415 = vst.msk [vmem:[#allocation2 + $0xb9] sm:$0x1] %vm389, 0.0
      %416 = vst.msk [vmem:[#allocation2 + $0xd1] sm:$0x1] %vm389, 0.0
      %417 = vst.msk [vmem:[#allocation2 + $0xe9] sm:$0x1] %vm389, 0.0
      %418 = vst.msk [vmem:[#allocation2 + $0x101] sm:$0x1] %vm389, 0.0
      %419 = vst.msk [vmem:[#allocation2 + $0x119] sm:$0x1] %vm389, 0.0
      %420 = vst.msk [vmem:[#allocation2 + $0x131] sm:$0x1] %vm389, 0.0
      %421 = vst.msk [vmem:[#allocation2 + $0x149] sm:$0x1] %vm389, 0.0
      %422 = vst.msk [vmem:[#allocation2 + $0x161] sm:$0x1] %vm389, 0.0
      %423 = vst.msk [vmem:[#allocation2 + $0x179] sm:$0x1] %vm389, 0.0
      %424 = vst.msk [vmem:[#allocation2 + $0x191] sm:$0x1] %vm389, 0.0
      %425 = vst.msk [vmem:[#allocation2 + $0x1a9] sm:$0x1] %vm389, 0.0
      %v426 = vld [vmem:[%s282] sm:$0xff]
      %v427 = vld [vmem:[%s282 + $0x8] sm:$0xff]
      %v428 = vld [vmem:[%s282 + $0x10] sm:$0xff]
      %v429 = vld [vmem:[%s282 + $0x18] sm:$0xff]
      %v430 = vld [vmem:[%s282 + $0x20] sm:$0xff]
      %v431 = vld [vmem:[%s282 + $0x28] sm:$0xff]
      %v432 = vld [vmem:[%s282 + $0x30] sm:$0xff]
      %v433 = vld [vmem:[%s282 + $0x38] sm:$0xff]
      %v434 = vld [vmem:[%s282 + $0x40] sm:$0xff]
      %v435 = vld [vmem:[%s282 + $0x48] sm:$0xff]
      %v436 = vld [vmem:[%s282 + $0x50] sm:$0xff]
      %v437 = vld [vmem:[%s282 + $0x58] sm:$0xff]
      %v438 = vld [vmem:[%s282 + $0x60] sm:$0xff]
      %v439 = vld [vmem:[%s282 + $0x68] sm:$0xff]
      %v440 = vld [vmem:[%s282 + $0x70] sm:$0xff]
      %v441 = vld [vmem:[%s282 + $0x78] sm:$0xff]
      %v442 = vld [vmem:[%s282 + $0x80] sm:$0xff]
      %v443 = vld [vmem:[%s282 + $0x88] sm:$0xff]
      %v444 = vld [vmem:[%s282 + $0x90] sm:$0xff]
      %v445 = vld [vmem:[%s282 + $0x98] sm:$0xff]
      %v446 = vld [vmem:[%s282 + $0xa0] sm:$0xff]
      %v447 = vld [vmem:[%s282 + $0xa8] sm:$0xff]
      %v448 = vld [vmem:[%s282 + $0xb0] sm:$0xff]
      %v449 = vld [vmem:[%s282 + $0xb8] sm:$0xff]
      %v450 = vld [vmem:[%s282 + $0xc0] sm:$0xff]
      %v451 = vld [vmem:[%s282 + $0xc8] sm:$0xff]
      %v452 = vld [vmem:[%s282 + $0xd0] sm:$0xff]
      %v453 = vld [vmem:[%s282 + $0xd8] sm:$0xff]
      %v454 = vld [vmem:[%s282 + $0xe0] sm:$0xff]
      %v455 = vld [vmem:[%s282 + $0xe8] sm:$0xff]
      %v456 = vld [vmem:[%s282 + $0xf0] sm:$0xff]
      %v457 = vld [vmem:[%s282 + $0xf8] sm:$0xff]
      %s458 = scalar_lea.vmem [#allocation2], 24
      %459 = vst.msk [vmem:[%s458 + $0x1] sm:$0xff] %vm380, %v426
      %460 = vst.msk [vmem:[%s458 + $0x9] sm:$0xff] %vm380, %v427
      %461 = vst.msk [vmem:[%s458 + $0x19] sm:$0xff] %vm380, %v428
      %462 = vst.msk [vmem:[%s458 + $0x21] sm:$0xff] %vm380, %v429
      %463 = vst.msk [vmem:[%s458 + $0x31] sm:$0xff] %vm380, %v430
      %464 = vst.msk [vmem:[%s458 + $0x39] sm:$0xff] %vm380, %v431
      %465 = vst.msk [vmem:[%s458 + $0x49] sm:$0xff] %vm380, %v432
      %466 = vst.msk [vmem:[%s458 + $0x51] sm:$0xff] %vm380, %v433
      %467 = vst.msk [vmem:[%s458 + $0x61] sm:$0xff] %vm380, %v434
      %468 = vst.msk [vmem:[%s458 + $0x69] sm:$0xff] %vm380, %v435
      %469 = vst.msk [vmem:[%s458 + $0x79] sm:$0xff] %vm380, %v436
      %470 = vst.msk [vmem:[%s458 + $0x81] sm:$0xff] %vm380, %v437
      %471 = vst.msk [vmem:[%s458 + $0x91] sm:$0xff] %vm380, %v438
      %472 = vst.msk [vmem:[%s458 + $0x99] sm:$0xff] %vm380, %v439
      %473 = vst.msk [vmem:[%s458 + $0xa9] sm:$0xff] %vm380, %v440
      %474 = vst.msk [vmem:[%s458 + $0xb1] sm:$0xff] %vm380, %v441
      %475 = vst.msk [vmem:[%s458 + $0xc1] sm:$0xff] %vm380, %v442
      %476 = vst.msk [vmem:[%s458 + $0xc9] sm:$0xff] %vm380, %v443
      %477 = vst.msk [vmem:[%s458 + $0xd9] sm:$0xff] %vm380, %v444
      %478 = vst.msk [vmem:[%s458 + $0xe1] sm:$0xff] %vm380, %v445
      %479 = vst.msk [vmem:[%s458 + $0xf1] sm:$0xff] %vm380, %v446
      %480 = vst.msk [vmem:[%s458 + $0xf9] sm:$0xff] %vm380, %v447
      %481 = vst.msk [vmem:[%s458 + $0x109] sm:$0xff] %vm380, %v448
      %482 = vst.msk [vmem:[%s458 + $0x111] sm:$0xff] %vm380, %v449
      %483 = vst.msk [vmem:[%s458 + $0x121] sm:$0xff] %vm380, %v450
      %484 = vst.msk [vmem:[%s458 + $0x129] sm:$0xff] %vm380, %v451
      %485 = vst.msk [vmem:[%s458 + $0x139] sm:$0xff] %vm380, %v452
      %486 = vst.msk [vmem:[%s458 + $0x141] sm:$0xff] %vm380, %v453
      %487 = vst.msk [vmem:[%s458 + $0x151] sm:$0xff] %vm380, %v454
      %488 = vst.msk [vmem:[%s458 + $0x159] sm:$0xff] %vm380, %v455
      %489 = vst.msk [vmem:[%s458 + $0x169] sm:$0xff] %vm380, %v456
      %490 = vst.msk [vmem:[%s458 + $0x171] sm:$0xff] %vm380, %v457
      %v491 = vld [vmem:[#allocation2] sm:$0xff]
      %v492 = vld [vmem:[#allocation2 + $0x8] sm:$0xff]
      %v493 = vld [vmem:[#allocation2 + $0x18] sm:$0xff]
      %v494 = vld [vmem:[#allocation2 + $0x20] sm:$0xff]
      %v495 = vld [vmem:[#allocation2 + $0x30] sm:$0xff]
      %v496 = vld [vmem:[#allocation2 + $0x38] sm:$0xff]
      %v497 = vld [vmem:[#allocation2 + $0x48] sm:$0xff]
      %v498 = vld [vmem:[#allocation2 + $0x50] sm:$0xff]
      %v499 = vld [vmem:[#allocation2 + $0x60] sm:$0xff]
      %v500 = vld [vmem:[#allocation2 + $0x68] sm:$0xff]
      %v501 = vld [vmem:[#allocation2 + $0x78] sm:$0xff]
      %v502 = vld [vmem:[#allocation2 + $0x80] sm:$0xff]
      %v503 = vld [vmem:[#allocation2 + $0x90] sm:$0xff]
      %v504 = vld [vmem:[#allocation2 + $0x98] sm:$0xff]
      %v505 = vld [vmem:[#allocation2 + $0xa8] sm:$0xff]
      %v506 = vld [vmem:[#allocation2 + $0xb0] sm:$0xff]
      %v507 = vld [vmem:[#allocation2 + $0xc0] sm:$0xff]
      %v508 = vld [vmem:[#allocation2 + $0xc8] sm:$0xff]
      %v509 = vld [vmem:[#allocation2 + $0xd8] sm:$0xff]
      %v510 = vld [vmem:[#allocation2 + $0xe0] sm:$0xff]
      %v511 = vld [vmem:[#allocation2 + $0xf0] sm:$0xff]
      %v512 = vld [vmem:[#allocation2 + $0xf8] sm:$0xff]
      %v513 = vld [vmem:[#allocation2 + $0x108] sm:$0xff]
      %v514 = vld [vmem:[#allocation2 + $0x110] sm:$0xff]
      %v515 = vld [vmem:[#allocation2 + $0x120] sm:$0xff]
      %v516 = vld [vmem:[#allocation2 + $0x128] sm:$0xff]
      %v517 = vld [vmem:[#allocation2 + $0x138] sm:$0xff]
      %v518 = vld [vmem:[#allocation2 + $0x140] sm:$0xff]
      %v519 = vld [vmem:[#allocation2 + $0x150] sm:$0xff]
      %v520 = vld [vmem:[#allocation2 + $0x158] sm:$0xff]
      %v521 = vld [vmem:[#allocation2 + $0x168] sm:$0xff]
      %v522 = vld [vmem:[#allocation2 + $0x170] sm:$0xff]
      %s523 = smul.u32 %s36, 9
      %s524 = smul.u32 %s523, 8
      %s525 = scalar_lea.vmem %s301, %s524
      %v526 = vld [vmem:[%s525] sm:$0xff]
      %v527 = vld [vmem:[#allocation2 + $0x1] sm:$0xff]
      %v528 = vld [vmem:[#allocation2 + $0x9] sm:$0xff]
      %v529 = vld [vmem:[#allocation2 + $0x19] sm:$0xff]
      %v530 = vld [vmem:[#allocation2 + $0x21] sm:$0xff]
      %v531 = vld [vmem:[#allocation2 + $0x31] sm:$0xff]
      %v532 = vld [vmem:[#allocation2 + $0x39] sm:$0xff]
      %v533 = vld [vmem:[#allocation2 + $0x49] sm:$0xff]
      %v534 = vld [vmem:[#allocation2 + $0x51] sm:$0xff]
      %v535 = vld [vmem:[#allocation2 + $0x61] sm:$0xff]
      %v536 = vld [vmem:[#allocation2 + $0x69] sm:$0xff]
      %v537 = vld [vmem:[#allocation2 + $0x79] sm:$0xff]
      %v538 = vld [vmem:[#allocation2 + $0x81] sm:$0xff]
      %v539 = vld [vmem:[#allocation2 + $0x91] sm:$0xff]
      %v540 = vld [vmem:[#allocation2 + $0x99] sm:$0xff]
      %v541 = vld [vmem:[#allocation2 + $0xa9] sm:$0xff]
      %v542 = vld [vmem:[#allocation2 + $0xb1] sm:$0xff]
      %v543 = vld [vmem:[#allocation2 + $0xc1] sm:$0xff]
      %v544 = vld [vmem:[#allocation2 + $0xc9] sm:$0xff]
      %v545 = vld [vmem:[#allocation2 + $0xd9] sm:$0xff]
      %v546 = vld [vmem:[#allocation2 + $0xe1] sm:$0xff]
      %v547 = vld [vmem:[#allocation2 + $0xf1] sm:$0xff]
      %v548 = vld [vmem:[#allocation2 + $0xf9] sm:$0xff]
      %v549 = vld [vmem:[#allocation2 + $0x109] sm:$0xff]
      %v550 = vld [vmem:[#allocation2 + $0x111] sm:$0xff]
      %v551 = vld [vmem:[#allocation2 + $0x121] sm:$0xff]
      %v552 = vld [vmem:[#allocation2 + $0x129] sm:$0xff]
      %v553 = vld [vmem:[#allocation2 + $0x139] sm:$0xff]
      %v554 = vld [vmem:[#allocation2 + $0x141] sm:$0xff]
      %v555 = vld [vmem:[#allocation2 + $0x151] sm:$0xff]
      %v556 = vld [vmem:[#allocation2 + $0x159] sm:$0xff]
      %v557 = vld [vmem:[#allocation2 + $0x169] sm:$0xff]
      %v558 = vld [vmem:[#allocation2 + $0x171] sm:$0xff]
      %s559 = sadd.s32 %s523, 1
      %s560 = smul.u32 %s559, 8
      %s561 = scalar_lea.vmem %s301, %s560
      %v562 = vld [vmem:[%s561] sm:$0xff]
      %v564 = vsel %vm380, %v527, 0
      %v567 = vsel %vm380, %v528, 0
      %v570 = vsel %vm380, %v529, 0
      %v573 = vsel %vm380, %v530, 0
      %v576 = vsel %vm380, %v531, 0
      %v579 = vsel %vm380, %v532, 0
      %v582 = vsel %vm380, %v533, 0
      %v585 = vsel %vm380, %v534, 0
      %v588 = vsel %vm380, %v535, 0
      %v591 = vsel %vm380, %v536, 0
      %v594 = vsel %vm380, %v537, 0
      %v597 = vsel %vm380, %v538, 0
      %v600 = vsel %vm380, %v539, 0
      %v603 = vsel %vm380, %v540, 0
      %v606 = vsel %vm380, %v541, 0
      %v609 = vsel %vm380, %v542, 0
      %v612 = vsel %vm380, %v543, 0
      %v615 = vsel %vm380, %v544, 0
      %v618 = vsel %vm380, %v545, 0
      %v621 = vsel %vm380, %v546, 0
      %v624 = vsel %vm380, %v547, 0
      %v627 = vsel %vm380, %v548, 0
      %v630 = vsel %vm380, %v549, 0
      %v633 = vsel %vm380, %v550, 0
      %v636 = vsel %vm380, %v551, 0
      %v639 = vsel %vm380, %v552, 0
      %v642 = vsel %vm380, %v553, 0
      %v645 = vsel %vm380, %v554, 0
      %v648 = vsel %vm380, %v555, 0
      %v651 = vsel %vm380, %v556, 0
      %v654 = vsel %vm380, %v557, 0
      %v657 = vsel %vm380, %v558, 0
      %659 = vmatpush.msra.mxu0 0.0
      %660 = vmatpush.msra.mxu0 0.0
      %661 = vmatpush.msra.mxu0 0.0
      %662 = vmatpush.msra.mxu0 0.0
      %663 = vmatpush.msra.mxu0 0.0
      %664 = vmatpush.msra.mxu0 0.0
      %665 = vmatpush.msra.mxu0 0.0
      %666 = vmatpush.msra.mxu0 0.0
      %667 = vmatpush.msra.mxu0 0.0
      %668 = vmatpush.msra.mxu0 0.0
      %669 = vmatpush.msra.mxu0 0.0
      %670 = vmatpush.msra.mxu0 0.0
      %671 = vmatpush.msra.mxu0 0.0
      %672 = vmatpush.msra.mxu0 0.0
      %673 = vmatpush.msra.mxu0 0.0
      %674 = vmatpush.msra.mxu0 %v562
      %675 = vmatmul.f32.gmra.mxu0 %v564
      %v676 = vpop.f32.mrf.mxu0
      %v677 = vadd.f32 0.0, %v676
      %678 = vmatmul.f32.gmra.mxu0 %v567
      %v679 = vpop.f32.mrf.mxu0
      %v680 = vadd.f32 0.0, %v679
      %681 = vmatmul.f32.gmra.mxu0 %v570
      %v682 = vpop.f32.mrf.mxu0
      %v683 = vadd.f32 0.0, %v682
      %684 = vmatmul.f32.gmra.mxu0 %v573
      %v685 = vpop.f32.mrf.mxu0
      %v686 = vadd.f32 0.0, %v685
      %687 = vmatmul.f32.gmra.mxu0 %v576
      %v688 = vpop.f32.mrf.mxu0
      %v689 = vadd.f32 0.0, %v688
      %690 = vmatmul.f32.gmra.mxu0 %v579
      %v691 = vpop.f32.mrf.mxu0
      %v692 = vadd.f32 0.0, %v691
      %693 = vmatmul.f32.gmra.mxu0 %v582
      %v694 = vpop.f32.mrf.mxu0
      %v695 = vadd.f32 0.0, %v694
      %696 = vmatmul.f32.gmra.mxu0 %v585
      %v697 = vpop.f32.mrf.mxu0
      %v698 = vadd.f32 0.0, %v697
      %699 = vmatmul.f32.gmra.mxu0 %v588
      %v700 = vpop.f32.mrf.mxu0
      %v701 = vadd.f32 0.0, %v700
      %702 = vmatmul.f32.gmra.mxu0 %v591
      %v703 = vpop.f32.mrf.mxu0
      %v704 = vadd.f32 0.0, %v703
      %705 = vmatmul.f32.gmra.mxu0 %v594
      %v706 = vpop.f32.mrf.mxu0
      %v707 = vadd.f32 0.0, %v706
      %708 = vmatmul.f32.gmra.mxu0 %v597
      %v709 = vpop.f32.mrf.mxu0
      %v710 = vadd.f32 0.0, %v709
      %711 = vmatmul.f32.gmra.mxu0 %v600
      %v712 = vpop.f32.mrf.mxu0
      %v713 = vadd.f32 0.0, %v712
      %714 = vmatmul.f32.gmra.mxu0 %v603
      %v715 = vpop.f32.mrf.mxu0
      %v716 = vadd.f32 0.0, %v715
      %717 = vmatmul.f32.gmra.mxu0 %v606
      %v718 = vpop.f32.mrf.mxu0
      %v719 = vadd.f32 0.0, %v718
      %720 = vmatmul.f32.gmra.mxu0 %v609
      %v721 = vpop.f32.mrf.mxu0
      %v722 = vadd.f32 0.0, %v721
      %723 = vmatmul.f32.gmra.mxu0 %v612
      %v724 = vpop.f32.mrf.mxu0
      %v725 = vadd.f32 0.0, %v724
      %726 = vmatmul.f32.gmra.mxu0 %v615
      %v727 = vpop.f32.mrf.mxu0
      %v728 = vadd.f32 0.0, %v727
      %729 = vmatmul.f32.gmra.mxu0 %v618
      %v730 = vpop.f32.mrf.mxu0
      %v731 = vadd.f32 0.0, %v730
      %732 = vmatmul.f32.gmra.mxu0 %v621
      %v733 = vpop.f32.mrf.mxu0
      %v734 = vadd.f32 0.0, %v733
      %735 = vmatmul.f32.gmra.mxu0 %v624
      %v736 = vpop.f32.mrf.mxu0
      %v737 = vadd.f32 0.0, %v736
      %738 = vmatmul.f32.gmra.mxu0 %v627
      %v739 = vpop.f32.mrf.mxu0
      %v740 = vadd.f32 0.0, %v739
      %741 = vmatmul.f32.gmra.mxu0 %v630
      %v742 = vpop.f32.mrf.mxu0
      %v743 = vadd.f32 0.0, %v742
      %744 = vmatmul.f32.gmra.mxu0 %v633
      %v745 = vpop.f32.mrf.mxu0
      %v746 = vadd.f32 0.0, %v745
      %747 = vmatmul.f32.gmra.mxu0 %v636
      %v748 = vpop.f32.mrf.mxu0
      %v749 = vadd.f32 0.0, %v748
      %750 = vmatmul.f32.gmra.mxu0 %v639
      %v751 = vpop.f32.mrf.mxu0
      %v752 = vadd.f32 0.0, %v751
      %753 = vmatmul.f32.gmra.mxu0 %v642
      %v754 = vpop.f32.mrf.mxu0
      %v755 = vadd.f32 0.0, %v754
      %756 = vmatmul.f32.gmra.mxu0 %v645
      %v757 = vpop.f32.mrf.mxu0
      %v758 = vadd.f32 0.0, %v757
      %759 = vmatmul.f32.gmra.mxu0 %v648
      %v760 = vpop.f32.mrf.mxu0
      %v761 = vadd.f32 0.0, %v760
      %762 = vmatmul.f32.gmra.mxu0 %v651
      %v763 = vpop.f32.mrf.mxu0
      %v764 = vadd.f32 0.0, %v763
      %765 = vmatmul.f32.gmra.mxu0 %v654
      %v766 = vpop.f32.mrf.mxu0
      %v767 = vadd.f32 0.0, %v766
      %768 = vmatmul.f32.gmra.mxu0 %v657
      %v769 = vpop.f32.mrf.mxu0
      %v770 = vadd.f32 0.0, %v769
      %771 = vdwg.mxu0
      %v773 = vsel %vm380, %v491, 0
      %v776 = vsel %vm380, %v492, 0
      %v779 = vsel %vm380, %v493, 0
      %v782 = vsel %vm380, %v494, 0
      %v785 = vsel %vm380, %v495, 0
      %v788 = vsel %vm380, %v496, 0
      %v791 = vsel %vm380, %v497, 0
      %v794 = vsel %vm380, %v498, 0
      %v797 = vsel %vm380, %v499, 0
      %v800 = vsel %vm380, %v500, 0
      %v803 = vsel %vm380, %v501, 0
      %v806 = vsel %vm380, %v502, 0
      %v809 = vsel %vm380, %v503, 0
      %v812 = vsel %vm380, %v504, 0
      %v815 = vsel %vm380, %v505, 0
      %v818 = vsel %vm380, %v506, 0
      %v821 = vsel %vm380, %v507, 0
      %v824 = vsel %vm380, %v508, 0
      %v827 = vsel %vm380, %v509, 0
      %v830 = vsel %vm380, %v510, 0
      %v833 = vsel %vm380, %v511, 0
      %v836 = vsel %vm380, %v512, 0
      %v839 = vsel %vm380, %v513, 0
      %v842 = vsel %vm380, %v514, 0
      %v845 = vsel %vm380, %v515, 0
      %v848 = vsel %vm380, %v516, 0
      %v851 = vsel %vm380, %v517, 0
      %v854 = vsel %vm380, %v518, 0
      %v857 = vsel %vm380, %v519, 0
      %v860 = vsel %vm380, %v520, 0
      %v863 = vsel %vm380, %v521, 0
      %v866 = vsel %vm380, %v522, 0
      %868 = vmatpush.msra.mxu0 0.0
      %869 = vmatpush.msra.mxu0 0.0
      %870 = vmatpush.msra.mxu0 0.0
      %871 = vmatpush.msra.mxu0 0.0
      %872 = vmatpush.msra.mxu0 0.0
      %873 = vmatpush.msra.mxu0 0.0
      %874 = vmatpush.msra.mxu0 0.0
      %875 = vmatpush.msra.mxu0 0.0
      %876 = vmatpush.msra.mxu0 0.0
      %877 = vmatpush.msra.mxu0 0.0
      %878 = vmatpush.msra.mxu0 0.0
      %879 = vmatpush.msra.mxu0 0.0
      %880 = vmatpush.msra.mxu0 0.0
      %881 = vmatpush.msra.mxu0 0.0
      %882 = vmatpush.msra.mxu0 0.0
      %883 = vmatpush.msra.mxu0 %v526
      %884 = vmatmul.f32.gmra.mxu0 %v773
      %v885 = vpop.f32.mrf.mxu0
      %v886 = vadd.f32 %v677, %v885
      %887 = vmatmul.f32.gmra.mxu0 %v776
      %v888 = vpop.f32.mrf.mxu0
      %v889 = vadd.f32 %v680, %v888
      %890 = vmatmul.f32.gmra.mxu0 %v779
      %v891 = vpop.f32.mrf.mxu0
      %v892 = vadd.f32 %v683, %v891
      %893 = vmatmul.f32.gmra.mxu0 %v782
      %v894 = vpop.f32.mrf.mxu0
      %v895 = vadd.f32 %v686, %v894
      %896 = vmatmul.f32.gmra.mxu0 %v785
      %v897 = vpop.f32.mrf.mxu0
      %v898 = vadd.f32 %v689, %v897
      %899 = vmatmul.f32.gmra.mxu0 %v788
      %v900 = vpop.f32.mrf.mxu0
      %v901 = vadd.f32 %v692, %v900
      %902 = vmatmul.f32.gmra.mxu0 %v791
      %v903 = vpop.f32.mrf.mxu0
      %v904 = vadd.f32 %v695, %v903
      %905 = vmatmul.f32.gmra.mxu0 %v794
      %v906 = vpop.f32.mrf.mxu0
      %v907 = vadd.f32 %v698, %v906
      %908 = vmatmul.f32.gmra.mxu0 %v797
      %v909 = vpop.f32.mrf.mxu0
      %v910 = vadd.f32 %v701, %v909
      %911 = vmatmul.f32.gmra.mxu0 %v800
      %v912 = vpop.f32.mrf.mxu0
      %v913 = vadd.f32 %v704, %v912
      %914 = vmatmul.f32.gmra.mxu0 %v803
      %v915 = vpop.f32.mrf.mxu0
      %v916 = vadd.f32 %v707, %v915
      %917 = vmatmul.f32.gmra.mxu0 %v806
      %v918 = vpop.f32.mrf.mxu0
      %v919 = vadd.f32 %v710, %v918
      %920 = vmatmul.f32.gmra.mxu0 %v809
      %v921 = vpop.f32.mrf.mxu0
      %v922 = vadd.f32 %v713, %v921
      %923 = vmatmul.f32.gmra.mxu0 %v812
      %v924 = vpop.f32.mrf.mxu0
      %v925 = vadd.f32 %v716, %v924
      %926 = vmatmul.f32.gmra.mxu0 %v815
      %v927 = vpop.f32.mrf.mxu0
      %v928 = vadd.f32 %v719, %v927
      %929 = vmatmul.f32.gmra.mxu0 %v818
      %v930 = vpop.f32.mrf.mxu0
      %v931 = vadd.f32 %v722, %v930
      %932 = vmatmul.f32.gmra.mxu0 %v821
      %v933 = vpop.f32.mrf.mxu0
      %v934 = vadd.f32 %v725, %v933
      %935 = vmatmul.f32.gmra.mxu0 %v824
      %v936 = vpop.f32.mrf.mxu0
      %v937 = vadd.f32 %v728, %v936
      %938 = vmatmul.f32.gmra.mxu0 %v827
      %v939 = vpop.f32.mrf.mxu0
      %v940 = vadd.f32 %v731, %v939
      %941 = vmatmul.f32.gmra.mxu0 %v830
      %v942 = vpop.f32.mrf.mxu0
      %v943 = vadd.f32 %v734, %v942
      %944 = vmatmul.f32.gmra.mxu0 %v833
      %v945 = vpop.f32.mrf.mxu0
      %v946 = vadd.f32 %v737, %v945
      %947 = vmatmul.f32.gmra.mxu0 %v836
      %v948 = vpop.f32.mrf.mxu0
      %v949 = vadd.f32 %v740, %v948
      %950 = vmatmul.f32.gmra.mxu0 %v839
      %v951 = vpop.f32.mrf.mxu0
      %v952 = vadd.f32 %v743, %v951
      %953 = vmatmul.f32.gmra.mxu0 %v842
      %v954 = vpop.f32.mrf.mxu0
      %v955 = vadd.f32 %v746, %v954
      %956 = vmatmul.f32.gmra.mxu0 %v845
      %v957 = vpop.f32.mrf.mxu0
      %v958 = vadd.f32 %v749, %v957
      %959 = vmatmul.f32.gmra.mxu0 %v848
      %v960 = vpop.f32.mrf.mxu0
      %v961 = vadd.f32 %v752, %v960
      %962 = vmatmul.f32.gmra.mxu0 %v851
      %v963 = vpop.f32.mrf.mxu0
      %v964 = vadd.f32 %v755, %v963
      %965 = vmatmul.f32.gmra.mxu0 %v854
      %v966 = vpop.f32.mrf.mxu0
      %v967 = vadd.f32 %v758, %v966
      %968 = vmatmul.f32.gmra.mxu0 %v857
      %v969 = vpop.f32.mrf.mxu0
      %v970 = vadd.f32 %v761, %v969
      %971 = vmatmul.f32.gmra.mxu0 %v860
      %v972 = vpop.f32.mrf.mxu0
      %v973 = vadd.f32 %v764, %v972
      %974 = vmatmul.f32.gmra.mxu0 %v863
      %v975 = vpop.f32.mrf.mxu0
      %v976 = vadd.f32 %v767, %v975
      %977 = vmatmul.f32.gmra.mxu0 %v866
      %v978 = vpop.f32.mrf.mxu0
      %v979 = vadd.f32 %v770, %v978
      %980 = vdwg.mxu0
      %v981 = vld [vmem:[#allocation2 + $0x2] sm:$0xff]
      %v982 = vld [vmem:[#allocation2 + $0xa] sm:$0xff]
      %v983 = vld [vmem:[#allocation2 + $0x1a] sm:$0xff]
      %v984 = vld [vmem:[#allocation2 + $0x22] sm:$0xff]
      %v985 = vld [vmem:[#allocation2 + $0x32] sm:$0xff]
      %v986 = vld [vmem:[#allocation2 + $0x3a] sm:$0xff]
      %v987 = vld [vmem:[#allocation2 + $0x4a] sm:$0xff]
      %v988 = vld [vmem:[#allocation2 + $0x52] sm:$0xff]
      %v989 = vld [vmem:[#allocation2 + $0x62] sm:$0xff]
      %v990 = vld [vmem:[#allocation2 + $0x6a] sm:$0xff]
      %v991 = vld [vmem:[#allocation2 + $0x7a] sm:$0xff]
      %v992 = vld [vmem:[#allocation2 + $0x82] sm:$0xff]
      %v993 = vld [vmem:[#allocation2 + $0x92] sm:$0xff]
      %v994 = vld [vmem:[#allocation2 + $0x9a] sm:$0xff]
      %v995 = vld [vmem:[#allocation2 + $0xaa] sm:$0xff]
      %v996 = vld [vmem:[#allocation2 + $0xb2] sm:$0xff]
      %v997 = vld [vmem:[#allocation2 + $0xc2] sm:$0xff]
      %v998 = vld [vmem:[#allocation2 + $0xca] sm:$0xff]
      %v999 = vld [vmem:[#allocation2 + $0xda] sm:$0xff]
      %v1000 = vld [vmem:[#allocation2 + $0xe2] sm:$0xff]
      %v1001 = vld [vmem:[#allocation2 + $0xf2] sm:$0xff]
      %v1002 = vld [vmem:[#allocation2 + $0xfa] sm:$0xff]
      %v1003 = vld [vmem:[#allocation2 + $0x10a] sm:$0xff]
      %v1004 = vld [vmem:[#allocation2 + $0x112] sm:$0xff]
      %v1005 = vld [vmem:[#allocation2 + $0x122] sm:$0xff]
      %v1006 = vld [vmem:[#allocation2 + $0x12a] sm:$0xff]
      %v1007 = vld [vmem:[#allocation2 + $0x13a] sm:$0xff]
      %v1008 = vld [vmem:[#allocation2 + $0x142] sm:$0xff]
      %v1009 = vld [vmem:[#allocation2 + $0x152] sm:$0xff]
      %v1010 = vld [vmem:[#allocation2 + $0x15a] sm:$0xff]
      %v1011 = vld [vmem:[#allocation2 + $0x16a] sm:$0xff]
      %v1012 = vld [vmem:[#allocation2 + $0x172] sm:$0xff]
      %s1013 = sadd.s32 %s523, 2
      %s1014 = smul.u32 %s1013, 8
      %s1015 = scalar_lea.vmem %s301, %s1014
      %v1016 = vld [vmem:[%s1015] sm:$0xff]
      %v1018 = vsel %vm380, %v981, 0
      %v1021 = vsel %vm380, %v982, 0
      %v1024 = vsel %vm380, %v983, 0
      %v1027 = vsel %vm380, %v984, 0
      %v1030 = vsel %vm380, %v985, 0
      %v1033 = vsel %vm380, %v986, 0
      %v1036 = vsel %vm380, %v987, 0
      %v1039 = vsel %vm380, %v988, 0
      %v1042 = vsel %vm380, %v989, 0
      %v1045 = vsel %vm380, %v990, 0
      %v1048 = vsel %vm380, %v991, 0
      %v1051 = vsel %vm380, %v992, 0
      %v1054 = vsel %vm380, %v993, 0
      %v1057 = vsel %vm380, %v994, 0
      %v1060 = vsel %vm380, %v995, 0
      %v1063 = vsel %vm380, %v996, 0
      %v1066 = vsel %vm380, %v997, 0
      %v1069 = vsel %vm380, %v998, 0
      %v1072 = vsel %vm380, %v999, 0
      %v1075 = vsel %vm380, %v1000, 0
      %v1078 = vsel %vm380, %v1001, 0
      %v1081 = vsel %vm380, %v1002, 0
      %v1084 = vsel %vm380, %v1003, 0
      %v1087 = vsel %vm380, %v1004, 0
      %v1090 = vsel %vm380, %v1005, 0
      %v1093 = vsel %vm380, %v1006, 0
      %v1096 = vsel %vm380, %v1007, 0
      %v1099 = vsel %vm380, %v1008, 0
      %v1102 = vsel %vm380, %v1009, 0
      %v1105 = vsel %vm380, %v1010, 0
      %v1108 = vsel %vm380, %v1011, 0
      %v1111 = vsel %vm380, %v1012, 0
      %1113 = vmatpush.msra.mxu0 0.0
      %1114 = vmatpush.msra.mxu0 0.0
      %1115 = vmatpush.msra.mxu0 0.0
      %1116 = vmatpush.msra.mxu0 0.0
      %1117 = vmatpush.msra.mxu0 0.0
      %1118 = vmatpush.msra.mxu0 0.0
      %1119 = vmatpush.msra.mxu0 0.0
      %1120 = vmatpush.msra.mxu0 0.0
      %1121 = vmatpush.msra.mxu0 0.0
      %1122 = vmatpush.msra.mxu0 0.0
      %1123 = vmatpush.msra.mxu0 0.0
      %1124 = vmatpush.msra.mxu0 0.0
      %1125 = vmatpush.msra.mxu0 0.0
      %1126 = vmatpush.msra.mxu0 0.0
      %1127 = vmatpush.msra.mxu0 0.0
      %1128 = vmatpush.msra.mxu0 %v1016
      %1129 = vmatmul.f32.gmra.mxu0 %v1018
      %v1130 = vpop.f32.mrf.mxu0
      %v1131 = vadd.f32 0.0, %v1130
      %1132 = vmatmul.f32.gmra.mxu0 %v1021
      %v1133 = vpop.f32.mrf.mxu0
      %v1134 = vadd.f32 0.0, %v1133
      %1135 = vmatmul.f32.gmra.mxu0 %v1024
      %v1136 = vpop.f32.mrf.mxu0
      %v1137 = vadd.f32 0.0, %v1136
      %1138 = vmatmul.f32.gmra.mxu0 %v1027
      %v1139 = vpop.f32.mrf.mxu0
      %v1140 = vadd.f32 0.0, %v1139
      %1141 = vmatmul.f32.gmra.mxu0 %v1030
      %v1142 = vpop.f32.mrf.mxu0
      %v1143 = vadd.f32 0.0, %v1142
      %1144 = vmatmul.f32.gmra.mxu0 %v1033
      %v1145 = vpop.f32.mrf.mxu0
      %v1146 = vadd.f32 0.0, %v1145
      %1147 = vmatmul.f32.gmra.mxu0 %v1036
      %v1148 = vpop.f32.mrf.mxu0
      %v1149 = vadd.f32 0.0, %v1148
      %1150 = vmatmul.f32.gmra.mxu0 %v1039
      %v1151 = vpop.f32.mrf.mxu0
      %v1152 = vadd.f32 0.0, %v1151
      %1153 = vmatmul.f32.gmra.mxu0 %v1042
      %v1154 = vpop.f32.mrf.mxu0
      %v1155 = vadd.f32 0.0, %v1154
      %1156 = vmatmul.f32.gmra.mxu0 %v1045
      %v1157 = vpop.f32.mrf.mxu0
      %v1158 = vadd.f32 0.0, %v1157
      %1159 = vmatmul.f32.gmra.mxu0 %v1048
      %v1160 = vpop.f32.mrf.mxu0
      %v1161 = vadd.f32 0.0, %v1160
      %1162 = vmatmul.f32.gmra.mxu0 %v1051
      %v1163 = vpop.f32.mrf.mxu0
      %v1164 = vadd.f32 0.0, %v1163
      %1165 = vmatmul.f32.gmra.mxu0 %v1054
      %v1166 = vpop.f32.mrf.mxu0
      %v1167 = vadd.f32 0.0, %v1166
      %1168 = vmatmul.f32.gmra.mxu0 %v1057
      %v1169 = vpop.f32.mrf.mxu0
      %v1170 = vadd.f32 0.0, %v1169
      %1171 = vmatmul.f32.gmra.mxu0 %v1060
      %v1172 = vpop.f32.mrf.mxu0
      %v1173 = vadd.f32 0.0, %v1172
      %1174 = vmatmul.f32.gmra.mxu0 %v1063
      %v1175 = vpop.f32.mrf.mxu0
      %v1176 = vadd.f32 0.0, %v1175
      %1177 = vmatmul.f32.gmra.mxu0 %v1066
      %v1178 = vpop.f32.mrf.mxu0
      %v1179 = vadd.f32 0.0, %v1178
      %1180 = vmatmul.f32.gmra.mxu0 %v1069
      %v1181 = vpop.f32.mrf.mxu0
      %v1182 = vadd.f32 0.0, %v1181
      %1183 = vmatmul.f32.gmra.mxu0 %v1072
      %v1184 = vpop.f32.mrf.mxu0
      %v1185 = vadd.f32 0.0, %v1184
      %1186 = vmatmul.f32.gmra.mxu0 %v1075
      %v1187 = vpop.f32.mrf.mxu0
      %v1188 = vadd.f32 0.0, %v1187
      %1189 = vmatmul.f32.gmra.mxu0 %v1078
      %v1190 = vpop.f32.mrf.mxu0
      %v1191 = vadd.f32 0.0, %v1190
      %1192 = vmatmul.f32.gmra.mxu0 %v1081
      %v1193 = vpop.f32.mrf.mxu0
      %v1194 = vadd.f32 0.0, %v1193
      %1195 = vmatmul.f32.gmra.mxu0 %v1084
      %v1196 = vpop.f32.mrf.mxu0
      %v1197 = vadd.f32 0.0, %v1196
      %1198 = vmatmul.f32.gmra.mxu0 %v1087
      %v1199 = vpop.f32.mrf.mxu0
      %v1200 = vadd.f32 0.0, %v1199
      %1201 = vmatmul.f32.gmra.mxu0 %v1090
      %v1202 = vpop.f32.mrf.mxu0
      %v1203 = vadd.f32 0.0, %v1202
      %1204 = vmatmul.f32.gmra.mxu0 %v1093
      %v1205 = vpop.f32.mrf.mxu0
      %v1206 = vadd.f32 0.0, %v1205
      %1207 = vmatmul.f32.gmra.mxu0 %v1096
      %v1208 = vpop.f32.mrf.mxu0
      %v1209 = vadd.f32 0.0, %v1208
      %1210 = vmatmul.f32.gmra.mxu0 %v1099
      %v1211 = vpop.f32.mrf.mxu0
      %v1212 = vadd.f32 0.0, %v1211
      %1213 = vmatmul.f32.gmra.mxu0 %v1102
      %v1214 = vpop.f32.mrf.mxu0
      %v1215 = vadd.f32 0.0, %v1214
      %1216 = vmatmul.f32.gmra.mxu0 %v1105
      %v1217 = vpop.f32.mrf.mxu0
      %v1218 = vadd.f32 0.0, %v1217
      %1219 = vmatmul.f32.gmra.mxu0 %v1108
      %v1220 = vpop.f32.mrf.mxu0
      %v1221 = vadd.f32 0.0, %v1220
      %1222 = vmatmul.f32.gmra.mxu0 %v1111
      %v1223 = vpop.f32.mrf.mxu0
      %v1224 = vadd.f32 0.0, %v1223
      %1225 = vdwg.mxu0
      %v1226 = vadd.f32 %v886, %v1131
      %v1227 = vadd.f32 %v889, %v1134
      %v1228 = vadd.f32 %v892, %v1137
      %v1229 = vadd.f32 %v895, %v1140
      %v1230 = vadd.f32 %v898, %v1143
      %v1231 = vadd.f32 %v901, %v1146
      %v1232 = vadd.f32 %v904, %v1149
      %v1233 = vadd.f32 %v907, %v1152
      %v1234 = vadd.f32 %v910, %v1155
      %v1235 = vadd.f32 %v913, %v1158
      %v1236 = vadd.f32 %v916, %v1161
      %v1237 = vadd.f32 %v919, %v1164
      %v1238 = vadd.f32 %v922, %v1167
      %v1239 = vadd.f32 %v925, %v1170
      %v1240 = vadd.f32 %v928, %v1173
      %v1241 = vadd.f32 %v931, %v1176
      %v1242 = vadd.f32 %v934, %v1179
      %v1243 = vadd.f32 %v937, %v1182
      %v1244 = vadd.f32 %v940, %v1185
      %v1245 = vadd.f32 %v943, %v1188
      %v1246 = vadd.f32 %v946, %v1191
      %v1247 = vadd.f32 %v949, %v1194
      %v1248 = vadd.f32 %v952, %v1197
      %v1249 = vadd.f32 %v955, %v1200
      %v1250 = vadd.f32 %v958, %v1203
      %v1251 = vadd.f32 %v961, %v1206
      %v1252 = vadd.f32 %v964, %v1209
      %v1253 = vadd.f32 %v967, %v1212
      %v1254 = vadd.f32 %v970, %v1215
      %v1255 = vadd.f32 %v973, %v1218
      %v1256 = vadd.f32 %v976, %v1221
      %v1257 = vadd.f32 %v979, %v1224
      %v1258 = vld [vmem:[%s458] sm:$0xff]
      %v1259 = vld [vmem:[%s458 + $0x8] sm:$0xff]
      %v1260 = vld [vmem:[%s458 + $0x18] sm:$0xff]
      %v1261 = vld [vmem:[%s458 + $0x20] sm:$0xff]
      %v1262 = vld [vmem:[%s458 + $0x30] sm:$0xff]
      %v1263 = vld [vmem:[%s458 + $0x38] sm:$0xff]
      %v1264 = vld [vmem:[%s458 + $0x48] sm:$0xff]
      %v1265 = vld [vmem:[%s458 + $0x50] sm:$0xff]
      %v1266 = vld [vmem:[%s458 + $0x60] sm:$0xff]
      %v1267 = vld [vmem:[%s458 + $0x68] sm:$0xff]
      %v1268 = vld [vmem:[%s458 + $0x78] sm:$0xff]
      %v1269 = vld [vmem:[%s458 + $0x80] sm:$0xff]
      %v1270 = vld [vmem:[%s458 + $0x90] sm:$0xff]
      %v1271 = vld [vmem:[%s458 + $0x98] sm:$0xff]
      %v1272 = vld [vmem:[%s458 + $0xa8] sm:$0xff]
      %v1273 = vld [vmem:[%s458 + $0xb0] sm:$0xff]
      %v1274 = vld [vmem:[%s458 + $0xc0] sm:$0xff]
      %v1275 = vld [vmem:[%s458 + $0xc8] sm:$0xff]
      %v1276 = vld [vmem:[%s458 + $0xd8] sm:$0xff]
      %v1277 = vld [vmem:[%s458 + $0xe0] sm:$0xff]
      %v1278 = vld [vmem:[%s458 + $0xf0] sm:$0xff]
      %v1279 = vld [vmem:[%s458 + $0xf8] sm:$0xff]
      %v1280 = vld [vmem:[%s458 + $0x108] sm:$0xff]
      %v1281 = vld [vmem:[%s458 + $0x110] sm:$0xff]
      %v1282 = vld [vmem:[%s458 + $0x120] sm:$0xff]
      %v1283 = vld [vmem:[%s458 + $0x128] sm:$0xff]
      %v1284 = vld [vmem:[%s458 + $0x138] sm:$0xff]
      %v1285 = vld [vmem:[%s458 + $0x140] sm:$0xff]
      %v1286 = vld [vmem:[%s458 + $0x150] sm:$0xff]
      %v1287 = vld [vmem:[%s458 + $0x158] sm:$0xff]
      %v1288 = vld [vmem:[%s458 + $0x168] sm:$0xff]
      %v1289 = vld [vmem:[%s458 + $0x170] sm:$0xff]
      %s1290 = sadd.s32 %s523, 3
      %s1291 = smul.u32 %s1290, 8
      %s1292 = scalar_lea.vmem %s301, %s1291
      %v1293 = vld [vmem:[%s1292] sm:$0xff]
      %v1295 = vsel %vm380, %v1258, 0
      %v1298 = vsel %vm380, %v1259, 0
      %v1301 = vsel %vm380, %v1260, 0
      %v1304 = vsel %vm380, %v1261, 0
      %v1307 = vsel %vm380, %v1262, 0
      %v1310 = vsel %vm380, %v1263, 0
      %v1313 = vsel %vm380, %v1264, 0
      %v1316 = vsel %vm380, %v1265, 0
      %v1319 = vsel %vm380, %v1266, 0
      %v1322 = vsel %vm380, %v1267, 0
      %v1325 = vsel %vm380, %v1268, 0
      %v1328 = vsel %vm380, %v1269, 0
      %v1331 = vsel %vm380, %v1270, 0
      %v1334 = vsel %vm380, %v1271, 0
      %v1337 = vsel %vm380, %v1272, 0
      %v1340 = vsel %vm380, %v1273, 0
      %v1343 = vsel %vm380, %v1274, 0
      %v1346 = vsel %vm380, %v1275, 0
      %v1349 = vsel %vm380, %v1276, 0
      %v1352 = vsel %vm380, %v1277, 0
      %v1355 = vsel %vm380, %v1278, 0
      %v1358 = vsel %vm380, %v1279, 0
      %v1361 = vsel %vm380, %v1280, 0
      %v1364 = vsel %vm380, %v1281, 0
      %v1367 = vsel %vm380, %v1282, 0
      %v1370 = vsel %vm380, %v1283, 0
      %v1373 = vsel %vm380, %v1284, 0
      %v1376 = vsel %vm380, %v1285, 0
      %v1379 = vsel %vm380, %v1286, 0
      %v1382 = vsel %vm380, %v1287, 0
      %v1385 = vsel %vm380, %v1288, 0
      %v1388 = vsel %vm380, %v1289, 0
      %1390 = vmatpush.msra.mxu0 0.0
      %1391 = vmatpush.msra.mxu0 0.0
      %1392 = vmatpush.msra.mxu0 0.0
      %1393 = vmatpush.msra.mxu0 0.0
      %1394 = vmatpush.msra.mxu0 0.0
      %1395 = vmatpush.msra.mxu0 0.0
      %1396 = vmatpush.msra.mxu0 0.0
      %1397 = vmatpush.msra.mxu0 0.0
      %1398 = vmatpush.msra.mxu0 0.0
      %1399 = vmatpush.msra.mxu0 0.0
      %1400 = vmatpush.msra.mxu0 0.0
      %1401 = vmatpush.msra.mxu0 0.0
      %1402 = vmatpush.msra.mxu0 0.0
      %1403 = vmatpush.msra.mxu0 0.0
      %1404 = vmatpush.msra.mxu0 0.0
      %1405 = vmatpush.msra.mxu0 %v1293
      %1406 = vmatmul.f32.gmra.mxu0 %v1295
      %v1407 = vpop.f32.mrf.mxu0
      %v1408 = vadd.f32 0.0, %v1407
      %1409 = vmatmul.f32.gmra.mxu0 %v1298
      %v1410 = vpop.f32.mrf.mxu0
      %v1411 = vadd.f32 0.0, %v1410
      %1412 = vmatmul.f32.gmra.mxu0 %v1301
      %v1413 = vpop.f32.mrf.mxu0
      %v1414 = vadd.f32 0.0, %v1413
      %1415 = vmatmul.f32.gmra.mxu0 %v1304
      %v1416 = vpop.f32.mrf.mxu0
      %v1417 = vadd.f32 0.0, %v1416
      %1418 = vmatmul.f32.gmra.mxu0 %v1307
      %v1419 = vpop.f32.mrf.mxu0
      %v1420 = vadd.f32 0.0, %v1419
      %1421 = vmatmul.f32.gmra.mxu0 %v1310
      %v1422 = vpop.f32.mrf.mxu0
      %v1423 = vadd.f32 0.0, %v1422
      %1424 = vmatmul.f32.gmra.mxu0 %v1313
      %v1425 = vpop.f32.mrf.mxu0
      %v1426 = vadd.f32 0.0, %v1425
      %1427 = vmatmul.f32.gmra.mxu0 %v1316
      %v1428 = vpop.f32.mrf.mxu0
      %v1429 = vadd.f32 0.0, %v1428
      %1430 = vmatmul.f32.gmra.mxu0 %v1319
      %v1431 = vpop.f32.mrf.mxu0
      %v1432 = vadd.f32 0.0, %v1431
      %1433 = vmatmul.f32.gmra.mxu0 %v1322
      %v1434 = vpop.f32.mrf.mxu0
      %v1435 = vadd.f32 0.0, %v1434
      %1436 = vmatmul.f32.gmra.mxu0 %v1325
      %v1437 = vpop.f32.mrf.mxu0
      %v1438 = vadd.f32 0.0, %v1437
      %1439 = vmatmul.f32.gmra.mxu0 %v1328
      %v1440 = vpop.f32.mrf.mxu0
      %v1441 = vadd.f32 0.0, %v1440
      %1442 = vmatmul.f32.gmra.mxu0 %v1331
      %v1443 = vpop.f32.mrf.mxu0
      %v1444 = vadd.f32 0.0, %v1443
      %1445 = vmatmul.f32.gmra.mxu0 %v1334
      %v1446 = vpop.f32.mrf.mxu0
      %v1447 = vadd.f32 0.0, %v1446
      %1448 = vmatmul.f32.gmra.mxu0 %v1337
      %v1449 = vpop.f32.mrf.mxu0
      %v1450 = vadd.f32 0.0, %v1449
      %1451 = vmatmul.f32.gmra.mxu0 %v1340
      %v1452 = vpop.f32.mrf.mxu0
      %v1453 = vadd.f32 0.0, %v1452
      %1454 = vmatmul.f32.gmra.mxu0 %v1343
      %v1455 = vpop.f32.mrf.mxu0
      %v1456 = vadd.f32 0.0, %v1455
      %1457 = vmatmul.f32.gmra.mxu0 %v1346
      %v1458 = vpop.f32.mrf.mxu0
      %v1459 = vadd.f32 0.0, %v1458
      %1460 = vmatmul.f32.gmra.mxu0 %v1349
      %v1461 = vpop.f32.mrf.mxu0
      %v1462 = vadd.f32 0.0, %v1461
      %1463 = vmatmul.f32.gmra.mxu0 %v1352
      %v1464 = vpop.f32.mrf.mxu0
      %v1465 = vadd.f32 0.0, %v1464
      %1466 = vmatmul.f32.gmra.mxu0 %v1355
      %v1467 = vpop.f32.mrf.mxu0
      %v1468 = vadd.f32 0.0, %v1467
      %1469 = vmatmul.f32.gmra.mxu0 %v1358
      %v1470 = vpop.f32.mrf.mxu0
      %v1471 = vadd.f32 0.0, %v1470
      %1472 = vmatmul.f32.gmra.mxu0 %v1361
      %v1473 = vpop.f32.mrf.mxu0
      %v1474 = vadd.f32 0.0, %v1473
      %1475 = vmatmul.f32.gmra.mxu0 %v1364
      %v1476 = vpop.f32.mrf.mxu0
      %v1477 = vadd.f32 0.0, %v1476
      %1478 = vmatmul.f32.gmra.mxu0 %v1367
      %v1479 = vpop.f32.mrf.mxu0
      %v1480 = vadd.f32 0.0, %v1479
      %1481 = vmatmul.f32.gmra.mxu0 %v1370
      %v1482 = vpop.f32.mrf.mxu0
      %v1483 = vadd.f32 0.0, %v1482
      %1484 = vmatmul.f32.gmra.mxu0 %v1373
      %v1485 = vpop.f32.mrf.mxu0
      %v1486 = vadd.f32 0.0, %v1485
      %1487 = vmatmul.f32.gmra.mxu0 %v1376
      %v1488 = vpop.f32.mrf.mxu0
      %v1489 = vadd.f32 0.0, %v1488
      %1490 = vmatmul.f32.gmra.mxu0 %v1379
      %v1491 = vpop.f32.mrf.mxu0
      %v1492 = vadd.f32 0.0, %v1491
      %1493 = vmatmul.f32.gmra.mxu0 %v1382
      %v1494 = vpop.f32.mrf.mxu0
      %v1495 = vadd.f32 0.0, %v1494
      %1496 = vmatmul.f32.gmra.mxu0 %v1385
      %v1497 = vpop.f32.mrf.mxu0
      %v1498 = vadd.f32 0.0, %v1497
      %1499 = vmatmul.f32.gmra.mxu0 %v1388
      %v1500 = vpop.f32.mrf.mxu0
      %v1501 = vadd.f32 0.0, %v1500
      %1502 = vdwg.mxu0
      %v1503 = vadd.f32 %v1226, %v1408
      %v1504 = vadd.f32 %v1227, %v1411
      %v1505 = vadd.f32 %v1228, %v1414
      %v1506 = vadd.f32 %v1229, %v1417
      %v1507 = vadd.f32 %v1230, %v1420
      %v1508 = vadd.f32 %v1231, %v1423
      %v1509 = vadd.f32 %v1232, %v1426
      %v1510 = vadd.f32 %v1233, %v1429
      %v1511 = vadd.f32 %v1234, %v1432
      %v1512 = vadd.f32 %v1235, %v1435
      %v1513 = vadd.f32 %v1236, %v1438
      %v1514 = vadd.f32 %v1237, %v1441
      %v1515 = vadd.f32 %v1238, %v1444
      %v1516 = vadd.f32 %v1239, %v1447
      %v1517 = vadd.f32 %v1240, %v1450
      %v1518 = vadd.f32 %v1241, %v1453
      %v1519 = vadd.f32 %v1242, %v1456
      %v1520 = vadd.f32 %v1243, %v1459
      %v1521 = vadd.f32 %v1244, %v1462
      %v1522 = vadd.f32 %v1245, %v1465
      %v1523 = vadd.f32 %v1246, %v1468
      %v1524 = vadd.f32 %v1247, %v1471
      %v1525 = vadd.f32 %v1248, %v1474
      %v1526 = vadd.f32 %v1249, %v1477
      %v1527 = vadd.f32 %v1250, %v1480
      %v1528 = vadd.f32 %v1251, %v1483
      %v1529 = vadd.f32 %v1252, %v1486
      %v1530 = vadd.f32 %v1253, %v1489
      %v1531 = vadd.f32 %v1254, %v1492
      %v1532 = vadd.f32 %v1255, %v1495
      %v1533 = vadd.f32 %v1256, %v1498
      %v1534 = vadd.f32 %v1257, %v1501
      %v1535 = vld [vmem:[%s458 + $0x1] sm:$0xff]
      %v1536 = vld [vmem:[%s458 + $0x9] sm:$0xff]
      %v1537 = vld [vmem:[%s458 + $0x19] sm:$0xff]
      %v1538 = vld [vmem:[%s458 + $0x21] sm:$0xff]
      %v1539 = vld [vmem:[%s458 + $0x31] sm:$0xff]
      %v1540 = vld [vmem:[%s458 + $0x39] sm:$0xff]
      %v1541 = vld [vmem:[%s458 + $0x49] sm:$0xff]
      %v1542 = vld [vmem:[%s458 + $0x51] sm:$0xff]
      %v1543 = vld [vmem:[%s458 + $0x61] sm:$0xff]
      %v1544 = vld [vmem:[%s458 + $0x69] sm:$0xff]
      %v1545 = vld [vmem:[%s458 + $0x79] sm:$0xff]
      %v1546 = vld [vmem:[%s458 + $0x81] sm:$0xff]
      %v1547 = vld [vmem:[%s458 + $0x91] sm:$0xff]
      %v1548 = vld [vmem:[%s458 + $0x99] sm:$0xff]
      %v1549 = vld [vmem:[%s458 + $0xa9] sm:$0xff]
      %v1550 = vld [vmem:[%s458 + $0xb1] sm:$0xff]
      %v1551 = vld [vmem:[%s458 + $0xc1] sm:$0xff]
      %v1552 = vld [vmem:[%s458 + $0xc9] sm:$0xff]
      %v1553 = vld [vmem:[%s458 + $0xd9] sm:$0xff]
      %v1554 = vld [vmem:[%s458 + $0xe1] sm:$0xff]
      %v1555 = vld [vmem:[%s458 + $0xf1] sm:$0xff]
      %v1556 = vld [vmem:[%s458 + $0xf9] sm:$0xff]
      %v1557 = vld [vmem:[%s458 + $0x109] sm:$0xff]
      %v1558 = vld [vmem:[%s458 + $0x111] sm:$0xff]
      %v1559 = vld [vmem:[%s458 + $0x121] sm:$0xff]
      %v1560 = vld [vmem:[%s458 + $0x129] sm:$0xff]
      %v1561 = vld [vmem:[%s458 + $0x139] sm:$0xff]
      %v1562 = vld [vmem:[%s458 + $0x141] sm:$0xff]
      %v1563 = vld [vmem:[%s458 + $0x151] sm:$0xff]
      %v1564 = vld [vmem:[%s458 + $0x159] sm:$0xff]
      %v1565 = vld [vmem:[%s458 + $0x169] sm:$0xff]
      %v1566 = vld [vmem:[%s458 + $0x171] sm:$0xff]
      %s1567 = sadd.s32 %s523, 4
      %s1568 = smul.u32 %s1567, 8
      %s1569 = scalar_lea.vmem %s301, %s1568
      %v1570 = vld [vmem:[%s1569] sm:$0xff]
      %v1572 = vsel %vm380, %v1535, 0
      %v1575 = vsel %vm380, %v1536, 0
      %v1578 = vsel %vm380, %v1537, 0
      %v1581 = vsel %vm380, %v1538, 0
      %v1584 = vsel %vm380, %v1539, 0
      %v1587 = vsel %vm380, %v1540, 0
      %v1590 = vsel %vm380, %v1541, 0
      %v1593 = vsel %vm380, %v1542, 0
      %v1596 = vsel %vm380, %v1543, 0
      %v1599 = vsel %vm380, %v1544, 0
      %v1602 = vsel %vm380, %v1545, 0
      %v1605 = vsel %vm380, %v1546, 0
      %v1608 = vsel %vm380, %v1547, 0
      %v1611 = vsel %vm380, %v1548, 0
      %v1614 = vsel %vm380, %v1549, 0
      %v1617 = vsel %vm380, %v1550, 0
      %v1620 = vsel %vm380, %v1551, 0
      %v1623 = vsel %vm380, %v1552, 0
      %v1626 = vsel %vm380, %v1553, 0
      %v1629 = vsel %vm380, %v1554, 0
      %v1632 = vsel %vm380, %v1555, 0
      %v1635 = vsel %vm380, %v1556, 0
      %v1638 = vsel %vm380, %v1557, 0
      %v1641 = vsel %vm380, %v1558, 0
      %v1644 = vsel %vm380, %v1559, 0
      %v1647 = vsel %vm380, %v1560, 0
      %v1650 = vsel %vm380, %v1561, 0
      %v1653 = vsel %vm380, %v1562, 0
      %v1656 = vsel %vm380, %v1563, 0
      %v1659 = vsel %vm380, %v1564, 0
      %v1662 = vsel %vm380, %v1565, 0
      %v1665 = vsel %vm380, %v1566, 0
      %1667 = vmatpush.msra.mxu0 0.0
      %1668 = vmatpush.msra.mxu0 0.0
      %1669 = vmatpush.msra.mxu0 0.0
      %1670 = vmatpush.msra.mxu0 0.0
      %1671 = vmatpush.msra.mxu0 0.0
      %1672 = vmatpush.msra.mxu0 0.0
      %1673 = vmatpush.msra.mxu0 0.0
      %1674 = vmatpush.msra.mxu0 0.0
      %1675 = vmatpush.msra.mxu0 0.0
      %1676 = vmatpush.msra.mxu0 0.0
      %1677 = vmatpush.msra.mxu0 0.0
      %1678 = vmatpush.msra.mxu0 0.0
      %1679 = vmatpush.msra.mxu0 0.0
      %1680 = vmatpush.msra.mxu0 0.0
      %1681 = vmatpush.msra.mxu0 0.0
      %1682 = vmatpush.msra.mxu0 %v1570
      %1683 = vmatmul.f32.gmra.mxu0 %v1572
      %v1684 = vpop.f32.mrf.mxu0
      %v1685 = vadd.f32 0.0, %v1684
      %1686 = vmatmul.f32.gmra.mxu0 %v1575
      %v1687 = vpop.f32.mrf.mxu0
      %v1688 = vadd.f32 0.0, %v1687
      %1689 = vmatmul.f32.gmra.mxu0 %v1578
      %v1690 = vpop.f32.mrf.mxu0
      %v1691 = vadd.f32 0.0, %v1690
      %1692 = vmatmul.f32.gmra.mxu0 %v1581
      %v1693 = vpop.f32.mrf.mxu0
      %v1694 = vadd.f32 0.0, %v1693
      %1695 = vmatmul.f32.gmra.mxu0 %v1584
      %v1696 = vpop.f32.mrf.mxu0
      %v1697 = vadd.f32 0.0, %v1696
      %1698 = vmatmul.f32.gmra.mxu0 %v1587
      %v1699 = vpop.f32.mrf.mxu0
      %v1700 = vadd.f32 0.0, %v1699
      %1701 = vmatmul.f32.gmra.mxu0 %v1590
      %v1702 = vpop.f32.mrf.mxu0
      %v1703 = vadd.f32 0.0, %v1702
      %1704 = vmatmul.f32.gmra.mxu0 %v1593
      %v1705 = vpop.f32.mrf.mxu0
      %v1706 = vadd.f32 0.0, %v1705
      %1707 = vmatmul.f32.gmra.mxu0 %v1596
      %v1708 = vpop.f32.mrf.mxu0
      %v1709 = vadd.f32 0.0, %v1708
      %1710 = vmatmul.f32.gmra.mxu0 %v1599
      %v1711 = vpop.f32.mrf.mxu0
      %v1712 = vadd.f32 0.0, %v1711
      %1713 = vmatmul.f32.gmra.mxu0 %v1602
      %v1714 = vpop.f32.mrf.mxu0
      %v1715 = vadd.f32 0.0, %v1714
      %1716 = vmatmul.f32.gmra.mxu0 %v1605
      %v1717 = vpop.f32.mrf.mxu0
      %v1718 = vadd.f32 0.0, %v1717
      %1719 = vmatmul.f32.gmra.mxu0 %v1608
      %v1720 = vpop.f32.mrf.mxu0
      %v1721 = vadd.f32 0.0, %v1720
      %1722 = vmatmul.f32.gmra.mxu0 %v1611
      %v1723 = vpop.f32.mrf.mxu0
      %v1724 = vadd.f32 0.0, %v1723
      %1725 = vmatmul.f32.gmra.mxu0 %v1614
      %v1726 = vpop.f32.mrf.mxu0
      %v1727 = vadd.f32 0.0, %v1726
      %1728 = vmatmul.f32.gmra.mxu0 %v1617
      %v1729 = vpop.f32.mrf.mxu0
      %v1730 = vadd.f32 0.0, %v1729
      %1731 = vmatmul.f32.gmra.mxu0 %v1620
      %v1732 = vpop.f32.mrf.mxu0
      %v1733 = vadd.f32 0.0, %v1732
      %1734 = vmatmul.f32.gmra.mxu0 %v1623
      %v1735 = vpop.f32.mrf.mxu0
      %v1736 = vadd.f32 0.0, %v1735
      %1737 = vmatmul.f32.gmra.mxu0 %v1626
      %v1738 = vpop.f32.mrf.mxu0
      %v1739 = vadd.f32 0.0, %v1738
      %1740 = vmatmul.f32.gmra.mxu0 %v1629
      %v1741 = vpop.f32.mrf.mxu0
      %v1742 = vadd.f32 0.0, %v1741
      %1743 = vmatmul.f32.gmra.mxu0 %v1632
      %v1744 = vpop.f32.mrf.mxu0
      %v1745 = vadd.f32 0.0, %v1744
      %1746 = vmatmul.f32.gmra.mxu0 %v1635
      %v1747 = vpop.f32.mrf.mxu0
      %v1748 = vadd.f32 0.0, %v1747
      %1749 = vmatmul.f32.gmra.mxu0 %v1638
      %v1750 = vpop.f32.mrf.mxu0
      %v1751 = vadd.f32 0.0, %v1750
      %1752 = vmatmul.f32.gmra.mxu0 %v1641
      %v1753 = vpop.f32.mrf.mxu0
      %v1754 = vadd.f32 0.0, %v1753
      %1755 = vmatmul.f32.gmra.mxu0 %v1644
      %v1756 = vpop.f32.mrf.mxu0
      %v1757 = vadd.f32 0.0, %v1756
      %1758 = vmatmul.f32.gmra.mxu0 %v1647
      %v1759 = vpop.f32.mrf.mxu0
      %v1760 = vadd.f32 0.0, %v1759
      %1761 = vmatmul.f32.gmra.mxu0 %v1650
      %v1762 = vpop.f32.mrf.mxu0
      %v1763 = vadd.f32 0.0, %v1762
      %1764 = vmatmul.f32.gmra.mxu0 %v1653
      %v1765 = vpop.f32.mrf.mxu0
      %v1766 = vadd.f32 0.0, %v1765
      %1767 = vmatmul.f32.gmra.mxu0 %v1656
      %v1768 = vpop.f32.mrf.mxu0
      %v1769 = vadd.f32 0.0, %v1768
      %1770 = vmatmul.f32.gmra.mxu0 %v1659
      %v1771 = vpop.f32.mrf.mxu0
      %v1772 = vadd.f32 0.0, %v1771
      %1773 = vmatmul.f32.gmra.mxu0 %v1662
      %v1774 = vpop.f32.mrf.mxu0
      %v1775 = vadd.f32 0.0, %v1774
      %1776 = vmatmul.f32.gmra.mxu0 %v1665
      %v1777 = vpop.f32.mrf.mxu0
      %v1778 = vadd.f32 0.0, %v1777
      %1779 = vdwg.mxu0
      %v1780 = vadd.f32 %v1503, %v1685
      %v1781 = vadd.f32 %v1504, %v1688
      %v1782 = vadd.f32 %v1505, %v1691
      %v1783 = vadd.f32 %v1506, %v1694
      %v1784 = vadd.f32 %v1507, %v1697
      %v1785 = vadd.f32 %v1508, %v1700
      %v1786 = vadd.f32 %v1509, %v1703
      %v1787 = vadd.f32 %v1510, %v1706
      %v1788 = vadd.f32 %v1511, %v1709
      %v1789 = vadd.f32 %v1512, %v1712
      %v1790 = vadd.f32 %v1513, %v1715
      %v1791 = vadd.f32 %v1514, %v1718
      %v1792 = vadd.f32 %v1515, %v1721
      %v1793 = vadd.f32 %v1516, %v1724
      %v1794 = vadd.f32 %v1517, %v1727
      %v1795 = vadd.f32 %v1518, %v1730
      %v1796 = vadd.f32 %v1519, %v1733
      %v1797 = vadd.f32 %v1520, %v1736
      %v1798 = vadd.f32 %v1521, %v1739
      %v1799 = vadd.f32 %v1522, %v1742
      %v1800 = vadd.f32 %v1523, %v1745
      %v1801 = vadd.f32 %v1524, %v1748
      %v1802 = vadd.f32 %v1525, %v1751
      %v1803 = vadd.f32 %v1526, %v1754
      %v1804 = vadd.f32 %v1527, %v1757
      %v1805 = vadd.f32 %v1528, %v1760
      %v1806 = vadd.f32 %v1529, %v1763
      %v1807 = vadd.f32 %v1530, %v1766
      %v1808 = vadd.f32 %v1531, %v1769
      %v1809 = vadd.f32 %v1532, %v1772
      %v1810 = vadd.f32 %v1533, %v1775
      %v1811 = vadd.f32 %v1534, %v1778
      %v1812 = vld [vmem:[%s458 + $0x2] sm:$0xff]
      %v1813 = vld [vmem:[%s458 + $0xa] sm:$0xff]
      %v1814 = vld [vmem:[%s458 + $0x1a] sm:$0xff]
      %v1815 = vld [vmem:[%s458 + $0x22] sm:$0xff]
      %v1816 = vld [vmem:[%s458 + $0x32] sm:$0xff]
      %v1817 = vld [vmem:[%s458 + $0x3a] sm:$0xff]
      %v1818 = vld [vmem:[%s458 + $0x4a] sm:$0xff]
      %v1819 = vld [vmem:[%s458 + $0x52] sm:$0xff]
      %v1820 = vld [vmem:[%s458 + $0x62] sm:$0xff]
      %v1821 = vld [vmem:[%s458 + $0x6a] sm:$0xff]
      %v1822 = vld [vmem:[%s458 + $0x7a] sm:$0xff]
      %v1823 = vld [vmem:[%s458 + $0x82] sm:$0xff]
      %v1824 = vld [vmem:[%s458 + $0x92] sm:$0xff]
      %v1825 = vld [vmem:[%s458 + $0x9a] sm:$0xff]
      %v1826 = vld [vmem:[%s458 + $0xaa] sm:$0xff]
      %v1827 = vld [vmem:[%s458 + $0xb2] sm:$0xff]
      %v1828 = vld [vmem:[%s458 + $0xc2] sm:$0xff]
      %v1829 = vld [vmem:[%s458 + $0xca] sm:$0xff]
      %v1830 = vld [vmem:[%s458 + $0xda] sm:$0xff]
      %v1831 = vld [vmem:[%s458 + $0xe2] sm:$0xff]
      %v1832 = vld [vmem:[%s458 + $0xf2] sm:$0xff]
      %v1833 = vld [vmem:[%s458 + $0xfa] sm:$0xff]
      %v1834 = vld [vmem:[%s458 + $0x10a] sm:$0xff]
      %v1835 = vld [vmem:[%s458 + $0x112] sm:$0xff]
      %v1836 = vld [vmem:[%s458 + $0x122] sm:$0xff]
      %v1837 = vld [vmem:[%s458 + $0x12a] sm:$0xff]
      %v1838 = vld [vmem:[%s458 + $0x13a] sm:$0xff]
      %v1839 = vld [vmem:[%s458 + $0x142] sm:$0xff]
      %v1840 = vld [vmem:[%s458 + $0x152] sm:$0xff]
      %v1841 = vld [vmem:[%s458 + $0x15a] sm:$0xff]
      %v1842 = vld [vmem:[%s458 + $0x16a] sm:$0xff]
      %v1843 = vld [vmem:[%s458 + $0x172] sm:$0xff]
      %s1844 = sadd.s32 %s523, 5
      %s1845 = smul.u32 %s1844, 8
      %s1846 = scalar_lea.vmem %s301, %s1845
      %v1847 = vld [vmem:[%s1846] sm:$0xff]
      %v1849 = vsel %vm380, %v1812, 0
      %v1852 = vsel %vm380, %v1813, 0
      %v1855 = vsel %vm380, %v1814, 0
      %v1858 = vsel %vm380, %v1815, 0
      %v1861 = vsel %vm380, %v1816, 0
      %v1864 = vsel %vm380, %v1817, 0
      %v1867 = vsel %vm380, %v1818, 0
      %v1870 = vsel %vm380, %v1819, 0
      %v1873 = vsel %vm380, %v1820, 0
      %v1876 = vsel %vm380, %v1821, 0
      %v1879 = vsel %vm380, %v1822, 0
      %v1882 = vsel %vm380, %v1823, 0
      %v1885 = vsel %vm380, %v1824, 0
      %v1888 = vsel %vm380, %v1825, 0
      %v1891 = vsel %vm380, %v1826, 0
      %v1894 = vsel %vm380, %v1827, 0
      %v1897 = vsel %vm380, %v1828, 0
      %v1900 = vsel %vm380, %v1829, 0
      %v1903 = vsel %vm380, %v1830, 0
      %v1906 = vsel %vm380, %v1831, 0
      %v1909 = vsel %vm380, %v1832, 0
      %v1912 = vsel %vm380, %v1833, 0
      %v1915 = vsel %vm380, %v1834, 0
      %v1918 = vsel %vm380, %v1835, 0
      %v1921 = vsel %vm380, %v1836, 0
      %v1924 = vsel %vm380, %v1837, 0
      %v1927 = vsel %vm380, %v1838, 0
      %v1930 = vsel %vm380, %v1839, 0
      %v1933 = vsel %vm380, %v1840, 0
      %v1936 = vsel %vm380, %v1841, 0
      %v1939 = vsel %vm380, %v1842, 0
      %v1942 = vsel %vm380, %v1843, 0
      %1944 = vmatpush.msra.mxu0 0.0
      %1945 = vmatpush.msra.mxu0 0.0
      %1946 = vmatpush.msra.mxu0 0.0
      %1947 = vmatpush.msra.mxu0 0.0
      %1948 = vmatpush.msra.mxu0 0.0
      %1949 = vmatpush.msra.mxu0 0.0
      %1950 = vmatpush.msra.mxu0 0.0
      %1951 = vmatpush.msra.mxu0 0.0
      %1952 = vmatpush.msra.mxu0 0.0
      %1953 = vmatpush.msra.mxu0 0.0
      %1954 = vmatpush.msra.mxu0 0.0
      %1955 = vmatpush.msra.mxu0 0.0
      %1956 = vmatpush.msra.mxu0 0.0
      %1957 = vmatpush.msra.mxu0 0.0
      %1958 = vmatpush.msra.mxu0 0.0
      %1959 = vmatpush.msra.mxu0 %v1847
      %1960 = vmatmul.f32.gmra.mxu0 %v1849
      %v1961 = vpop.f32.mrf.mxu0
      %v1962 = vadd.f32 0.0, %v1961
      %1963 = vmatmul.f32.gmra.mxu0 %v1852
      %v1964 = vpop.f32.mrf.mxu0
      %v1965 = vadd.f32 0.0, %v1964
      %1966 = vmatmul.f32.gmra.mxu0 %v1855
      %v1967 = vpop.f32.mrf.mxu0
      %v1968 = vadd.f32 0.0, %v1967
      %1969 = vmatmul.f32.gmra.mxu0 %v1858
      %v1970 = vpop.f32.mrf.mxu0
      %v1971 = vadd.f32 0.0, %v1970
      %1972 = vmatmul.f32.gmra.mxu0 %v1861
      %v1973 = vpop.f32.mrf.mxu0
      %v1974 = vadd.f32 0.0, %v1973
      %1975 = vmatmul.f32.gmra.mxu0 %v1864
      %v1976 = vpop.f32.mrf.mxu0
      %v1977 = vadd.f32 0.0, %v1976
      %1978 = vmatmul.f32.gmra.mxu0 %v1867
      %v1979 = vpop.f32.mrf.mxu0
      %v1980 = vadd.f32 0.0, %v1979
      %1981 = vmatmul.f32.gmra.mxu0 %v1870
      %v1982 = vpop.f32.mrf.mxu0
      %v1983 = vadd.f32 0.0, %v1982
      %1984 = vmatmul.f32.gmra.mxu0 %v1873
      %v1985 = vpop.f32.mrf.mxu0
      %v1986 = vadd.f32 0.0, %v1985
      %1987 = vmatmul.f32.gmra.mxu0 %v1876
      %v1988 = vpop.f32.mrf.mxu0
      %v1989 = vadd.f32 0.0, %v1988
      %1990 = vmatmul.f32.gmra.mxu0 %v1879
      %v1991 = vpop.f32.mrf.mxu0
      %v1992 = vadd.f32 0.0, %v1991
      %1993 = vmatmul.f32.gmra.mxu0 %v1882
      %v1994 = vpop.f32.mrf.mxu0
      %v1995 = vadd.f32 0.0, %v1994
      %1996 = vmatmul.f32.gmra.mxu0 %v1885
      %v1997 = vpop.f32.mrf.mxu0
      %v1998 = vadd.f32 0.0, %v1997
      %1999 = vmatmul.f32.gmra.mxu0 %v1888
      %v2000 = vpop.f32.mrf.mxu0
      %v2001 = vadd.f32 0.0, %v2000
      %2002 = vmatmul.f32.gmra.mxu0 %v1891
      %v2003 = vpop.f32.mrf.mxu0
      %v2004 = vadd.f32 0.0, %v2003
      %2005 = vmatmul.f32.gmra.mxu0 %v1894
      %v2006 = vpop.f32.mrf.mxu0
      %v2007 = vadd.f32 0.0, %v2006
      %2008 = vmatmul.f32.gmra.mxu0 %v1897
      %v2009 = vpop.f32.mrf.mxu0
      %v2010 = vadd.f32 0.0, %v2009
      %2011 = vmatmul.f32.gmra.mxu0 %v1900
      %v2012 = vpop.f32.mrf.mxu0
      %v2013 = vadd.f32 0.0, %v2012
      %2014 = vmatmul.f32.gmra.mxu0 %v1903
      %v2015 = vpop.f32.mrf.mxu0
      %v2016 = vadd.f32 0.0, %v2015
      %2017 = vmatmul.f32.gmra.mxu0 %v1906
      %v2018 = vpop.f32.mrf.mxu0
      %v2019 = vadd.f32 0.0, %v2018
      %2020 = vmatmul.f32.gmra.mxu0 %v1909
      %v2021 = vpop.f32.mrf.mxu0
      %v2022 = vadd.f32 0.0, %v2021
      %2023 = vmatmul.f32.gmra.mxu0 %v1912
      %v2024 = vpop.f32.mrf.mxu0
      %v2025 = vadd.f32 0.0, %v2024
      %2026 = vmatmul.f32.gmra.mxu0 %v1915
      %v2027 = vpop.f32.mrf.mxu0
      %v2028 = vadd.f32 0.0, %v2027
      %2029 = vmatmul.f32.gmra.mxu0 %v1918
      %v2030 = vpop.f32.mrf.mxu0
      %v2031 = vadd.f32 0.0, %v2030
      %2032 = vmatmul.f32.gmra.mxu0 %v1921
      %v2033 = vpop.f32.mrf.mxu0
      %v2034 = vadd.f32 0.0, %v2033
      %2035 = vmatmul.f32.gmra.mxu0 %v1924
      %v2036 = vpop.f32.mrf.mxu0
      %v2037 = vadd.f32 0.0, %v2036
      %2038 = vmatmul.f32.gmra.mxu0 %v1927
      %v2039 = vpop.f32.mrf.mxu0
      %v2040 = vadd.f32 0.0, %v2039
      %2041 = vmatmul.f32.gmra.mxu0 %v1930
      %v2042 = vpop.f32.mrf.mxu0
      %v2043 = vadd.f32 0.0, %v2042
      %2044 = vmatmul.f32.gmra.mxu0 %v1933
      %v2045 = vpop.f32.mrf.mxu0
      %v2046 = vadd.f32 0.0, %v2045
      %2047 = vmatmul.f32.gmra.mxu0 %v1936
      %v2048 = vpop.f32.mrf.mxu0
      %v2049 = vadd.f32 0.0, %v2048
      %2050 = vmatmul.f32.gmra.mxu0 %v1939
      %v2051 = vpop.f32.mrf.mxu0
      %v2052 = vadd.f32 0.0, %v2051
      %2053 = vmatmul.f32.gmra.mxu0 %v1942
      %v2054 = vpop.f32.mrf.mxu0
      %v2055 = vadd.f32 0.0, %v2054
      %2056 = vdwg.mxu0
      %v2057 = vadd.f32 %v1780, %v1962
      %v2058 = vadd.f32 %v1781, %v1965
      %v2059 = vadd.f32 %v1782, %v1968
      %v2060 = vadd.f32 %v1783, %v1971
      %v2061 = vadd.f32 %v1784, %v1974
      %v2062 = vadd.f32 %v1785, %v1977
      %v2063 = vadd.f32 %v1786, %v1980
      %v2064 = vadd.f32 %v1787, %v1983
      %v2065 = vadd.f32 %v1788, %v1986
      %v2066 = vadd.f32 %v1789, %v1989
      %v2067 = vadd.f32 %v1790, %v1992
      %v2068 = vadd.f32 %v1791, %v1995
      %v2069 = vadd.f32 %v1792, %v1998
      %v2070 = vadd.f32 %v1793, %v2001
      %v2071 = vadd.f32 %v1794, %v2004
      %v2072 = vadd.f32 %v1795, %v2007
      %v2073 = vadd.f32 %v1796, %v2010
      %v2074 = vadd.f32 %v1797, %v2013
      %v2075 = vadd.f32 %v1798, %v2016
      %v2076 = vadd.f32 %v1799, %v2019
      %v2077 = vadd.f32 %v1800, %v2022
      %v2078 = vadd.f32 %v1801, %v2025
      %v2079 = vadd.f32 %v1802, %v2028
      %v2080 = vadd.f32 %v1803, %v2031
      %v2081 = vadd.f32 %v1804, %v2034
      %v2082 = vadd.f32 %v1805, %v2037
      %v2083 = vadd.f32 %v1806, %v2040
      %v2084 = vadd.f32 %v1807, %v2043
      %v2085 = vadd.f32 %v1808, %v2046
      %v2086 = vadd.f32 %v1809, %v2049
      %v2087 = vadd.f32 %v1810, %v2052
      %v2088 = vadd.f32 %v1811, %v2055
      %s2089 = scalar_lea.vmem [#allocation2], 48
      %v2090 = vld [vmem:[%s2089] sm:$0xff]
      %v2091 = vld [vmem:[%s2089 + $0x8] sm:$0xff]
      %v2092 = vld [vmem:[%s2089 + $0x18] sm:$0xff]
      %v2093 = vld [vmem:[%s2089 + $0x20] sm:$0xff]
      %v2094 = vld [vmem:[%s2089 + $0x30] sm:$0xff]
      %v2095 = vld [vmem:[%s2089 + $0x38] sm:$0xff]
      %v2096 = vld [vmem:[%s2089 + $0x48] sm:$0xff]
      %v2097 = vld [vmem:[%s2089 + $0x50] sm:$0xff]
      %v2098 = vld [vmem:[%s2089 + $0x60] sm:$0xff]
      %v2099 = vld [vmem:[%s2089 + $0x68] sm:$0xff]
      %v2100 = vld [vmem:[%s2089 + $0x78] sm:$0xff]
      %v2101 = vld [vmem:[%s2089 + $0x80] sm:$0xff]
      %v2102 = vld [vmem:[%s2089 + $0x90] sm:$0xff]
      %v2103 = vld [vmem:[%s2089 + $0x98] sm:$0xff]
      %v2104 = vld [vmem:[%s2089 + $0xa8] sm:$0xff]
      %v2105 = vld [vmem:[%s2089 + $0xb0] sm:$0xff]
      %v2106 = vld [vmem:[%s2089 + $0xc0] sm:$0xff]
      %v2107 = vld [vmem:[%s2089 + $0xc8] sm:$0xff]
      %v2108 = vld [vmem:[%s2089 + $0xd8] sm:$0xff]
      %v2109 = vld [vmem:[%s2089 + $0xe0] sm:$0xff]
      %v2110 = vld [vmem:[%s2089 + $0xf0] sm:$0xff]
      %v2111 = vld [vmem:[%s2089 + $0xf8] sm:$0xff]
      %v2112 = vld [vmem:[%s2089 + $0x108] sm:$0xff]
      %v2113 = vld [vmem:[%s2089 + $0x110] sm:$0xff]
      %v2114 = vld [vmem:[%s2089 + $0x120] sm:$0xff]
      %v2115 = vld [vmem:[%s2089 + $0x128] sm:$0xff]
      %v2116 = vld [vmem:[%s2089 + $0x138] sm:$0xff]
      %v2117 = vld [vmem:[%s2089 + $0x140] sm:$0xff]
      %v2118 = vld [vmem:[%s2089 + $0x150] sm:$0xff]
      %v2119 = vld [vmem:[%s2089 + $0x158] sm:$0xff]
      %v2120 = vld [vmem:[%s2089 + $0x168] sm:$0xff]
      %v2121 = vld [vmem:[%s2089 + $0x170] sm:$0xff]
      %s2122 = sadd.s32 %s523, 6
      %s2123 = smul.u32 %s2122, 8
      %s2124 = scalar_lea.vmem %s301, %s2123
      %v2125 = vld [vmem:[%s2124] sm:$0xff]
      %v2127 = vsel %vm380, %v2090, 0
      %v2130 = vsel %vm380, %v2091, 0
      %v2133 = vsel %vm380, %v2092, 0
      %v2136 = vsel %vm380, %v2093, 0
      %v2139 = vsel %vm380, %v2094, 0
      %v2142 = vsel %vm380, %v2095, 0
      %v2145 = vsel %vm380, %v2096, 0
      %v2148 = vsel %vm380, %v2097, 0
      %v2151 = vsel %vm380, %v2098, 0
      %v2154 = vsel %vm380, %v2099, 0
      %v2157 = vsel %vm380, %v2100, 0
      %v2160 = vsel %vm380, %v2101, 0
      %v2163 = vsel %vm380, %v2102, 0
      %v2166 = vsel %vm380, %v2103, 0
      %v2169 = vsel %vm380, %v2104, 0
      %v2172 = vsel %vm380, %v2105, 0
      %v2175 = vsel %vm380, %v2106, 0
      %v2178 = vsel %vm380, %v2107, 0
      %v2181 = vsel %vm380, %v2108, 0
      %v2184 = vsel %vm380, %v2109, 0
      %v2187 = vsel %vm380, %v2110, 0
      %v2190 = vsel %vm380, %v2111, 0
      %v2193 = vsel %vm380, %v2112, 0
      %v2196 = vsel %vm380, %v2113, 0
      %v2199 = vsel %vm380, %v2114, 0
      %v2202 = vsel %vm380, %v2115, 0
      %v2205 = vsel %vm380, %v2116, 0
      %v2208 = vsel %vm380, %v2117, 0
      %v2211 = vsel %vm380, %v2118, 0
      %v2214 = vsel %vm380, %v2119, 0
      %v2217 = vsel %vm380, %v2120, 0
      %v2220 = vsel %vm380, %v2121, 0
      %2222 = vmatpush.msra.mxu0 0.0
      %2223 = vmatpush.msra.mxu0 0.0
      %2224 = vmatpush.msra.mxu0 0.0
      %2225 = vmatpush.msra.mxu0 0.0
      %2226 = vmatpush.msra.mxu0 0.0
      %2227 = vmatpush.msra.mxu0 0.0
      %2228 = vmatpush.msra.mxu0 0.0
      %2229 = vmatpush.msra.mxu0 0.0
      %2230 = vmatpush.msra.mxu0 0.0
      %2231 = vmatpush.msra.mxu0 0.0
      %2232 = vmatpush.msra.mxu0 0.0
      %2233 = vmatpush.msra.mxu0 0.0
      %2234 = vmatpush.msra.mxu0 0.0
      %2235 = vmatpush.msra.mxu0 0.0
      %2236 = vmatpush.msra.mxu0 0.0
      %2237 = vmatpush.msra.mxu0 %v2125
      %2238 = vmatmul.f32.gmra.mxu0 %v2127
      %v2239 = vpop.f32.mrf.mxu0
      %v2240 = vadd.f32 0.0, %v2239
      %2241 = vmatmul.f32.gmra.mxu0 %v2130
      %v2242 = vpop.f32.mrf.mxu0
      %v2243 = vadd.f32 0.0, %v2242
      %2244 = vmatmul.f32.gmra.mxu0 %v2133
      %v2245 = vpop.f32.mrf.mxu0
      %v2246 = vadd.f32 0.0, %v2245
      %2247 = vmatmul.f32.gmra.mxu0 %v2136
      %v2248 = vpop.f32.mrf.mxu0
      %v2249 = vadd.f32 0.0, %v2248
      %2250 = vmatmul.f32.gmra.mxu0 %v2139
      %v2251 = vpop.f32.mrf.mxu0
      %v2252 = vadd.f32 0.0, %v2251
      %2253 = vmatmul.f32.gmra.mxu0 %v2142
      %v2254 = vpop.f32.mrf.mxu0
      %v2255 = vadd.f32 0.0, %v2254
      %2256 = vmatmul.f32.gmra.mxu0 %v2145
      %v2257 = vpop.f32.mrf.mxu0
      %v2258 = vadd.f32 0.0, %v2257
      %2259 = vmatmul.f32.gmra.mxu0 %v2148
      %v2260 = vpop.f32.mrf.mxu0
      %v2261 = vadd.f32 0.0, %v2260
      %2262 = vmatmul.f32.gmra.mxu0 %v2151
      %v2263 = vpop.f32.mrf.mxu0
      %v2264 = vadd.f32 0.0, %v2263
      %2265 = vmatmul.f32.gmra.mxu0 %v2154
      %v2266 = vpop.f32.mrf.mxu0
      %v2267 = vadd.f32 0.0, %v2266
      %2268 = vmatmul.f32.gmra.mxu0 %v2157
      %v2269 = vpop.f32.mrf.mxu0
      %v2270 = vadd.f32 0.0, %v2269
      %2271 = vmatmul.f32.gmra.mxu0 %v2160
      %v2272 = vpop.f32.mrf.mxu0
      %v2273 = vadd.f32 0.0, %v2272
      %2274 = vmatmul.f32.gmra.mxu0 %v2163
      %v2275 = vpop.f32.mrf.mxu0
      %v2276 = vadd.f32 0.0, %v2275
      %2277 = vmatmul.f32.gmra.mxu0 %v2166
      %v2278 = vpop.f32.mrf.mxu0
      %v2279 = vadd.f32 0.0, %v2278
      %2280 = vmatmul.f32.gmra.mxu0 %v2169
      %v2281 = vpop.f32.mrf.mxu0
      %v2282 = vadd.f32 0.0, %v2281
      %2283 = vmatmul.f32.gmra.mxu0 %v2172
      %v2284 = vpop.f32.mrf.mxu0
      %v2285 = vadd.f32 0.0, %v2284
      %2286 = vmatmul.f32.gmra.mxu0 %v2175
      %v2287 = vpop.f32.mrf.mxu0
      %v2288 = vadd.f32 0.0, %v2287
      %2289 = vmatmul.f32.gmra.mxu0 %v2178
      %v2290 = vpop.f32.mrf.mxu0
      %v2291 = vadd.f32 0.0, %v2290
      %2292 = vmatmul.f32.gmra.mxu0 %v2181
      %v2293 = vpop.f32.mrf.mxu0
      %v2294 = vadd.f32 0.0, %v2293
      %2295 = vmatmul.f32.gmra.mxu0 %v2184
      %v2296 = vpop.f32.mrf.mxu0
      %v2297 = vadd.f32 0.0, %v2296
      %2298 = vmatmul.f32.gmra.mxu0 %v2187
      %v2299 = vpop.f32.mrf.mxu0
      %v2300 = vadd.f32 0.0, %v2299
      %2301 = vmatmul.f32.gmra.mxu0 %v2190
      %v2302 = vpop.f32.mrf.mxu0
      %v2303 = vadd.f32 0.0, %v2302
      %2304 = vmatmul.f32.gmra.mxu0 %v2193
      %v2305 = vpop.f32.mrf.mxu0
      %v2306 = vadd.f32 0.0, %v2305
      %2307 = vmatmul.f32.gmra.mxu0 %v2196
      %v2308 = vpop.f32.mrf.mxu0
      %v2309 = vadd.f32 0.0, %v2308
      %2310 = vmatmul.f32.gmra.mxu0 %v2199
      %v2311 = vpop.f32.mrf.mxu0
      %v2312 = vadd.f32 0.0, %v2311
      %2313 = vmatmul.f32.gmra.mxu0 %v2202
      %v2314 = vpop.f32.mrf.mxu0
      %v2315 = vadd.f32 0.0, %v2314
      %2316 = vmatmul.f32.gmra.mxu0 %v2205
      %v2317 = vpop.f32.mrf.mxu0
      %v2318 = vadd.f32 0.0, %v2317
      %2319 = vmatmul.f32.gmra.mxu0 %v2208
      %v2320 = vpop.f32.mrf.mxu0
      %v2321 = vadd.f32 0.0, %v2320
      %2322 = vmatmul.f32.gmra.mxu0 %v2211
      %v2323 = vpop.f32.mrf.mxu0
      %v2324 = vadd.f32 0.0, %v2323
      %2325 = vmatmul.f32.gmra.mxu0 %v2214
      %v2326 = vpop.f32.mrf.mxu0
      %v2327 = vadd.f32 0.0, %v2326
      %2328 = vmatmul.f32.gmra.mxu0 %v2217
      %v2329 = vpop.f32.mrf.mxu0
      %v2330 = vadd.f32 0.0, %v2329
      %2331 = vmatmul.f32.gmra.mxu0 %v2220
      %v2332 = vpop.f32.mrf.mxu0
      %v2333 = vadd.f32 0.0, %v2332
      %2334 = vdwg.mxu0
      %v2335 = vadd.f32 %v2057, %v2240
      %v2336 = vadd.f32 %v2058, %v2243
      %v2337 = vadd.f32 %v2059, %v2246
      %v2338 = vadd.f32 %v2060, %v2249
      %v2339 = vadd.f32 %v2061, %v2252
      %v2340 = vadd.f32 %v2062, %v2255
      %v2341 = vadd.f32 %v2063, %v2258
      %v2342 = vadd.f32 %v2064, %v2261
      %v2343 = vadd.f32 %v2065, %v2264
      %v2344 = vadd.f32 %v2066, %v2267
      %v2345 = vadd.f32 %v2067, %v2270
      %v2346 = vadd.f32 %v2068, %v2273
      %v2347 = vadd.f32 %v2069, %v2276
      %v2348 = vadd.f32 %v2070, %v2279
      %v2349 = vadd.f32 %v2071, %v2282
      %v2350 = vadd.f32 %v2072, %v2285
      %v2351 = vadd.f32 %v2073, %v2288
      %v2352 = vadd.f32 %v2074, %v2291
      %v2353 = vadd.f32 %v2075, %v2294
      %v2354 = vadd.f32 %v2076, %v2297
      %v2355 = vadd.f32 %v2077, %v2300
      %v2356 = vadd.f32 %v2078, %v2303
      %v2357 = vadd.f32 %v2079, %v2306
      %v2358 = vadd.f32 %v2080, %v2309
      %v2359 = vadd.f32 %v2081, %v2312
      %v2360 = vadd.f32 %v2082, %v2315
      %v2361 = vadd.f32 %v2083, %v2318
      %v2362 = vadd.f32 %v2084, %v2321
      %v2363 = vadd.f32 %v2085, %v2324
      %v2364 = vadd.f32 %v2086, %v2327
      %v2365 = vadd.f32 %v2087, %v2330
      %v2366 = vadd.f32 %v2088, %v2333
      %v2367 = vld [vmem:[%s2089 + $0x1] sm:$0xff]
      %v2368 = vld [vmem:[%s2089 + $0x9] sm:$0xff]
      %v2369 = vld [vmem:[%s2089 + $0x19] sm:$0xff]
      %v2370 = vld [vmem:[%s2089 + $0x21] sm:$0xff]
      %v2371 = vld [vmem:[%s2089 + $0x31] sm:$0xff]
      %v2372 = vld [vmem:[%s2089 + $0x39] sm:$0xff]
      %v2373 = vld [vmem:[%s2089 + $0x49] sm:$0xff]
      %v2374 = vld [vmem:[%s2089 + $0x51] sm:$0xff]
      %v2375 = vld [vmem:[%s2089 + $0x61] sm:$0xff]
      %v2376 = vld [vmem:[%s2089 + $0x69] sm:$0xff]
      %v2377 = vld [vmem:[%s2089 + $0x79] sm:$0xff]
      %v2378 = vld [vmem:[%s2089 + $0x81] sm:$0xff]
      %v2379 = vld [vmem:[%s2089 + $0x91] sm:$0xff]
      %v2380 = vld [vmem:[%s2089 + $0x99] sm:$0xff]
      %v2381 = vld [vmem:[%s2089 + $0xa9] sm:$0xff]
      %v2382 = vld [vmem:[%s2089 + $0xb1] sm:$0xff]
      %v2383 = vld [vmem:[%s2089 + $0xc1] sm:$0xff]
      %v2384 = vld [vmem:[%s2089 + $0xc9] sm:$0xff]
      %v2385 = vld [vmem:[%s2089 + $0xd9] sm:$0xff]
      %v2386 = vld [vmem:[%s2089 + $0xe1] sm:$0xff]
      %v2387 = vld [vmem:[%s2089 + $0xf1] sm:$0xff]
      %v2388 = vld [vmem:[%s2089 + $0xf9] sm:$0xff]
      %v2389 = vld [vmem:[%s2089 + $0x109] sm:$0xff]
      %v2390 = vld [vmem:[%s2089 + $0x111] sm:$0xff]
      %v2391 = vld [vmem:[%s2089 + $0x121] sm:$0xff]
      %v2392 = vld [vmem:[%s2089 + $0x129] sm:$0xff]
      %v2393 = vld [vmem:[%s2089 + $0x139] sm:$0xff]
      %v2394 = vld [vmem:[%s2089 + $0x141] sm:$0xff]
      %v2395 = vld [vmem:[%s2089 + $0x151] sm:$0xff]
      %v2396 = vld [vmem:[%s2089 + $0x159] sm:$0xff]
      %v2397 = vld [vmem:[%s2089 + $0x169] sm:$0xff]
      %v2398 = vld [vmem:[%s2089 + $0x171] sm:$0xff]
      %s2399 = sadd.s32 %s523, 7
      %s2400 = smul.u32 %s2399, 8
      %s2401 = scalar_lea.vmem %s301, %s2400
      %v2402 = vld [vmem:[%s2401] sm:$0xff]
      %v2404 = vsel %vm380, %v2367, 0
      %v2407 = vsel %vm380, %v2368, 0
      %v2410 = vsel %vm380, %v2369, 0
      %v2413 = vsel %vm380, %v2370, 0
      %v2416 = vsel %vm380, %v2371, 0
      %v2419 = vsel %vm380, %v2372, 0
      %v2422 = vsel %vm380, %v2373, 0
      %v2425 = vsel %vm380, %v2374, 0
      %v2428 = vsel %vm380, %v2375, 0
      %v2431 = vsel %vm380, %v2376, 0
      %v2434 = vsel %vm380, %v2377, 0
      %v2437 = vsel %vm380, %v2378, 0
      %v2440 = vsel %vm380, %v2379, 0
      %v2443 = vsel %vm380, %v2380, 0
      %v2446 = vsel %vm380, %v2381, 0
      %v2449 = vsel %vm380, %v2382, 0
      %v2452 = vsel %vm380, %v2383, 0
      %v2455 = vsel %vm380, %v2384, 0
      %v2458 = vsel %vm380, %v2385, 0
      %v2461 = vsel %vm380, %v2386, 0
      %v2464 = vsel %vm380, %v2387, 0
      %v2467 = vsel %vm380, %v2388, 0
      %v2470 = vsel %vm380, %v2389, 0
      %v2473 = vsel %vm380, %v2390, 0
      %v2476 = vsel %vm380, %v2391, 0
      %v2479 = vsel %vm380, %v2392, 0
      %v2482 = vsel %vm380, %v2393, 0
      %v2485 = vsel %vm380, %v2394, 0
      %v2488 = vsel %vm380, %v2395, 0
      %v2491 = vsel %vm380, %v2396, 0
      %v2494 = vsel %vm380, %v2397, 0
      %v2497 = vsel %vm380, %v2398, 0
      %2499 = vmatpush.msra.mxu0 0.0
      %2500 = vmatpush.msra.mxu0 0.0
      %2501 = vmatpush.msra.mxu0 0.0
      %2502 = vmatpush.msra.mxu0 0.0
      %2503 = vmatpush.msra.mxu0 0.0
      %2504 = vmatpush.msra.mxu0 0.0
      %2505 = vmatpush.msra.mxu0 0.0
      %2506 = vmatpush.msra.mxu0 0.0
      %2507 = vmatpush.msra.mxu0 0.0
      %2508 = vmatpush.msra.mxu0 0.0
      %2509 = vmatpush.msra.mxu0 0.0
      %2510 = vmatpush.msra.mxu0 0.0
      %2511 = vmatpush.msra.mxu0 0.0
      %2512 = vmatpush.msra.mxu0 0.0
      %2513 = vmatpush.msra.mxu0 0.0
      %2514 = vmatpush.msra.mxu0 %v2402
      %2515 = vmatmul.f32.gmra.mxu0 %v2404
      %v2516 = vpop.f32.mrf.mxu0
      %v2517 = vadd.f32 0.0, %v2516
      %2518 = vmatmul.f32.gmra.mxu0 %v2407
      %v2519 = vpop.f32.mrf.mxu0
      %v2520 = vadd.f32 0.0, %v2519
      %2521 = vmatmul.f32.gmra.mxu0 %v2410
      %v2522 = vpop.f32.mrf.mxu0
      %v2523 = vadd.f32 0.0, %v2522
      %2524 = vmatmul.f32.gmra.mxu0 %v2413
      %v2525 = vpop.f32.mrf.mxu0
      %v2526 = vadd.f32 0.0, %v2525
      %2527 = vmatmul.f32.gmra.mxu0 %v2416
      %v2528 = vpop.f32.mrf.mxu0
      %v2529 = vadd.f32 0.0, %v2528
      %2530 = vmatmul.f32.gmra.mxu0 %v2419
      %v2531 = vpop.f32.mrf.mxu0
      %v2532 = vadd.f32 0.0, %v2531
      %2533 = vmatmul.f32.gmra.mxu0 %v2422
      %v2534 = vpop.f32.mrf.mxu0
      %v2535 = vadd.f32 0.0, %v2534
      %2536 = vmatmul.f32.gmra.mxu0 %v2425
      %v2537 = vpop.f32.mrf.mxu0
      %v2538 = vadd.f32 0.0, %v2537
      %2539 = vmatmul.f32.gmra.mxu0 %v2428
      %v2540 = vpop.f32.mrf.mxu0
      %v2541 = vadd.f32 0.0, %v2540
      %2542 = vmatmul.f32.gmra.mxu0 %v2431
      %v2543 = vpop.f32.mrf.mxu0
      %v2544 = vadd.f32 0.0, %v2543
      %2545 = vmatmul.f32.gmra.mxu0 %v2434
      %v2546 = vpop.f32.mrf.mxu0
      %v2547 = vadd.f32 0.0, %v2546
      %2548 = vmatmul.f32.gmra.mxu0 %v2437
      %v2549 = vpop.f32.mrf.mxu0
      %v2550 = vadd.f32 0.0, %v2549
      %2551 = vmatmul.f32.gmra.mxu0 %v2440
      %v2552 = vpop.f32.mrf.mxu0
      %v2553 = vadd.f32 0.0, %v2552
      %2554 = vmatmul.f32.gmra.mxu0 %v2443
      %v2555 = vpop.f32.mrf.mxu0
      %v2556 = vadd.f32 0.0, %v2555
      %2557 = vmatmul.f32.gmra.mxu0 %v2446
      %v2558 = vpop.f32.mrf.mxu0
      %v2559 = vadd.f32 0.0, %v2558
      %2560 = vmatmul.f32.gmra.mxu0 %v2449
      %v2561 = vpop.f32.mrf.mxu0
      %v2562 = vadd.f32 0.0, %v2561
      %2563 = vmatmul.f32.gmra.mxu0 %v2452
      %v2564 = vpop.f32.mrf.mxu0
      %v2565 = vadd.f32 0.0, %v2564
      %2566 = vmatmul.f32.gmra.mxu0 %v2455
      %v2567 = vpop.f32.mrf.mxu0
      %v2568 = vadd.f32 0.0, %v2567
      %2569 = vmatmul.f32.gmra.mxu0 %v2458
      %v2570 = vpop.f32.mrf.mxu0
      %v2571 = vadd.f32 0.0, %v2570
      %2572 = vmatmul.f32.gmra.mxu0 %v2461
      %v2573 = vpop.f32.mrf.mxu0
      %v2574 = vadd.f32 0.0, %v2573
      %2575 = vmatmul.f32.gmra.mxu0 %v2464
      %v2576 = vpop.f32.mrf.mxu0
      %v2577 = vadd.f32 0.0, %v2576
      %2578 = vmatmul.f32.gmra.mxu0 %v2467
      %v2579 = vpop.f32.mrf.mxu0
      %v2580 = vadd.f32 0.0, %v2579
      %2581 = vmatmul.f32.gmra.mxu0 %v2470
      %v2582 = vpop.f32.mrf.mxu0
      %v2583 = vadd.f32 0.0, %v2582
      %2584 = vmatmul.f32.gmra.mxu0 %v2473
      %v2585 = vpop.f32.mrf.mxu0
      %v2586 = vadd.f32 0.0, %v2585
      %2587 = vmatmul.f32.gmra.mxu0 %v2476
      %v2588 = vpop.f32.mrf.mxu0
      %v2589 = vadd.f32 0.0, %v2588
      %2590 = vmatmul.f32.gmra.mxu0 %v2479
      %v2591 = vpop.f32.mrf.mxu0
      %v2592 = vadd.f32 0.0, %v2591
      %2593 = vmatmul.f32.gmra.mxu0 %v2482
      %v2594 = vpop.f32.mrf.mxu0
      %v2595 = vadd.f32 0.0, %v2594
      %2596 = vmatmul.f32.gmra.mxu0 %v2485
      %v2597 = vpop.f32.mrf.mxu0
      %v2598 = vadd.f32 0.0, %v2597
      %2599 = vmatmul.f32.gmra.mxu0 %v2488
      %v2600 = vpop.f32.mrf.mxu0
      %v2601 = vadd.f32 0.0, %v2600
      %2602 = vmatmul.f32.gmra.mxu0 %v2491
      %v2603 = vpop.f32.mrf.mxu0
      %v2604 = vadd.f32 0.0, %v2603
      %2605 = vmatmul.f32.gmra.mxu0 %v2494
      %v2606 = vpop.f32.mrf.mxu0
      %v2607 = vadd.f32 0.0, %v2606
      %2608 = vmatmul.f32.gmra.mxu0 %v2497
      %v2609 = vpop.f32.mrf.mxu0
      %v2610 = vadd.f32 0.0, %v2609
      %2611 = vdwg.mxu0
      %v2612 = vadd.f32 %v2335, %v2517
      %v2613 = vadd.f32 %v2336, %v2520
      %v2614 = vadd.f32 %v2337, %v2523
      %v2615 = vadd.f32 %v2338, %v2526
      %v2616 = vadd.f32 %v2339, %v2529
      %v2617 = vadd.f32 %v2340, %v2532
      %v2618 = vadd.f32 %v2341, %v2535
      %v2619 = vadd.f32 %v2342, %v2538
      %v2620 = vadd.f32 %v2343, %v2541
      %v2621 = vadd.f32 %v2344, %v2544
      %v2622 = vadd.f32 %v2345, %v2547
      %v2623 = vadd.f32 %v2346, %v2550
      %v2624 = vadd.f32 %v2347, %v2553
      %v2625 = vadd.f32 %v2348, %v2556
      %v2626 = vadd.f32 %v2349, %v2559
      %v2627 = vadd.f32 %v2350, %v2562
      %v2628 = vadd.f32 %v2351, %v2565
      %v2629 = vadd.f32 %v2352, %v2568
      %v2630 = vadd.f32 %v2353, %v2571
      %v2631 = vadd.f32 %v2354, %v2574
      %v2632 = vadd.f32 %v2355, %v2577
      %v2633 = vadd.f32 %v2356, %v2580
      %v2634 = vadd.f32 %v2357, %v2583
      %v2635 = vadd.f32 %v2358, %v2586
      %v2636 = vadd.f32 %v2359, %v2589
      %v2637 = vadd.f32 %v2360, %v2592
      %v2638 = vadd.f32 %v2361, %v2595
      %v2639 = vadd.f32 %v2362, %v2598
      %v2640 = vadd.f32 %v2363, %v2601
      %v2641 = vadd.f32 %v2364, %v2604
      %v2642 = vadd.f32 %v2365, %v2607
      %v2643 = vadd.f32 %v2366, %v2610
      %v2644 = vld [vmem:[%s2089 + $0x2] sm:$0xff]
      %v2645 = vld [vmem:[%s2089 + $0xa] sm:$0xff]
      %v2646 = vld [vmem:[%s2089 + $0x1a] sm:$0xff]
      %v2647 = vld [vmem:[%s2089 + $0x22] sm:$0xff]
      %v2648 = vld [vmem:[%s2089 + $0x32] sm:$0xff]
      %v2649 = vld [vmem:[%s2089 + $0x3a] sm:$0xff]
      %v2650 = vld [vmem:[%s2089 + $0x4a] sm:$0xff]
      %v2651 = vld [vmem:[%s2089 + $0x52] sm:$0xff]
      %v2652 = vld [vmem:[%s2089 + $0x62] sm:$0xff]
      %v2653 = vld [vmem:[%s2089 + $0x6a] sm:$0xff]
      %v2654 = vld [vmem:[%s2089 + $0x7a] sm:$0xff]
      %v2655 = vld [vmem:[%s2089 + $0x82] sm:$0xff]
      %v2656 = vld [vmem:[%s2089 + $0x92] sm:$0xff]
      %v2657 = vld [vmem:[%s2089 + $0x9a] sm:$0xff]
      %v2658 = vld [vmem:[%s2089 + $0xaa] sm:$0xff]
      %v2659 = vld [vmem:[%s2089 + $0xb2] sm:$0xff]
      %v2660 = vld [vmem:[%s2089 + $0xc2] sm:$0xff]
      %v2661 = vld [vmem:[%s2089 + $0xca] sm:$0xff]
      %v2662 = vld [vmem:[%s2089 + $0xda] sm:$0xff]
      %v2663 = vld [vmem:[%s2089 + $0xe2] sm:$0xff]
      %v2664 = vld [vmem:[%s2089 + $0xf2] sm:$0xff]
      %v2665 = vld [vmem:[%s2089 + $0xfa] sm:$0xff]
      %v2666 = vld [vmem:[%s2089 + $0x10a] sm:$0xff]
      %v2667 = vld [vmem:[%s2089 + $0x112] sm:$0xff]
      %v2668 = vld [vmem:[%s2089 + $0x122] sm:$0xff]
      %v2669 = vld [vmem:[%s2089 + $0x12a] sm:$0xff]
      %v2670 = vld [vmem:[%s2089 + $0x13a] sm:$0xff]
      %v2671 = vld [vmem:[%s2089 + $0x142] sm:$0xff]
      %v2672 = vld [vmem:[%s2089 + $0x152] sm:$0xff]
      %v2673 = vld [vmem:[%s2089 + $0x15a] sm:$0xff]
      %v2674 = vld [vmem:[%s2089 + $0x16a] sm:$0xff]
      %v2675 = vld [vmem:[%s2089 + $0x172] sm:$0xff]
      %s2676 = sadd.s32 %s523, 8
      %s2677 = smul.u32 %s2676, 8
      %s2678 = scalar_lea.vmem %s301, %s2677
      %v2679 = vld [vmem:[%s2678] sm:$0xff]
      %v2681 = vsel %vm380, %v2644, 0
      %v2684 = vsel %vm380, %v2645, 0
      %v2687 = vsel %vm380, %v2646, 0
      %v2690 = vsel %vm380, %v2647, 0
      %v2693 = vsel %vm380, %v2648, 0
      %v2696 = vsel %vm380, %v2649, 0
      %v2699 = vsel %vm380, %v2650, 0
      %v2702 = vsel %vm380, %v2651, 0
      %v2705 = vsel %vm380, %v2652, 0
      %v2708 = vsel %vm380, %v2653, 0
      %v2711 = vsel %vm380, %v2654, 0
      %v2714 = vsel %vm380, %v2655, 0
      %v2717 = vsel %vm380, %v2656, 0
      %v2720 = vsel %vm380, %v2657, 0
      %v2723 = vsel %vm380, %v2658, 0
      %v2726 = vsel %vm380, %v2659, 0
      %v2729 = vsel %vm380, %v2660, 0
      %v2732 = vsel %vm380, %v2661, 0
      %v2735 = vsel %vm380, %v2662, 0
      %v2738 = vsel %vm380, %v2663, 0
      %v2741 = vsel %vm380, %v2664, 0
      %v2744 = vsel %vm380, %v2665, 0
      %v2747 = vsel %vm380, %v2666, 0
      %v2750 = vsel %vm380, %v2667, 0
      %v2753 = vsel %vm380, %v2668, 0
      %v2756 = vsel %vm380, %v2669, 0
      %v2759 = vsel %vm380, %v2670, 0
      %v2762 = vsel %vm380, %v2671, 0
      %v2765 = vsel %vm380, %v2672, 0
      %v2768 = vsel %vm380, %v2673, 0
      %v2771 = vsel %vm380, %v2674, 0
      %v2774 = vsel %vm380, %v2675, 0
      %2776 = vmatpush.msra.mxu0 0.0
      %2777 = vmatpush.msra.mxu0 0.0
      %2778 = vmatpush.msra.mxu0 0.0
      %2779 = vmatpush.msra.mxu0 0.0
      %2780 = vmatpush.msra.mxu0 0.0
      %2781 = vmatpush.msra.mxu0 0.0
      %2782 = vmatpush.msra.mxu0 0.0
      %2783 = vmatpush.msra.mxu0 0.0
      %2784 = vmatpush.msra.mxu0 0.0
      %2785 = vmatpush.msra.mxu0 0.0
      %2786 = vmatpush.msra.mxu0 0.0
      %2787 = vmatpush.msra.mxu0 0.0
      %2788 = vmatpush.msra.mxu0 0.0
      %2789 = vmatpush.msra.mxu0 0.0
      %2790 = vmatpush.msra.mxu0 0.0
      %2791 = vmatpush.msra.mxu0 %v2679
      %2792 = vmatmul.f32.gmra.mxu0 %v2681
      %v2793 = vpop.f32.mrf.mxu0
      %v2794 = vadd.f32 0.0, %v2793
      %2795 = vmatmul.f32.gmra.mxu0 %v2684
      %v2796 = vpop.f32.mrf.mxu0
      %v2797 = vadd.f32 0.0, %v2796
      %2798 = vmatmul.f32.gmra.mxu0 %v2687
      %v2799 = vpop.f32.mrf.mxu0
      %v2800 = vadd.f32 0.0, %v2799
      %2801 = vmatmul.f32.gmra.mxu0 %v2690
      %v2802 = vpop.f32.mrf.mxu0
      %v2803 = vadd.f32 0.0, %v2802
      %2804 = vmatmul.f32.gmra.mxu0 %v2693
      %v2805 = vpop.f32.mrf.mxu0
      %v2806 = vadd.f32 0.0, %v2805
      %2807 = vmatmul.f32.gmra.mxu0 %v2696
      %v2808 = vpop.f32.mrf.mxu0
      %v2809 = vadd.f32 0.0, %v2808
      %2810 = vmatmul.f32.gmra.mxu0 %v2699
      %v2811 = vpop.f32.mrf.mxu0
      %v2812 = vadd.f32 0.0, %v2811
      %2813 = vmatmul.f32.gmra.mxu0 %v2702
      %v2814 = vpop.f32.mrf.mxu0
      %v2815 = vadd.f32 0.0, %v2814
      %2816 = vmatmul.f32.gmra.mxu0 %v2705
      %v2817 = vpop.f32.mrf.mxu0
      %v2818 = vadd.f32 0.0, %v2817
      %2819 = vmatmul.f32.gmra.mxu0 %v2708
      %v2820 = vpop.f32.mrf.mxu0
      %v2821 = vadd.f32 0.0, %v2820
      %2822 = vmatmul.f32.gmra.mxu0 %v2711
      %v2823 = vpop.f32.mrf.mxu0
      %v2824 = vadd.f32 0.0, %v2823
      %2825 = vmatmul.f32.gmra.mxu0 %v2714
      %v2826 = vpop.f32.mrf.mxu0
      %v2827 = vadd.f32 0.0, %v2826
      %2828 = vmatmul.f32.gmra.mxu0 %v2717
      %v2829 = vpop.f32.mrf.mxu0
      %v2830 = vadd.f32 0.0, %v2829
      %2831 = vmatmul.f32.gmra.mxu0 %v2720
      %v2832 = vpop.f32.mrf.mxu0
      %v2833 = vadd.f32 0.0, %v2832
      %2834 = vmatmul.f32.gmra.mxu0 %v2723
      %v2835 = vpop.f32.mrf.mxu0
      %v2836 = vadd.f32 0.0, %v2835
      %2837 = vmatmul.f32.gmra.mxu0 %v2726
      %v2838 = vpop.f32.mrf.mxu0
      %v2839 = vadd.f32 0.0, %v2838
      %2840 = vmatmul.f32.gmra.mxu0 %v2729
      %v2841 = vpop.f32.mrf.mxu0
      %v2842 = vadd.f32 0.0, %v2841
      %2843 = vmatmul.f32.gmra.mxu0 %v2732
      %v2844 = vpop.f32.mrf.mxu0
      %v2845 = vadd.f32 0.0, %v2844
      %2846 = vmatmul.f32.gmra.mxu0 %v2735
      %v2847 = vpop.f32.mrf.mxu0
      %v2848 = vadd.f32 0.0, %v2847
      %2849 = vmatmul.f32.gmra.mxu0 %v2738
      %v2850 = vpop.f32.mrf.mxu0
      %v2851 = vadd.f32 0.0, %v2850
      %2852 = vmatmul.f32.gmra.mxu0 %v2741
      %v2853 = vpop.f32.mrf.mxu0
      %v2854 = vadd.f32 0.0, %v2853
      %2855 = vmatmul.f32.gmra.mxu0 %v2744
      %v2856 = vpop.f32.mrf.mxu0
      %v2857 = vadd.f32 0.0, %v2856
      %2858 = vmatmul.f32.gmra.mxu0 %v2747
      %v2859 = vpop.f32.mrf.mxu0
      %v2860 = vadd.f32 0.0, %v2859
      %2861 = vmatmul.f32.gmra.mxu0 %v2750
      %v2862 = vpop.f32.mrf.mxu0
      %v2863 = vadd.f32 0.0, %v2862
      %2864 = vmatmul.f32.gmra.mxu0 %v2753
      %v2865 = vpop.f32.mrf.mxu0
      %v2866 = vadd.f32 0.0, %v2865
      %2867 = vmatmul.f32.gmra.mxu0 %v2756
      %v2868 = vpop.f32.mrf.mxu0
      %v2869 = vadd.f32 0.0, %v2868
      %2870 = vmatmul.f32.gmra.mxu0 %v2759
      %v2871 = vpop.f32.mrf.mxu0
      %v2872 = vadd.f32 0.0, %v2871
      %2873 = vmatmul.f32.gmra.mxu0 %v2762
      %v2874 = vpop.f32.mrf.mxu0
      %v2875 = vadd.f32 0.0, %v2874
      %2876 = vmatmul.f32.gmra.mxu0 %v2765
      %v2877 = vpop.f32.mrf.mxu0
      %v2878 = vadd.f32 0.0, %v2877
      %2879 = vmatmul.f32.gmra.mxu0 %v2768
      %v2880 = vpop.f32.mrf.mxu0
      %v2881 = vadd.f32 0.0, %v2880
      %2882 = vmatmul.f32.gmra.mxu0 %v2771
      %v2883 = vpop.f32.mrf.mxu0
      %v2884 = vadd.f32 0.0, %v2883
      %2885 = vmatmul.f32.gmra.mxu0 %v2774
      %v2886 = vpop.f32.mrf.mxu0
      %v2887 = vadd.f32 0.0, %v2886
      %2888 = vdwg.mxu0
      %v2889 = vadd.f32 %v2612, %v2794
      %v2890 = vadd.f32 %v2613, %v2797
      %v2891 = vadd.f32 %v2614, %v2800
      %v2892 = vadd.f32 %v2615, %v2803
      %v2893 = vadd.f32 %v2616, %v2806
      %v2894 = vadd.f32 %v2617, %v2809
      %v2895 = vadd.f32 %v2618, %v2812
      %v2896 = vadd.f32 %v2619, %v2815
      %v2897 = vadd.f32 %v2620, %v2818
      %v2898 = vadd.f32 %v2621, %v2821
      %v2899 = vadd.f32 %v2622, %v2824
      %v2900 = vadd.f32 %v2623, %v2827
      %v2901 = vadd.f32 %v2624, %v2830
      %v2902 = vadd.f32 %v2625, %v2833
      %v2903 = vadd.f32 %v2626, %v2836
      %v2904 = vadd.f32 %v2627, %v2839
      %v2905 = vadd.f32 %v2628, %v2842
      %v2906 = vadd.f32 %v2629, %v2845
      %v2907 = vadd.f32 %v2630, %v2848
      %v2908 = vadd.f32 %v2631, %v2851
      %v2909 = vadd.f32 %v2632, %v2854
      %v2910 = vadd.f32 %v2633, %v2857
      %v2911 = vadd.f32 %v2634, %v2860
      %v2912 = vadd.f32 %v2635, %v2863
      %v2913 = vadd.f32 %v2636, %v2866
      %v2914 = vadd.f32 %v2637, %v2869
      %v2915 = vadd.f32 %v2638, %v2872
      %v2916 = vadd.f32 %v2639, %v2875
      %v2917 = vadd.f32 %v2640, %v2878
      %v2918 = vadd.f32 %v2641, %v2881
      %v2919 = vadd.f32 %v2642, %v2884
      %v2920 = vadd.f32 %v2643, %v2887
      %v2921 = vld [vmem:[#allocation3] sm:$0xff]
      %v2922 = vld [vmem:[#allocation3 + $0x8] sm:$0xff]
      %v2923 = vld [vmem:[#allocation3 + $0x10] sm:$0xff]
      %v2924 = vld [vmem:[#allocation3 + $0x18] sm:$0xff]
      %v2925 = vld [vmem:[#allocation3 + $0x20] sm:$0xff]
      %v2926 = vld [vmem:[#allocation3 + $0x28] sm:$0xff]
      %v2927 = vld [vmem:[#allocation3 + $0x30] sm:$0xff]
      %v2928 = vld [vmem:[#allocation3 + $0x38] sm:$0xff]
      %v2929 = vld [vmem:[#allocation3 + $0x40] sm:$0xff]
      %v2930 = vld [vmem:[#allocation3 + $0x48] sm:$0xff]
      %v2931 = vld [vmem:[#allocation3 + $0x50] sm:$0xff]
      %v2932 = vld [vmem:[#allocation3 + $0x58] sm:$0xff]
      %v2933 = vld [vmem:[#allocation3 + $0x60] sm:$0xff]
      %v2934 = vld [vmem:[#allocation3 + $0x68] sm:$0xff]
      %v2935 = vld [vmem:[#allocation3 + $0x70] sm:$0xff]
      %v2936 = vld [vmem:[#allocation3 + $0x78] sm:$0xff]
      %v2937 = vld [vmem:[#allocation3 + $0x80] sm:$0xff]
      %v2938 = vld [vmem:[#allocation3 + $0x88] sm:$0xff]
      %v2939 = vld [vmem:[#allocation3 + $0x90] sm:$0xff]
      %v2940 = vld [vmem:[#allocation3 + $0x98] sm:$0xff]
      %v2941 = vld [vmem:[#allocation3 + $0xa0] sm:$0xff]
      %v2942 = vld [vmem:[#allocation3 + $0xa8] sm:$0xff]
      %v2943 = vld [vmem:[#allocation3 + $0xb0] sm:$0xff]
      %v2944 = vld [vmem:[#allocation3 + $0xb8] sm:$0xff]
      %v2945 = vld [vmem:[#allocation3 + $0xc0] sm:$0xff]
      %v2946 = vld [vmem:[#allocation3 + $0xc8] sm:$0xff]
      %v2947 = vld [vmem:[#allocation3 + $0xd0] sm:$0xff]
      %v2948 = vld [vmem:[#allocation3 + $0xd8] sm:$0xff]
      %v2949 = vld [vmem:[#allocation3 + $0xe0] sm:$0xff]
      %v2950 = vld [vmem:[#allocation3 + $0xe8] sm:$0xff]
      %v2951 = vld [vmem:[#allocation3 + $0xf0] sm:$0xff]
      %v2952 = vld [vmem:[#allocation3 + $0xf8] sm:$0xff]
      %v2953 = vxor.u32 %v2889, 2147483648
      %v2954 = vxor.u32 %v2890, 2147483648
      %v2955 = vxor.u32 %v2891, 2147483648
      %v2956 = vxor.u32 %v2892, 2147483648
      %v2957 = vxor.u32 %v2893, 2147483648
      %v2958 = vxor.u32 %v2894, 2147483648
      %v2959 = vxor.u32 %v2895, 2147483648
      %v2960 = vxor.u32 %v2896, 2147483648
      %v2961 = vxor.u32 %v2897, 2147483648
      %v2962 = vxor.u32 %v2898, 2147483648
      %v2963 = vxor.u32 %v2899, 2147483648
      %v2964 = vxor.u32 %v2900, 2147483648
      %v2965 = vxor.u32 %v2901, 2147483648
      %v2966 = vxor.u32 %v2902, 2147483648
      %v2967 = vxor.u32 %v2903, 2147483648
      %v2968 = vxor.u32 %v2904, 2147483648
      %v2969 = vxor.u32 %v2905, 2147483648
      %v2970 = vxor.u32 %v2906, 2147483648
      %v2971 = vxor.u32 %v2907, 2147483648
      %v2972 = vxor.u32 %v2908, 2147483648
      %v2973 = vxor.u32 %v2909, 2147483648
      %v2974 = vxor.u32 %v2910, 2147483648
      %v2975 = vxor.u32 %v2911, 2147483648
      %v2976 = vxor.u32 %v2912, 2147483648
      %v2977 = vxor.u32 %v2913, 2147483648
      %v2978 = vxor.u32 %v2914, 2147483648
      %v2979 = vxor.u32 %v2915, 2147483648
      %v2980 = vxor.u32 %v2916, 2147483648
      %v2981 = vxor.u32 %v2917, 2147483648
      %v2982 = vxor.u32 %v2918, 2147483648
      %v2983 = vxor.u32 %v2919, 2147483648
      %v2984 = vxor.u32 %v2920, 2147483648
      %v2985 = vmul.f32 %v2953, 1.442695
      %v2986 = vpow.pop %v2985
      %v2987 = vmul.f32 %v2954, 1.442695
      %v2988 = vpow.pop %v2987
      %v2989 = vmul.f32 %v2955, 1.442695
      %v2990 = vpow.pop %v2989
      %v2991 = vmul.f32 %v2956, 1.442695
      %v2992 = vpow.pop %v2991
      %v2993 = vmul.f32 %v2957, 1.442695
      %v2994 = vpow.pop %v2993
      %v2995 = vmul.f32 %v2958, 1.442695
      %v2996 = vpow.pop %v2995
      %v2997 = vmul.f32 %v2959, 1.442695
      %v2998 = vpow.pop %v2997
      %v2999 = vmul.f32 %v2960, 1.442695
      %v3000 = vpow.pop %v2999
      %v3001 = vmul.f32 %v2961, 1.442695
      %v3002 = vpow.pop %v3001
      %v3003 = vmul.f32 %v2962, 1.442695
      %v3004 = vpow.pop %v3003
      %v3005 = vmul.f32 %v2963, 1.442695
      %v3006 = vpow.pop %v3005
      %v3007 = vmul.f32 %v2964, 1.442695
      %v3008 = vpow.pop %v3007
      %v3009 = vmul.f32 %v2965, 1.442695
      %v3010 = vpow.pop %v3009
      %v3011 = vmul.f32 %v2966, 1.442695
      %v3012 = vpow.pop %v3011
      %v3013 = vmul.f32 %v2967, 1.442695
      %v3014 = vpow.pop %v3013
      %v3015 = vmul.f32 %v2968, 1.442695
      %v3016 = vpow.pop %v3015
      %v3017 = vmul.f32 %v2969, 1.442695
      %v3018 = vpow.pop %v3017
      %v3019 = vmul.f32 %v2970, 1.442695
      %v3020 = vpow.pop %v3019
      %v3021 = vmul.f32 %v2971, 1.442695
      %v3022 = vpow.pop %v3021
      %v3023 = vmul.f32 %v2972, 1.442695
      %v3024 = vpow.pop %v3023
      %v3025 = vmul.f32 %v2973, 1.442695
      %v3026 = vpow.pop %v3025
      %v3027 = vmul.f32 %v2974, 1.442695
      %v3028 = vpow.pop %v3027
      %v3029 = vmul.f32 %v2975, 1.442695
      %v3030 = vpow.pop %v3029
      %v3031 = vmul.f32 %v2976, 1.442695
      %v3032 = vpow.pop %v3031
      %v3033 = vmul.f32 %v2977, 1.442695
      %v3034 = vpow.pop %v3033
      %v3035 = vmul.f32 %v2978, 1.442695
      %v3036 = vpow.pop %v3035
      %v3037 = vmul.f32 %v2979, 1.442695
      %v3038 = vpow.pop %v3037
      %v3039 = vmul.f32 %v2980, 1.442695
      %v3040 = vpow.pop %v3039
      %v3041 = vmul.f32 %v2981, 1.442695
      %v3042 = vpow.pop %v3041
      %v3043 = vmul.f32 %v2982, 1.442695
      %v3044 = vpow.pop %v3043
      %v3045 = vmul.f32 %v2983, 1.442695
      %v3046 = vpow.pop %v3045
      %v3047 = vmul.f32 %v2984, 1.442695
      %v3048 = vpow.pop %v3047
      %v3049 = vadd.f32 %v2986, 1.0
      %v3050 = vadd.f32 %v2988, 1.0
      %v3051 = vadd.f32 %v2990, 1.0
      %v3052 = vadd.f32 %v2992, 1.0
      %v3053 = vadd.f32 %v2994, 1.0
      %v3054 = vadd.f32 %v2996, 1.0
      %v3055 = vadd.f32 %v2998, 1.0
      %v3056 = vadd.f32 %v3000, 1.0
      %v3057 = vadd.f32 %v3002, 1.0
      %v3058 = vadd.f32 %v3004, 1.0
      %v3059 = vadd.f32 %v3006, 1.0
      %v3060 = vadd.f32 %v3008, 1.0
      %v3061 = vadd.f32 %v3010, 1.0
      %v3062 = vadd.f32 %v3012, 1.0
      %v3063 = vadd.f32 %v3014, 1.0
      %v3064 = vadd.f32 %v3016, 1.0
      %v3065 = vadd.f32 %v3018, 1.0
      %v3066 = vadd.f32 %v3020, 1.0
      %v3067 = vadd.f32 %v3022, 1.0
      %v3068 = vadd.f32 %v3024, 1.0
      %v3069 = vadd.f32 %v3026, 1.0
      %v3070 = vadd.f32 %v3028, 1.0
      %v3071 = vadd.f32 %v3030, 1.0
      %v3072 = vadd.f32 %v3032, 1.0
      %v3073 = vadd.f32 %v3034, 1.0
      %v3074 = vadd.f32 %v3036, 1.0
      %v3075 = vadd.f32 %v3038, 1.0
      %v3076 = vadd.f32 %v3040, 1.0
      %v3077 = vadd.f32 %v3042, 1.0
      %v3078 = vadd.f32 %v3044, 1.0
      %v3079 = vadd.f32 %v3046, 1.0
      %v3080 = vadd.f32 %v3048, 1.0
      %v3081 = vrcp.pop %v3049
      %v3082 = vmul.f32 %v3049, %v3081
      %v3083 = vsub.f32 1.0, %v3082
      %v3084 = vmul.f32 %v3081, %v3083
      %v3085 = vadd.f32 %v3081, %v3084
      %vm3086 = vweird.f32 %v3049
      %vm3087 = vweird.f32 %v3081
      %vm3088 = vmor %vm3086, %vm3087
      %v3089 = vsel %vm3088, %v3081, %v3085
      %v3090 = vand.u32 2147483647, %v3049
      %vm3091 = vcmp.eq.f32.partialorder %v3090, 8.507059e+37
      %v3092 = vand.u32 %v3049, 2147483648
      %v3093 = vor.u32 1.1754944e-38, %v3092
      %v3094 = vsel %vm3091, %v3093, %v3089
      %v3095 = vmul.f32 1.0, %v3094
      %v3096 = vrcp.pop %v3050
      %v3097 = vmul.f32 %v3050, %v3096
      %v3098 = vsub.f32 1.0, %v3097
      %v3099 = vmul.f32 %v3096, %v3098
      %v3100 = vadd.f32 %v3096, %v3099
      %vm3101 = vweird.f32 %v3050
      %vm3102 = vweird.f32 %v3096
      %vm3103 = vmor %vm3101, %vm3102
      %v3104 = vsel %vm3103, %v3096, %v3100
      %v3105 = vand.u32 2147483647, %v3050
      %vm3106 = vcmp.eq.f32.partialorder %v3105, 8.507059e+37
      %v3107 = vand.u32 %v3050, 2147483648
      %v3108 = vor.u32 1.1754944e-38, %v3107
      %v3109 = vsel %vm3106, %v3108, %v3104
      %v3110 = vmul.f32 1.0, %v3109
      %v3111 = vrcp.pop %v3051
      %v3112 = vmul.f32 %v3051, %v3111
      %v3113 = vsub.f32 1.0, %v3112
      %v3114 = vmul.f32 %v3111, %v3113
      %v3115 = vadd.f32 %v3111, %v3114
      %vm3116 = vweird.f32 %v3051
      %vm3117 = vweird.f32 %v3111
      %vm3118 = vmor %vm3116, %vm3117
      %v3119 = vsel %vm3118, %v3111, %v3115
      %v3120 = vand.u32 2147483647, %v3051
      %vm3121 = vcmp.eq.f32.partialorder %v3120, 8.507059e+37
      %v3122 = vand.u32 %v3051, 2147483648
      %v3123 = vor.u32 1.1754944e-38, %v3122
      %v3124 = vsel %vm3121, %v3123, %v3119
      %v3125 = vmul.f32 1.0, %v3124
      %v3126 = vrcp.pop %v3052
      %v3127 = vmul.f32 %v3052, %v3126
      %v3128 = vsub.f32 1.0, %v3127
      %v3129 = vmul.f32 %v3126, %v3128
      %v3130 = vadd.f32 %v3126, %v3129
      %vm3131 = vweird.f32 %v3052
      %vm3132 = vweird.f32 %v3126
      %vm3133 = vmor %vm3131, %vm3132
      %v3134 = vsel %vm3133, %v3126, %v3130
      %v3135 = vand.u32 2147483647, %v3052
      %vm3136 = vcmp.eq.f32.partialorder %v3135, 8.507059e+37
      %v3137 = vand.u32 %v3052, 2147483648
      %v3138 = vor.u32 1.1754944e-38, %v3137
      %v3139 = vsel %vm3136, %v3138, %v3134
      %v3140 = vmul.f32 1.0, %v3139
      %v3141 = vrcp.pop %v3053
      %v3142 = vmul.f32 %v3053, %v3141
      %v3143 = vsub.f32 1.0, %v3142
      %v3144 = vmul.f32 %v3141, %v3143
      %v3145 = vadd.f32 %v3141, %v3144
      %vm3146 = vweird.f32 %v3053
      %vm3147 = vweird.f32 %v3141
      %vm3148 = vmor %vm3146, %vm3147
      %v3149 = vsel %vm3148, %v3141, %v3145
      %v3150 = vand.u32 2147483647, %v3053
      %vm3151 = vcmp.eq.f32.partialorder %v3150, 8.507059e+37
      %v3152 = vand.u32 %v3053, 2147483648
      %v3153 = vor.u32 1.1754944e-38, %v3152
      %v3154 = vsel %vm3151, %v3153, %v3149
      %v3155 = vmul.f32 1.0, %v3154
      %v3156 = vrcp.pop %v3054
      %v3157 = vmul.f32 %v3054, %v3156
      %v3158 = vsub.f32 1.0, %v3157
      %v3159 = vmul.f32 %v3156, %v3158
      %v3160 = vadd.f32 %v3156, %v3159
      %vm3161 = vweird.f32 %v3054
      %vm3162 = vweird.f32 %v3156
      %vm3163 = vmor %vm3161, %vm3162
      %v3164 = vsel %vm3163, %v3156, %v3160
      %v3165 = vand.u32 2147483647, %v3054
      %vm3166 = vcmp.eq.f32.partialorder %v3165, 8.507059e+37
      %v3167 = vand.u32 %v3054, 2147483648
      %v3168 = vor.u32 1.1754944e-38, %v3167
      %v3169 = vsel %vm3166, %v3168, %v3164
      %v3170 = vmul.f32 1.0, %v3169
      %v3171 = vrcp.pop %v3055
      %v3172 = vmul.f32 %v3055, %v3171
      %v3173 = vsub.f32 1.0, %v3172
      %v3174 = vmul.f32 %v3171, %v3173
      %v3175 = vadd.f32 %v3171, %v3174
      %vm3176 = vweird.f32 %v3055
      %vm3177 = vweird.f32 %v3171
      %vm3178 = vmor %vm3176, %vm3177
      %v3179 = vsel %vm3178, %v3171, %v3175
      %v3180 = vand.u32 2147483647, %v3055
      %vm3181 = vcmp.eq.f32.partialorder %v3180, 8.507059e+37
      %v3182 = vand.u32 %v3055, 2147483648
      %v3183 = vor.u32 1.1754944e-38, %v3182
      %v3184 = vsel %vm3181, %v3183, %v3179
      %v3185 = vmul.f32 1.0, %v3184
      %v3186 = vrcp.pop %v3056
      %v3187 = vmul.f32 %v3056, %v3186
      %v3188 = vsub.f32 1.0, %v3187
      %v3189 = vmul.f32 %v3186, %v3188
      %v3190 = vadd.f32 %v3186, %v3189
      %vm3191 = vweird.f32 %v3056
      %vm3192 = vweird.f32 %v3186
      %vm3193 = vmor %vm3191, %vm3192
      %v3194 = vsel %vm3193, %v3186, %v3190
      %v3195 = vand.u32 2147483647, %v3056
      %vm3196 = vcmp.eq.f32.partialorder %v3195, 8.507059e+37
      %v3197 = vand.u32 %v3056, 2147483648
      %v3198 = vor.u32 1.1754944e-38, %v3197
      %v3199 = vsel %vm3196, %v3198, %v3194
      %v3200 = vmul.f32 1.0, %v3199
      %v3201 = vrcp.pop %v3057
      %v3202 = vmul.f32 %v3057, %v3201
      %v3203 = vsub.f32 1.0, %v3202
      %v3204 = vmul.f32 %v3201, %v3203
      %v3205 = vadd.f32 %v3201, %v3204
      %vm3206 = vweird.f32 %v3057
      %vm3207 = vweird.f32 %v3201
      %vm3208 = vmor %vm3206, %vm3207
      %v3209 = vsel %vm3208, %v3201, %v3205
      %v3210 = vand.u32 2147483647, %v3057
      %vm3211 = vcmp.eq.f32.partialorder %v3210, 8.507059e+37
      %v3212 = vand.u32 %v3057, 2147483648
      %v3213 = vor.u32 1.1754944e-38, %v3212
      %v3214 = vsel %vm3211, %v3213, %v3209
      %v3215 = vmul.f32 1.0, %v3214
      %v3216 = vrcp.pop %v3058
      %v3217 = vmul.f32 %v3058, %v3216
      %v3218 = vsub.f32 1.0, %v3217
      %v3219 = vmul.f32 %v3216, %v3218
      %v3220 = vadd.f32 %v3216, %v3219
      %vm3221 = vweird.f32 %v3058
      %vm3222 = vweird.f32 %v3216
      %vm3223 = vmor %vm3221, %vm3222
      %v3224 = vsel %vm3223, %v3216, %v3220
      %v3225 = vand.u32 2147483647, %v3058
      %vm3226 = vcmp.eq.f32.partialorder %v3225, 8.507059e+37
      %v3227 = vand.u32 %v3058, 2147483648
      %v3228 = vor.u32 1.1754944e-38, %v3227
      %v3229 = vsel %vm3226, %v3228, %v3224
      %v3230 = vmul.f32 1.0, %v3229
      %v3231 = vrcp.pop %v3059
      %v3232 = vmul.f32 %v3059, %v3231
      %v3233 = vsub.f32 1.0, %v3232
      %v3234 = vmul.f32 %v3231, %v3233
      %v3235 = vadd.f32 %v3231, %v3234
      %vm3236 = vweird.f32 %v3059
      %vm3237 = vweird.f32 %v3231
      %vm3238 = vmor %vm3236, %vm3237
      %v3239 = vsel %vm3238, %v3231, %v3235
      %v3240 = vand.u32 2147483647, %v3059
      %vm3241 = vcmp.eq.f32.partialorder %v3240, 8.507059e+37
      %v3242 = vand.u32 %v3059, 2147483648
      %v3243 = vor.u32 1.1754944e-38, %v3242
      %v3244 = vsel %vm3241, %v3243, %v3239
      %v3245 = vmul.f32 1.0, %v3244
      %v3246 = vrcp.pop %v3060
      %v3247 = vmul.f32 %v3060, %v3246
      %v3248 = vsub.f32 1.0, %v3247
      %v3249 = vmul.f32 %v3246, %v3248
      %v3250 = vadd.f32 %v3246, %v3249
      %vm3251 = vweird.f32 %v3060
      %vm3252 = vweird.f32 %v3246
      %vm3253 = vmor %vm3251, %vm3252
      %v3254 = vsel %vm3253, %v3246, %v3250
      %v3255 = vand.u32 2147483647, %v3060
      %vm3256 = vcmp.eq.f32.partialorder %v3255, 8.507059e+37
      %v3257 = vand.u32 %v3060, 2147483648
      %v3258 = vor.u32 1.1754944e-38, %v3257
      %v3259 = vsel %vm3256, %v3258, %v3254
      %v3260 = vmul.f32 1.0, %v3259
      %v3261 = vrcp.pop %v3061
      %v3262 = vmul.f32 %v3061, %v3261
      %v3263 = vsub.f32 1.0, %v3262
      %v3264 = vmul.f32 %v3261, %v3263
      %v3265 = vadd.f32 %v3261, %v3264
      %vm3266 = vweird.f32 %v3061
      %vm3267 = vweird.f32 %v3261
      %vm3268 = vmor %vm3266, %vm3267
      %v3269 = vsel %vm3268, %v3261, %v3265
      %v3270 = vand.u32 2147483647, %v3061
      %vm3271 = vcmp.eq.f32.partialorder %v3270, 8.507059e+37
      %v3272 = vand.u32 %v3061, 2147483648
      %v3273 = vor.u32 1.1754944e-38, %v3272
      %v3274 = vsel %vm3271, %v3273, %v3269
      %v3275 = vmul.f32 1.0, %v3274
      %v3276 = vrcp.pop %v3062
      %v3277 = vmul.f32 %v3062, %v3276
      %v3278 = vsub.f32 1.0, %v3277
      %v3279 = vmul.f32 %v3276, %v3278
      %v3280 = vadd.f32 %v3276, %v3279
      %vm3281 = vweird.f32 %v3062
      %vm3282 = vweird.f32 %v3276
      %vm3283 = vmor %vm3281, %vm3282
      %v3284 = vsel %vm3283, %v3276, %v3280
      %v3285 = vand.u32 2147483647, %v3062
      %vm3286 = vcmp.eq.f32.partialorder %v3285, 8.507059e+37
      %v3287 = vand.u32 %v3062, 2147483648
      %v3288 = vor.u32 1.1754944e-38, %v3287
      %v3289 = vsel %vm3286, %v3288, %v3284
      %v3290 = vmul.f32 1.0, %v3289
      %v3291 = vrcp.pop %v3063
      %v3292 = vmul.f32 %v3063, %v3291
      %v3293 = vsub.f32 1.0, %v3292
      %v3294 = vmul.f32 %v3291, %v3293
      %v3295 = vadd.f32 %v3291, %v3294
      %vm3296 = vweird.f32 %v3063
      %vm3297 = vweird.f32 %v3291
      %vm3298 = vmor %vm3296, %vm3297
      %v3299 = vsel %vm3298, %v3291, %v3295
      %v3300 = vand.u32 2147483647, %v3063
      %vm3301 = vcmp.eq.f32.partialorder %v3300, 8.507059e+37
      %v3302 = vand.u32 %v3063, 2147483648
      %v3303 = vor.u32 1.1754944e-38, %v3302
      %v3304 = vsel %vm3301, %v3303, %v3299
      %v3305 = vmul.f32 1.0, %v3304
      %v3306 = vrcp.pop %v3064
      %v3307 = vmul.f32 %v3064, %v3306
      %v3308 = vsub.f32 1.0, %v3307
      %v3309 = vmul.f32 %v3306, %v3308
      %v3310 = vadd.f32 %v3306, %v3309
      %vm3311 = vweird.f32 %v3064
      %vm3312 = vweird.f32 %v3306
      %vm3313 = vmor %vm3311, %vm3312
      %v3314 = vsel %vm3313, %v3306, %v3310
      %v3315 = vand.u32 2147483647, %v3064
      %vm3316 = vcmp.eq.f32.partialorder %v3315, 8.507059e+37
      %v3317 = vand.u32 %v3064, 2147483648
      %v3318 = vor.u32 1.1754944e-38, %v3317
      %v3319 = vsel %vm3316, %v3318, %v3314
      %v3320 = vmul.f32 1.0, %v3319
      %v3321 = vrcp.pop %v3065
      %v3322 = vmul.f32 %v3065, %v3321
      %v3323 = vsub.f32 1.0, %v3322
      %v3324 = vmul.f32 %v3321, %v3323
      %v3325 = vadd.f32 %v3321, %v3324
      %vm3326 = vweird.f32 %v3065
      %vm3327 = vweird.f32 %v3321
      %vm3328 = vmor %vm3326, %vm3327
      %v3329 = vsel %vm3328, %v3321, %v3325
      %v3330 = vand.u32 2147483647, %v3065
      %vm3331 = vcmp.eq.f32.partialorder %v3330, 8.507059e+37
      %v3332 = vand.u32 %v3065, 2147483648
      %v3333 = vor.u32 1.1754944e-38, %v3332
      %v3334 = vsel %vm3331, %v3333, %v3329
      %v3335 = vmul.f32 1.0, %v3334
      %v3336 = vrcp.pop %v3066
      %v3337 = vmul.f32 %v3066, %v3336
      %v3338 = vsub.f32 1.0, %v3337
      %v3339 = vmul.f32 %v3336, %v3338
      %v3340 = vadd.f32 %v3336, %v3339
      %vm3341 = vweird.f32 %v3066
      %vm3342 = vweird.f32 %v3336
      %vm3343 = vmor %vm3341, %vm3342
      %v3344 = vsel %vm3343, %v3336, %v3340
      %v3345 = vand.u32 2147483647, %v3066
      %vm3346 = vcmp.eq.f32.partialorder %v3345, 8.507059e+37
      %v3347 = vand.u32 %v3066, 2147483648
      %v3348 = vor.u32 1.1754944e-38, %v3347
      %v3349 = vsel %vm3346, %v3348, %v3344
      %v3350 = vmul.f32 1.0, %v3349
      %v3351 = vrcp.pop %v3067
      %v3352 = vmul.f32 %v3067, %v3351
      %v3353 = vsub.f32 1.0, %v3352
      %v3354 = vmul.f32 %v3351, %v3353
      %v3355 = vadd.f32 %v3351, %v3354
      %vm3356 = vweird.f32 %v3067
      %vm3357 = vweird.f32 %v3351
      %vm3358 = vmor %vm3356, %vm3357
      %v3359 = vsel %vm3358, %v3351, %v3355
      %v3360 = vand.u32 2147483647, %v3067
      %vm3361 = vcmp.eq.f32.partialorder %v3360, 8.507059e+37
      %v3362 = vand.u32 %v3067, 2147483648
      %v3363 = vor.u32 1.1754944e-38, %v3362
      %v3364 = vsel %vm3361, %v3363, %v3359
      %v3365 = vmul.f32 1.0, %v3364
      %v3366 = vrcp.pop %v3068
      %v3367 = vmul.f32 %v3068, %v3366
      %v3368 = vsub.f32 1.0, %v3367
      %v3369 = vmul.f32 %v3366, %v3368
      %v3370 = vadd.f32 %v3366, %v3369
      %vm3371 = vweird.f32 %v3068
      %vm3372 = vweird.f32 %v3366
      %vm3373 = vmor %vm3371, %vm3372
      %v3374 = vsel %vm3373, %v3366, %v3370
      %v3375 = vand.u32 2147483647, %v3068
      %vm3376 = vcmp.eq.f32.partialorder %v3375, 8.507059e+37
      %v3377 = vand.u32 %v3068, 2147483648
      %v3378 = vor.u32 1.1754944e-38, %v3377
      %v3379 = vsel %vm3376, %v3378, %v3374
      %v3380 = vmul.f32 1.0, %v3379
      %v3381 = vrcp.pop %v3069
      %v3382 = vmul.f32 %v3069, %v3381
      %v3383 = vsub.f32 1.0, %v3382
      %v3384 = vmul.f32 %v3381, %v3383
      %v3385 = vadd.f32 %v3381, %v3384
      %vm3386 = vweird.f32 %v3069
      %vm3387 = vweird.f32 %v3381
      %vm3388 = vmor %vm3386, %vm3387
      %v3389 = vsel %vm3388, %v3381, %v3385
      %v3390 = vand.u32 2147483647, %v3069
      %vm3391 = vcmp.eq.f32.partialorder %v3390, 8.507059e+37
      %v3392 = vand.u32 %v3069, 2147483648
      %v3393 = vor.u32 1.1754944e-38, %v3392
      %v3394 = vsel %vm3391, %v3393, %v3389
      %v3395 = vmul.f32 1.0, %v3394
      %v3396 = vrcp.pop %v3070
      %v3397 = vmul.f32 %v3070, %v3396
      %v3398 = vsub.f32 1.0, %v3397
      %v3399 = vmul.f32 %v3396, %v3398
      %v3400 = vadd.f32 %v3396, %v3399
      %vm3401 = vweird.f32 %v3070
      %vm3402 = vweird.f32 %v3396
      %vm3403 = vmor %vm3401, %vm3402
      %v3404 = vsel %vm3403, %v3396, %v3400
      %v3405 = vand.u32 2147483647, %v3070
      %vm3406 = vcmp.eq.f32.partialorder %v3405, 8.507059e+37
      %v3407 = vand.u32 %v3070, 2147483648
      %v3408 = vor.u32 1.1754944e-38, %v3407
      %v3409 = vsel %vm3406, %v3408, %v3404
      %v3410 = vmul.f32 1.0, %v3409
      %v3411 = vrcp.pop %v3071
      %v3412 = vmul.f32 %v3071, %v3411
      %v3413 = vsub.f32 1.0, %v3412
      %v3414 = vmul.f32 %v3411, %v3413
      %v3415 = vadd.f32 %v3411, %v3414
      %vm3416 = vweird.f32 %v3071
      %vm3417 = vweird.f32 %v3411
      %vm3418 = vmor %vm3416, %vm3417
      %v3419 = vsel %vm3418, %v3411, %v3415
      %v3420 = vand.u32 2147483647, %v3071
      %vm3421 = vcmp.eq.f32.partialorder %v3420, 8.507059e+37
      %v3422 = vand.u32 %v3071, 2147483648
      %v3423 = vor.u32 1.1754944e-38, %v3422
      %v3424 = vsel %vm3421, %v3423, %v3419
      %v3425 = vmul.f32 1.0, %v3424
      %v3426 = vrcp.pop %v3072
      %v3427 = vmul.f32 %v3072, %v3426
      %v3428 = vsub.f32 1.0, %v3427
      %v3429 = vmul.f32 %v3426, %v3428
      %v3430 = vadd.f32 %v3426, %v3429
      %vm3431 = vweird.f32 %v3072
      %vm3432 = vweird.f32 %v3426
      %vm3433 = vmor %vm3431, %vm3432
      %v3434 = vsel %vm3433, %v3426, %v3430
      %v3435 = vand.u32 2147483647, %v3072
      %vm3436 = vcmp.eq.f32.partialorder %v3435, 8.507059e+37
      %v3437 = vand.u32 %v3072, 2147483648
      %v3438 = vor.u32 1.1754944e-38, %v3437
      %v3439 = vsel %vm3436, %v3438, %v3434
      %v3440 = vmul.f32 1.0, %v3439
      %v3441 = vrcp.pop %v3073
      %v3442 = vmul.f32 %v3073, %v3441
      %v3443 = vsub.f32 1.0, %v3442
      %v3444 = vmul.f32 %v3441, %v3443
      %v3445 = vadd.f32 %v3441, %v3444
      %vm3446 = vweird.f32 %v3073
      %vm3447 = vweird.f32 %v3441
      %vm3448 = vmor %vm3446, %vm3447
      %v3449 = vsel %vm3448, %v3441, %v3445
      %v3450 = vand.u32 2147483647, %v3073
      %vm3451 = vcmp.eq.f32.partialorder %v3450, 8.507059e+37
      %v3452 = vand.u32 %v3073, 2147483648
      %v3453 = vor.u32 1.1754944e-38, %v3452
      %v3454 = vsel %vm3451, %v3453, %v3449
      %v3455 = vmul.f32 1.0, %v3454
      %v3456 = vrcp.pop %v3074
      %v3457 = vmul.f32 %v3074, %v3456
      %v3458 = vsub.f32 1.0, %v3457
      %v3459 = vmul.f32 %v3456, %v3458
      %v3460 = vadd.f32 %v3456, %v3459
      %vm3461 = vweird.f32 %v3074
      %vm3462 = vweird.f32 %v3456
      %vm3463 = vmor %vm3461, %vm3462
      %v3464 = vsel %vm3463, %v3456, %v3460
      %v3465 = vand.u32 2147483647, %v3074
      %vm3466 = vcmp.eq.f32.partialorder %v3465, 8.507059e+37
      %v3467 = vand.u32 %v3074, 2147483648
      %v3468 = vor.u32 1.1754944e-38, %v3467
      %v3469 = vsel %vm3466, %v3468, %v3464
      %v3470 = vmul.f32 1.0, %v3469
      %v3471 = vrcp.pop %v3075
      %v3472 = vmul.f32 %v3075, %v3471
      %v3473 = vsub.f32 1.0, %v3472
      %v3474 = vmul.f32 %v3471, %v3473
      %v3475 = vadd.f32 %v3471, %v3474
      %vm3476 = vweird.f32 %v3075
      %vm3477 = vweird.f32 %v3471
      %vm3478 = vmor %vm3476, %vm3477
      %v3479 = vsel %vm3478, %v3471, %v3475
      %v3480 = vand.u32 2147483647, %v3075
      %vm3481 = vcmp.eq.f32.partialorder %v3480, 8.507059e+37
      %v3482 = vand.u32 %v3075, 2147483648
      %v3483 = vor.u32 1.1754944e-38, %v3482
      %v3484 = vsel %vm3481, %v3483, %v3479
      %v3485 = vmul.f32 1.0, %v3484
      %v3486 = vrcp.pop %v3076
      %v3487 = vmul.f32 %v3076, %v3486
      %v3488 = vsub.f32 1.0, %v3487
      %v3489 = vmul.f32 %v3486, %v3488
      %v3490 = vadd.f32 %v3486, %v3489
      %vm3491 = vweird.f32 %v3076
      %vm3492 = vweird.f32 %v3486
      %vm3493 = vmor %vm3491, %vm3492
      %v3494 = vsel %vm3493, %v3486, %v3490
      %v3495 = vand.u32 2147483647, %v3076
      %vm3496 = vcmp.eq.f32.partialorder %v3495, 8.507059e+37
      %v3497 = vand.u32 %v3076, 2147483648
      %v3498 = vor.u32 1.1754944e-38, %v3497
      %v3499 = vsel %vm3496, %v3498, %v3494
      %v3500 = vmul.f32 1.0, %v3499
      %v3501 = vrcp.pop %v3077
      %v3502 = vmul.f32 %v3077, %v3501
      %v3503 = vsub.f32 1.0, %v3502
      %v3504 = vmul.f32 %v3501, %v3503
      %v3505 = vadd.f32 %v3501, %v3504
      %vm3506 = vweird.f32 %v3077
      %vm3507 = vweird.f32 %v3501
      %vm3508 = vmor %vm3506, %vm3507
      %v3509 = vsel %vm3508, %v3501, %v3505
      %v3510 = vand.u32 2147483647, %v3077
      %vm3511 = vcmp.eq.f32.partialorder %v3510, 8.507059e+37
      %v3512 = vand.u32 %v3077, 2147483648
      %v3513 = vor.u32 1.1754944e-38, %v3512
      %v3514 = vsel %vm3511, %v3513, %v3509
      %v3515 = vmul.f32 1.0, %v3514
      %v3516 = vrcp.pop %v3078
      %v3517 = vmul.f32 %v3078, %v3516
      %v3518 = vsub.f32 1.0, %v3517
      %v3519 = vmul.f32 %v3516, %v3518
      %v3520 = vadd.f32 %v3516, %v3519
      %vm3521 = vweird.f32 %v3078
      %vm3522 = vweird.f32 %v3516
      %vm3523 = vmor %vm3521, %vm3522
      %v3524 = vsel %vm3523, %v3516, %v3520
      %v3525 = vand.u32 2147483647, %v3078
      %vm3526 = vcmp.eq.f32.partialorder %v3525, 8.507059e+37
      %v3527 = vand.u32 %v3078, 2147483648
      %v3528 = vor.u32 1.1754944e-38, %v3527
      %v3529 = vsel %vm3526, %v3528, %v3524
      %v3530 = vmul.f32 1.0, %v3529
      %v3531 = vrcp.pop %v3079
      %v3532 = vmul.f32 %v3079, %v3531
      %v3533 = vsub.f32 1.0, %v3532
      %v3534 = vmul.f32 %v3531, %v3533
      %v3535 = vadd.f32 %v3531, %v3534
      %vm3536 = vweird.f32 %v3079
      %vm3537 = vweird.f32 %v3531
      %vm3538 = vmor %vm3536, %vm3537
      %v3539 = vsel %vm3538, %v3531, %v3535
      %v3540 = vand.u32 2147483647, %v3079
      %vm3541 = vcmp.eq.f32.partialorder %v3540, 8.507059e+37
      %v3542 = vand.u32 %v3079, 2147483648
      %v3543 = vor.u32 1.1754944e-38, %v3542
      %v3544 = vsel %vm3541, %v3543, %v3539
      %v3545 = vmul.f32 1.0, %v3544
      %v3546 = vrcp.pop %v3080
      %v3547 = vmul.f32 %v3080, %v3546
      %v3548 = vsub.f32 1.0, %v3547
      %v3549 = vmul.f32 %v3546, %v3548
      %v3550 = vadd.f32 %v3546, %v3549
      %vm3551 = vweird.f32 %v3080
      %vm3552 = vweird.f32 %v3546
      %vm3553 = vmor %vm3551, %vm3552
      %v3554 = vsel %vm3553, %v3546, %v3550
      %v3555 = vand.u32 2147483647, %v3080
      %vm3556 = vcmp.eq.f32.partialorder %v3555, 8.507059e+37
      %v3557 = vand.u32 %v3080, 2147483648
      %v3558 = vor.u32 1.1754944e-38, %v3557
      %v3559 = vsel %vm3556, %v3558, %v3554
      %v3560 = vmul.f32 1.0, %v3559
      %3593 = vrot.lane.b32.xlu0 %v3095, 8
      %v3594 = vpop.permute.xlu0 %3593
      %3595 = vrot.lane.b32.xlu0 %v3110, 8
      %v3596 = vpop.permute.xlu0 %3595
      %3597 = vrot.lane.b32.xlu0 %v3125, 8
      %v3598 = vpop.permute.xlu0 %3597
      %3599 = vrot.lane.b32.xlu0 %v3140, 8
      %v3600 = vpop.permute.xlu0 %3599
      %3601 = vrot.lane.b32.xlu0 %v3155, 8
      %v3602 = vpop.permute.xlu0 %3601
      %3603 = vrot.lane.b32.xlu0 %v3170, 8
      %v3604 = vpop.permute.xlu0 %3603
      %3605 = vrot.lane.b32.xlu0 %v3185, 8
      %v3606 = vpop.permute.xlu0 %3605
      %3607 = vrot.lane.b32.xlu0 %v3200, 8
      %v3608 = vpop.permute.xlu0 %3607
      %3609 = vrot.lane.b32.xlu0 %v3215, 8
      %v3610 = vpop.permute.xlu0 %3609
      %3611 = vrot.lane.b32.xlu0 %v3230, 8
      %v3612 = vpop.permute.xlu0 %3611
      %3613 = vrot.lane.b32.xlu0 %v3245, 8
      %v3614 = vpop.permute.xlu0 %3613
      %3615 = vrot.lane.b32.xlu0 %v3260, 8
      %v3616 = vpop.permute.xlu0 %3615
      %3617 = vrot.lane.b32.xlu0 %v3275, 8
      %v3618 = vpop.permute.xlu0 %3617
      %3619 = vrot.lane.b32.xlu0 %v3290, 8
      %v3620 = vpop.permute.xlu0 %3619
      %3621 = vrot.lane.b32.xlu0 %v3305, 8
      %v3622 = vpop.permute.xlu0 %3621
      %3623 = vrot.lane.b32.xlu0 %v3320, 8
      %v3624 = vpop.permute.xlu0 %3623
      %3625 = vrot.lane.b32.xlu0 %v3335, 8
      %v3626 = vpop.permute.xlu0 %3625
      %3627 = vrot.lane.b32.xlu0 %v3350, 8
      %v3628 = vpop.permute.xlu0 %3627
      %3629 = vrot.lane.b32.xlu0 %v3365, 8
      %v3630 = vpop.permute.xlu0 %3629
      %3631 = vrot.lane.b32.xlu0 %v3380, 8
      %v3632 = vpop.permute.xlu0 %3631
      %3633 = vrot.lane.b32.xlu0 %v3395, 8
      %v3634 = vpop.permute.xlu0 %3633
      %3635 = vrot.lane.b32.xlu0 %v3410, 8
      %v3636 = vpop.permute.xlu0 %3635
      %3637 = vrot.lane.b32.xlu0 %v3425, 8
      %v3638 = vpop.permute.xlu0 %3637
      %3639 = vrot.lane.b32.xlu0 %v3440, 8
      %v3640 = vpop.permute.xlu0 %3639
      %3641 = vrot.lane.b32.xlu0 %v3455, 8
      %v3642 = vpop.permute.xlu0 %3641
      %3643 = vrot.lane.b32.xlu0 %v3470, 8
      %v3644 = vpop.permute.xlu0 %3643
      %3645 = vrot.lane.b32.xlu0 %v3485, 8
      %v3646 = vpop.permute.xlu0 %3645
      %3647 = vrot.lane.b32.xlu0 %v3500, 8
      %v3648 = vpop.permute.xlu0 %3647
      %3649 = vrot.lane.b32.xlu0 %v3515, 8
      %v3650 = vpop.permute.xlu0 %3649
      %3651 = vrot.lane.b32.xlu0 %v3530, 8
      %v3652 = vpop.permute.xlu0 %3651
      %3653 = vrot.lane.b32.xlu0 %v3545, 8
      %v3654 = vpop.permute.xlu0 %3653
      %3655 = vrot.lane.b32.xlu0 %v3560, 8
      %v3656 = vpop.permute.xlu0 %3655
      %v3689 = vmul.f32 %v2889, %v3594
      %v3690 = vmul.f32 %v2890, %v3596
      %v3691 = vmul.f32 %v2891, %v3598
      %v3692 = vmul.f32 %v2892, %v3600
      %v3693 = vmul.f32 %v2893, %v3602
      %v3694 = vmul.f32 %v2894, %v3604
      %v3695 = vmul.f32 %v2895, %v3606
      %v3696 = vmul.f32 %v2896, %v3608
      %v3697 = vmul.f32 %v2897, %v3610
      %v3698 = vmul.f32 %v2898, %v3612
      %v3699 = vmul.f32 %v2899, %v3614
      %v3700 = vmul.f32 %v2900, %v3616
      %v3701 = vmul.f32 %v2901, %v3618
      %v3702 = vmul.f32 %v2902, %v3620
      %v3703 = vmul.f32 %v2903, %v3622
      %v3704 = vmul.f32 %v2904, %v3624
      %v3705 = vmul.f32 %v2905, %v3626
      %v3706 = vmul.f32 %v2906, %v3628
      %v3707 = vmul.f32 %v2907, %v3630
      %v3708 = vmul.f32 %v2908, %v3632
      %v3709 = vmul.f32 %v2909, %v3634
      %v3710 = vmul.f32 %v2910, %v3636
      %v3711 = vmul.f32 %v2911, %v3638
      %v3712 = vmul.f32 %v2912, %v3640
      %v3713 = vmul.f32 %v2913, %v3642
      %v3714 = vmul.f32 %v2914, %v3644
      %v3715 = vmul.f32 %v2915, %v3646
      %v3716 = vmul.f32 %v2916, %v3648
      %v3717 = vmul.f32 %v2917, %v3650
      %v3718 = vmul.f32 %v2918, %v3652
      %v3719 = vmul.f32 %v2919, %v3654
      %v3720 = vmul.f32 %v2920, %v3656
      %3753 = vrot.lane.b32.xlu0 %v3689, 120
      %v3754 = vpop.permute.xlu0 %3753
      %3755 = vrot.lane.b32.xlu0 %v3690, 120
      %v3756 = vpop.permute.xlu0 %3755
      %3757 = vrot.lane.b32.xlu0 %v3691, 120
      %v3758 = vpop.permute.xlu0 %3757
      %3759 = vrot.lane.b32.xlu0 %v3692, 120
      %v3760 = vpop.permute.xlu0 %3759
      %3761 = vrot.lane.b32.xlu0 %v3693, 120
      %v3762 = vpop.permute.xlu0 %3761
      %3763 = vrot.lane.b32.xlu0 %v3694, 120
      %v3764 = vpop.permute.xlu0 %3763
      %3765 = vrot.lane.b32.xlu0 %v3695, 120
      %v3766 = vpop.permute.xlu0 %3765
      %3767 = vrot.lane.b32.xlu0 %v3696, 120
      %v3768 = vpop.permute.xlu0 %3767
      %3769 = vrot.lane.b32.xlu0 %v3697, 120
      %v3770 = vpop.permute.xlu0 %3769
      %3771 = vrot.lane.b32.xlu0 %v3698, 120
      %v3772 = vpop.permute.xlu0 %3771
      %3773 = vrot.lane.b32.xlu0 %v3699, 120
      %v3774 = vpop.permute.xlu0 %3773
      %3775 = vrot.lane.b32.xlu0 %v3700, 120
      %v3776 = vpop.permute.xlu0 %3775
      %3777 = vrot.lane.b32.xlu0 %v3701, 120
      %v3778 = vpop.permute.xlu0 %3777
      %3779 = vrot.lane.b32.xlu0 %v3702, 120
      %v3780 = vpop.permute.xlu0 %3779
      %3781 = vrot.lane.b32.xlu0 %v3703, 120
      %v3782 = vpop.permute.xlu0 %3781
      %3783 = vrot.lane.b32.xlu0 %v3704, 120
      %v3784 = vpop.permute.xlu0 %3783
      %3785 = vrot.lane.b32.xlu0 %v3705, 120
      %v3786 = vpop.permute.xlu0 %3785
      %3787 = vrot.lane.b32.xlu0 %v3706, 120
      %v3788 = vpop.permute.xlu0 %3787
      %3789 = vrot.lane.b32.xlu0 %v3707, 120
      %v3790 = vpop.permute.xlu0 %3789
      %3791 = vrot.lane.b32.xlu0 %v3708, 120
      %v3792 = vpop.permute.xlu0 %3791
      %3793 = vrot.lane.b32.xlu0 %v3709, 120
      %v3794 = vpop.permute.xlu0 %3793
      %3795 = vrot.lane.b32.xlu0 %v3710, 120
      %v3796 = vpop.permute.xlu0 %3795
      %3797 = vrot.lane.b32.xlu0 %v3711, 120
      %v3798 = vpop.permute.xlu0 %3797
      %3799 = vrot.lane.b32.xlu0 %v3712, 120
      %v3800 = vpop.permute.xlu0 %3799
      %3801 = vrot.lane.b32.xlu0 %v3713, 120
      %v3802 = vpop.permute.xlu0 %3801
      %3803 = vrot.lane.b32.xlu0 %v3714, 120
      %v3804 = vpop.permute.xlu0 %3803
      %3805 = vrot.lane.b32.xlu0 %v3715, 120
      %v3806 = vpop.permute.xlu0 %3805
      %3807 = vrot.lane.b32.xlu0 %v3716, 120
      %v3808 = vpop.permute.xlu0 %3807
      %3809 = vrot.lane.b32.xlu0 %v3717, 120
      %v3810 = vpop.permute.xlu0 %3809
      %3811 = vrot.lane.b32.xlu0 %v3718, 120
      %v3812 = vpop.permute.xlu0 %3811
      %3813 = vrot.lane.b32.xlu0 %v3719, 120
      %v3814 = vpop.permute.xlu0 %3813
      %3815 = vrot.lane.b32.xlu0 %v3720, 120
      %v3816 = vpop.permute.xlu0 %3815
      %v3849 = vadd.f32 %v2921, %v3754
      %v3850 = vadd.f32 %v2922, %v3756
      %v3851 = vadd.f32 %v2923, %v3758
      %v3852 = vadd.f32 %v2924, %v3760
      %v3853 = vadd.f32 %v2925, %v3762
      %v3854 = vadd.f32 %v2926, %v3764
      %v3855 = vadd.f32 %v2927, %v3766
      %v3856 = vadd.f32 %v2928, %v3768
      %v3857 = vadd.f32 %v2929, %v3770
      %v3858 = vadd.f32 %v2930, %v3772
      %v3859 = vadd.f32 %v2931, %v3774
      %v3860 = vadd.f32 %v2932, %v3776
      %v3861 = vadd.f32 %v2933, %v3778
      %v3862 = vadd.f32 %v2934, %v3780
      %v3863 = vadd.f32 %v2935, %v3782
      %v3864 = vadd.f32 %v2936, %v3784
      %v3865 = vadd.f32 %v2937, %v3786
      %v3866 = vadd.f32 %v2938, %v3788
      %v3867 = vadd.f32 %v2939, %v3790
      %v3868 = vadd.f32 %v2940, %v3792
      %v3869 = vadd.f32 %v2941, %v3794
      %v3870 = vadd.f32 %v2942, %v3796
      %v3871 = vadd.f32 %v2943, %v3798
      %v3872 = vadd.f32 %v2944, %v3800
      %v3873 = vadd.f32 %v2945, %v3802
      %v3874 = vadd.f32 %v2946, %v3804
      %v3875 = vadd.f32 %v2947, %v3806
      %v3876 = vadd.f32 %v2948, %v3808
      %v3877 = vadd.f32 %v2949, %v3810
      %v3878 = vadd.f32 %v2950, %v3812
      %v3879 = vadd.f32 %v2951, %v3814
      %v3880 = vadd.f32 %v2952, %v3816
      %3881 = vst.msk [vmem:[#allocation3] sm:$0xff] %vm380, %v3849
      %3882 = vst.msk [vmem:[#allocation3 + $0x8] sm:$0xff] %vm380, %v3850
      %3883 = vst.msk [vmem:[#allocation3 + $0x10] sm:$0xff] %vm380, %v3851
      %3884 = vst.msk [vmem:[#allocation3 + $0x18] sm:$0xff] %vm380, %v3852
      %3885 = vst.msk [vmem:[#allocation3 + $0x20] sm:$0xff] %vm380, %v3853
      %3886 = vst.msk [vmem:[#allocation3 + $0x28] sm:$0xff] %vm380, %v3854
      %3887 = vst.msk [vmem:[#allocation3 + $0x30] sm:$0xff] %vm380, %v3855
      %3888 = vst.msk [vmem:[#allocation3 + $0x38] sm:$0xff] %vm380, %v3856
      %3889 = vst.msk [vmem:[#allocation3 + $0x40] sm:$0xff] %vm380, %v3857
      %3890 = vst.msk [vmem:[#allocation3 + $0x48] sm:$0xff] %vm380, %v3858
      %3891 = vst.msk [vmem:[#allocation3 + $0x50] sm:$0xff] %vm380, %v3859
      %3892 = vst.msk [vmem:[#allocation3 + $0x58] sm:$0xff] %vm380, %v3860
      %3893 = vst.msk [vmem:[#allocation3 + $0x60] sm:$0xff] %vm380, %v3861
      %3894 = vst.msk [vmem:[#allocation3 + $0x68] sm:$0xff] %vm380, %v3862
      %3895 = vst.msk [vmem:[#allocation3 + $0x70] sm:$0xff] %vm380, %v3863
      %3896 = vst.msk [vmem:[#allocation3 + $0x78] sm:$0xff] %vm380, %v3864
      %3897 = vst.msk [vmem:[#allocation3 + $0x80] sm:$0xff] %vm380, %v3865
      %3898 = vst.msk [vmem:[#allocation3 + $0x88] sm:$0xff] %vm380, %v3866
      %3899 = vst.msk [vmem:[#allocation3 + $0x90] sm:$0xff] %vm380, %v3867
      %3900 = vst.msk [vmem:[#allocation3 + $0x98] sm:$0xff] %vm380, %v3868
      %3901 = vst.msk [vmem:[#allocation3 + $0xa0] sm:$0xff] %vm380, %v3869
      %3902 = vst.msk [vmem:[#allocation3 + $0xa8] sm:$0xff] %vm380, %v3870
      %3903 = vst.msk [vmem:[#allocation3 + $0xb0] sm:$0xff] %vm380, %v3871
      %3904 = vst.msk [vmem:[#allocation3 + $0xb8] sm:$0xff] %vm380, %v3872
      %3905 = vst.msk [vmem:[#allocation3 + $0xc0] sm:$0xff] %vm380, %v3873
      %3906 = vst.msk [vmem:[#allocation3 + $0xc8] sm:$0xff] %vm380, %v3874
      %3907 = vst.msk [vmem:[#allocation3 + $0xd0] sm:$0xff] %vm380, %v3875
      %3908 = vst.msk [vmem:[#allocation3 + $0xd8] sm:$0xff] %vm380, %v3876
      %3909 = vst.msk [vmem:[#allocation3 + $0xe0] sm:$0xff] %vm380, %v3877
      %3910 = vst.msk [vmem:[#allocation3 + $0xe8] sm:$0xff] %vm380, %v3878
      %3911 = vst.msk [vmem:[#allocation3 + $0xf0] sm:$0xff] %vm380, %v3879
      %3912 = vst.msk [vmem:[#allocation3 + $0xf8] sm:$0xff] %vm380, %v3880
      %p3913 = scmp.eq.s32.totalorder %s36, 1
      // Predicated region
      $region37: #{tpu_custom_call.1} parent=31 // pred_check
        %p3914 = pneg %p3913
      $region38: #{tpu_custom_call.1} parent=31 // pred_check_branch
        %3916 = sbr.rel (%p3914) target = $region40
      $region39: #{tpu_custom_call.1} parent=31 // pred_region
        %v3917 = vld [vmem:[#allocation3] sm:$0xff]
        %v3918 = vld [vmem:[#allocation3 + $0x8] sm:$0xff]
        %v3919 = vld [vmem:[#allocation3 + $0x10] sm:$0xff]
        %v3920 = vld [vmem:[#allocation3 + $0x18] sm:$0xff]
        %v3921 = vld [vmem:[#allocation3 + $0x20] sm:$0xff]
        %v3922 = vld [vmem:[#allocation3 + $0x28] sm:$0xff]
        %v3923 = vld [vmem:[#allocation3 + $0x30] sm:$0xff]
        %v3924 = vld [vmem:[#allocation3 + $0x38] sm:$0xff]
        %v3925 = vld [vmem:[#allocation3 + $0x40] sm:$0xff]
        %v3926 = vld [vmem:[#allocation3 + $0x48] sm:$0xff]
        %v3927 = vld [vmem:[#allocation3 + $0x50] sm:$0xff]
        %v3928 = vld [vmem:[#allocation3 + $0x58] sm:$0xff]
        %v3929 = vld [vmem:[#allocation3 + $0x60] sm:$0xff]
        %v3930 = vld [vmem:[#allocation3 + $0x68] sm:$0xff]
        %v3931 = vld [vmem:[#allocation3 + $0x70] sm:$0xff]
        %v3932 = vld [vmem:[#allocation3 + $0x78] sm:$0xff]
        %v3933 = vld [vmem:[#allocation3 + $0x80] sm:$0xff]
        %v3934 = vld [vmem:[#allocation3 + $0x88] sm:$0xff]
        %v3935 = vld [vmem:[#allocation3 + $0x90] sm:$0xff]
        %v3936 = vld [vmem:[#allocation3 + $0x98] sm:$0xff]
        %v3937 = vld [vmem:[#allocation3 + $0xa0] sm:$0xff]
        %v3938 = vld [vmem:[#allocation3 + $0xa8] sm:$0xff]
        %v3939 = vld [vmem:[#allocation3 + $0xb0] sm:$0xff]
        %v3940 = vld [vmem:[#allocation3 + $0xb8] sm:$0xff]
        %v3941 = vld [vmem:[#allocation3 + $0xc0] sm:$0xff]
        %v3942 = vld [vmem:[#allocation3 + $0xc8] sm:$0xff]
        %v3943 = vld [vmem:[#allocation3 + $0xd0] sm:$0xff]
        %v3944 = vld [vmem:[#allocation3 + $0xd8] sm:$0xff]
        %v3945 = vld [vmem:[#allocation3 + $0xe0] sm:$0xff]
        %v3946 = vld [vmem:[#allocation3 + $0xe8] sm:$0xff]
        %v3947 = vld [vmem:[#allocation3 + $0xf0] sm:$0xff]
        %v3948 = vld [vmem:[#allocation3 + $0xf8] sm:$0xff]
        %3949 = vst.msk [vmem:[%s310] sm:$0xff] %vm380, %v3917
        %3950 = vst.msk [vmem:[%s310 + $0x8] sm:$0xff] %vm380, %v3918
        %3951 = vst.msk [vmem:[%s310 + $0x10] sm:$0xff] %vm380, %v3919
        %3952 = vst.msk [vmem:[%s310 + $0x18] sm:$0xff] %vm380, %v3920
        %3953 = vst.msk [vmem:[%s310 + $0x20] sm:$0xff] %vm380, %v3921
        %3954 = vst.msk [vmem:[%s310 + $0x28] sm:$0xff] %vm380, %v3922
        %3955 = vst.msk [vmem:[%s310 + $0x30] sm:$0xff] %vm380, %v3923
        %3956 = vst.msk [vmem:[%s310 + $0x38] sm:$0xff] %vm380, %v3924
        %3957 = vst.msk [vmem:[%s310 + $0x40] sm:$0xff] %vm380, %v3925
        %3958 = vst.msk [vmem:[%s310 + $0x48] sm:$0xff] %vm380, %v3926
        %3959 = vst.msk [vmem:[%s310 + $0x50] sm:$0xff] %vm380, %v3927
        %3960 = vst.msk [vmem:[%s310 + $0x58] sm:$0xff] %vm380, %v3928
        %3961 = vst.msk [vmem:[%s310 + $0x60] sm:$0xff] %vm380, %v3929
        %3962 = vst.msk [vmem:[%s310 + $0x68] sm:$0xff] %vm380, %v3930
        %3963 = vst.msk [vmem:[%s310 + $0x70] sm:$0xff] %vm380, %v3931
        %3964 = vst.msk [vmem:[%s310 + $0x78] sm:$0xff] %vm380, %v3932
        %3965 = vst.msk [vmem:[%s310 + $0x80] sm:$0xff] %vm380, %v3933
        %3966 = vst.msk [vmem:[%s310 + $0x88] sm:$0xff] %vm380, %v3934
        %3967 = vst.msk [vmem:[%s310 + $0x90] sm:$0xff] %vm380, %v3935
        %3968 = vst.msk [vmem:[%s310 + $0x98] sm:$0xff] %vm380, %v3936
        %3969 = vst.msk [vmem:[%s310 + $0xa0] sm:$0xff] %vm380, %v3937
        %3970 = vst.msk [vmem:[%s310 + $0xa8] sm:$0xff] %vm380, %v3938
        %3971 = vst.msk [vmem:[%s310 + $0xb0] sm:$0xff] %vm380, %v3939
        %3972 = vst.msk [vmem:[%s310 + $0xb8] sm:$0xff] %vm380, %v3940
        %3973 = vst.msk [vmem:[%s310 + $0xc0] sm:$0xff] %vm380, %v3941
        %3974 = vst.msk [vmem:[%s310 + $0xc8] sm:$0xff] %vm380, %v3942
        %3975 = vst.msk [vmem:[%s310 + $0xd0] sm:$0xff] %vm380, %v3943
        %3976 = vst.msk [vmem:[%s310 + $0xd8] sm:$0xff] %vm380, %v3944
        %3977 = vst.msk [vmem:[%s310 + $0xe0] sm:$0xff] %vm380, %v3945
        %3978 = vst.msk [vmem:[%s310 + $0xe8] sm:$0xff] %vm380, %v3946
        %3979 = vst.msk [vmem:[%s310 + $0xf0] sm:$0xff] %vm380, %v3947
        %3980 = vst.msk [vmem:[%s310 + $0xf8] sm:$0xff] %vm380, %v3948
      $region40: #{tpu_custom_call.1} parent=31 // pred_fallthru
        _
      %p3981 = scmp.lt.s32.totalorder %s34, 2
      %s3982 = scalar_select %p3981, %s34, 2
      %p3983 = scmp.lt.s32.totalorder %s35, 1
      %s3984 = scalar_select %p3983, %s35, 1
      %s3985 = smul.addr %s3984, 32
      %s3986 = smul.addr %s3982, 64
      %s3987 = sadd.s32 %s3985, %s3986
      %s3988 = smul.addr %s3987, 8
      %s3989 = scalar_lea.vmem %s5, %s3988
      // Predicated region
      $region41: #{tpu_custom_call.1} parent=31 // pred_check
        %p3990 = pneg %p158
      $region42: #{tpu_custom_call.1} parent=31 // pred_check_branch
        %3992 = sbr.rel (%p3990) target = $region44
      $region43: #{tpu_custom_call.1} parent=31 // pred_region
        _
      $region44: #{tpu_custom_call.1} parent=31 // pred_fallthru
        _
    $region32: #{tpu_custom_call.1} parent=5 // pred_fallthru
      _
    %p3993 = scmp.le.s32.totalorder 2, %s24
    // Predicated region
    $region45: #{tpu_custom_call.1} parent=5 // pred_check
      %p3994 = pneg %p3993
    $region46: #{tpu_custom_call.1} parent=5 // pred_check_branch
      %3996 = sbr.rel (%p3994) target = $region48
    $region47: #{tpu_custom_call.1} parent=5 // pred_region
      %s3997 = ssub.s32 %s24, 2
      // Predicated region
      $region49: #{tpu_custom_call.1} parent=47 // pred_check
        %p3998 = pneg %p164
      $region50: #{tpu_custom_call.1} parent=47 // pred_check_branch
        %4000 = sbr.rel (%p3998) target = $region52
      $region51: #{tpu_custom_call.1} parent=47 // pred_region
        %p4001 = scmp.lt.s32.totalorder %s37, 2
        %s4002 = scalar_select %p4001, %s37, 2
        %p4003 = scmp.lt.s32.totalorder %s38, 1
        %s4004 = scalar_select %p4003, %s38, 1
        %s4005 = smul.addr %s4004, 32
        %s4006 = smul.addr %s4002, 64
        %s4007 = sadd.s32 %s4005, %s4006
        %s4008 = smul.addr %s4007, 8
        %s4009 = scalar_lea.vmem %s5, %s4008
      $region52: #{tpu_custom_call.1} parent=47 // pred_fallthru
        _
    $region48: #{tpu_custom_call.1} parent=5 // pred_fallthru
      _
  $region6: #{tpu_custom_call.1} parent=0 // loop_footer
    %s28 = sadd.s32 1, %s24
  $region7: #{tpu_custom_call.1} parent=0 // loop_footer_branch
    %23 = sbr.rel target = $region3
  $region8: #{tpu_custom_call.1} parent=0 // loop_exit
    _

</llo_original>
